<compile_context>
chip_gen: v5e
topology: v5e:2x2
jax: 0.10.0
libtpu: 0.0.40
codegen_flags: <defaults>
</compile_context>

<pallas_src>
import functools

import jax
import jax.numpy as jnp
from jax import lax
from jax.experimental import pallas as pl
from jax.experimental.pallas import tpu as pltpu


def _mha_kernel(x_ref, wq_ref, wk_ref, wvp_ref, o_ref, k_scr, vp_scr, *,
                head_num, head_dim, tq, c):
    # x_ref:    (N, C)      f32, full sequence of the current batch element
    # wq_ref:   (C, C)      bf16, Q weight^T, head-major cols, sqrt(d) folded
    # wk_ref:   (C, C)      bf16, K weight^T, head-major cols
    # wvp_ref:  (H, C, C)   bf16, folded V->proj weight per head
    # o_ref:    (C, tq)     f32, output tile in (channel, token) layout
    # k_scr:    (N, C)      bf16 VMEM scratch (K), persists across query tiles
    # vp_scr:   (H, N, C)   bf16 VMEM scratch (Vp), persists across query tiles
    qi = pl.program_id(1)

    # --- per-batch precompute, carried across query tiles -----------------
    @pl.when(qi == 0)
    def _():
        x_bf = x_ref[...].astype(jnp.bfloat16)                       # (N, C)
        k_scr[...] = jnp.dot(
            x_bf, wk_ref[...],
            preferred_element_type=jnp.float32).astype(jnp.bfloat16)
        for hd in range(head_num):
            vp_scr[hd] = jnp.dot(
                x_bf, wvp_ref[hd],
                preferred_element_type=jnp.float32).astype(jnp.bfloat16)

    # --- per-query-tile work ----------------------------------------------
    q_start = pl.multiple_of(qi * tq, tq)
    x_q = x_ref[pl.ds(q_start, tq), :].astype(jnp.bfloat16)          # (tq, C)
    q_tile = jnp.dot(x_q, wq_ref[...],
                     preferred_element_type=jnp.float32).astype(jnp.bfloat16)

    # TODO(synk): convert to lax.fori_loop(unroll=True) / lane-aligned head
    # blocks if head_num grows or head_dim stays far below 128.
    for hd in range(head_num):
        lo = hd * head_dim
        q_h = q_tile[:, lo:lo + head_dim]                            # (tq, d)
        k_h = k_scr[:, lo:lo + head_dim]                             # (N, d)

        # energy^T = K @ Q^T  (scale already folded into Wq) -> (N, tq) f32
        energy_t = lax.dot_general(
            k_h, q_h, (((1,), (1,)), ((), ())),
            preferred_element_type=jnp.float32)

        # un-normalised softmax over the key axis (axis 0), strictly f32
        m = jnp.max(energy_t, axis=0, keepdims=True)                 # (1, tq)
        p_t = jnp.exp(energy_t - m)                                  # (N, tq)
        s = jnp.sum(p_t, axis=0, keepdims=True)                      # (1, tq)
        inv_s = pl.reciprocal(s, approx=False)                       # exact, f32

        # fat matmul: (N, C)^T-contracted with (N, tq) -> (C, tq) f32
        contrib = lax.dot_general(
            vp_scr[hd], p_t.astype(jnp.bfloat16),
            (((0,), (0,)), ((), ())),
            preferred_element_type=jnp.float32)

        scaled = contrib * inv_s                                     # (C, tq)

        # accumulate in VMEM (o_ref), not in a register-resident value
        if hd == 0:
            o_ref[...] = scaled
        else:
            o_ref[...] += scaled


def multi_head_attention(x_nchw, w_qkv, w_proj, head_num=4):
    """Pallas implementation of MultiHeadAttention.forward.

    x_nchw : (B, C, H, W) float32
    w_qkv  : (3*C, C)  weight of nn.Linear(dim, 3*dim, bias=False)
    w_proj : (C, C)    weight of nn.Linear(dim, dim, bias=False)
    """
    b, c, h, w = x_nchw.shape
    n = h * w
    assert c % head_num == 0
    head_dim = c // head_num
    scale = float(head_dim ** 0.5)   # multiplied, matching the module

    # Raw (non-permuting) reshape, exactly like torch's x.reshape(b, n, c).
    # Stays f32: the bf16 cast happens inside the kernel (no extra HBM pass).
    x_seq = jnp.reshape(x_nchw, (b, n, c))

    # --- trace-time weight glue (free) -------------------------------------
    # einops 'b t (d k h) -> k b h t d' decomposition of the fused qkv weight;
    # build per-matrix (C_in, C_out) weights with head-major output columns.
    wr = jnp.reshape(w_qkv.astype(jnp.float32), (head_dim, 3, head_num, c))

    def make_wt(k_idx):
        # output column = h*head_dim + d  (head-major)
        w_hdc = jnp.transpose(wr[:, k_idx, :, :], (1, 0, 2))          # (H, d, Cin)
        return jnp.transpose(jnp.reshape(w_hdc, (c, c)), (1, 0))      # (Cin, Cout)

    wq_t = (make_wt(0) * scale).astype(jnp.bfloat16)
    wk_t = make_wt(1).astype(jnp.bfloat16)
    wv_t = make_wt(2)                                                 # f32

    # per-head output projection: wp3[h, co, j] = w_proj[co, h*head_dim + j]
    wp3 = jnp.transpose(
        jnp.reshape(w_proj.astype(jnp.float32), (c, head_num, head_dim)),
        (1, 0, 2))                                                    # (H, Cout, d)
    # fold V and the output projection: Wvp[h] = Wv_h (Cin,d) @ Wp_h^T (d,Cout)
    wv3 = jnp.transpose(
        jnp.reshape(wv_t, (c, head_num, head_dim)), (1, 0, 2))        # (H, Cin, d)
    wvp = jnp.einsum('hid,hod->hio', wv3, wp3).astype(jnp.bfloat16)   # (H, Cin, Cout)

    # --- VMEM budget & query-tile selection ---------------------------------
    try:
        info = pltpu.get_tpu_info()
        vmem_cap = int(getattr(info, "vmem_capacity_bytes", 64 * 2 ** 20))
    except Exception:  # pragma: no cover - conservative fallback
        vmem_cap = 64 * 2 ** 20
    vmem_budget = vmem_cap * 3 // 4    # ~48 MiB on v7x, ~96 MiB on v5e/v6e

    def est_bytes(tq_):
        return (2 * n * c * 4                      # x block (f32, double buffered)
                + 2 * 2 * c * c * 2                # wq_t + wk_t (bf16, db)
                + 2 * head_num * c * c * 2         # wvp (bf16, db)
                + 2 * c * tq_ * 4                  # out block (f32, db)
                + n * c * 2                        # K scratch (bf16)
                + head_num * n * c * 2             # Vp scratch (bf16)
                + 4 * n * tq_ * 4                  # energy / exp working set (f32)
                + 4 * tq_ * c * 4)                 # q tile / contrib temporaries

    tq = None
    for cand in (512, 256, 128):
        if n % cand == 0 and est_bytes(cand) <= vmem_budget:
            tq = cand
            break
    if tq is None:
        # may exceed the budget for huge non-128-multiple N (see streaming TODO)
        tq = 128 if n % 128 == 0 else n

    vmem_limit = int(vmem_budget)

    kernel = functools.partial(_mha_kernel, head_num=head_num,
                               head_dim=head_dim, tq=tq, c=c)

    out_cn = pl.pallas_call(
        kernel,
        out_shape=jax.ShapeDtypeStruct((b, c, n), jnp.float32),
        grid_spec=pltpu.PrefetchScalarGridSpec(
            num_scalar_prefetch=0,
            grid=(b, n // tq),
            in_specs=[
                pl.BlockSpec((pl.Squeezed(), n, c), lambda bi, qi: (bi, 0, 0)),
                pl.BlockSpec((c, c), lambda bi, qi: (0, 0)),
                pl.BlockSpec((c, c), lambda bi, qi: (0, 0)),
                pl.BlockSpec((head_num, c, c), lambda bi, qi: (0, 0, 0)),
            ],
            out_specs=pl.BlockSpec((pl.Squeezed(), c, tq),
                                   lambda bi, qi: (bi, 0, qi)),
            scratch_shapes=[
                pltpu.VMEM((n, c), jnp.bfloat16),             # K (head-major cols)
                pltpu.VMEM((head_num, n, c), jnp.bfloat16),   # Vp per head
            ],
        ),
        compiler_params=pltpu.CompilerParams(
            dimension_semantics=("parallel", "arbitrary"),
            vmem_limit_bytes=vmem_limit),
    )(x_seq, wq_t, wk_t, wvp)

    # 'b t c -> b c (h w)' already done in-kernel; only a reshape remains.
    return jnp.reshape(out_cn, (b, c, h, w))


def _reference(x_nchw, w_qkv, w_proj, head_num=4):
    """Pure-JAX f32 replica of the PyTorch forward (for correctness check)."""
    b, c, h, w = x_nchw.shape
    n = h * w
    head_dim = c // head_num
    scale = head_dim ** 0.5
    x = jnp.reshape(x_nchw, (b, n, c))
    qkv = x @ w_qkv.T                                              # (b, n, 3c)
    qkv = jnp.reshape(qkv, (b, n, head_dim, 3, head_num))          # (b,t,d,k,h)
    qkv = jnp.transpose(qkv, (3, 0, 4, 1, 2))                      # (k,b,h,t,d)
    q, k, v = qkv[0], qkv[1], qkv[2]
    energy = jnp.einsum('bhid,bhjd->bhij', q, k) * scale
    attn = jax.nn.softmax(energy, axis=-1)
    o = jnp.einsum('bhij,bhjd->bhid', attn, v)                     # (b,h,t,d)
    o = jnp.reshape(jnp.transpose(o, (0, 2, 1, 3)), (b, n, c))     # 'b h t d -> b t (h d)'
    o = o @ w_proj.T
    return jnp.transpose(jnp.reshape(o, (b, h, w, c)), (0, 3, 1, 2))


if __name__ == "__main__":
    # Small shapes consistent with the module: dim (=channels) divisible by head_num.
    B, C, H, W = 2, 32, 16, 16
    HEAD_NUM = 4

    key = jax.random.PRNGKey(0)
    kx, kqkv, kproj = jax.random.split(key, 3)
    x = jax.random.normal(kx, (B, C, H, W), dtype=jnp.float32)
    w_qkv = jax.random.normal(kqkv, (3 * C, C), dtype=jnp.float32) * 0.05
    w_proj = jax.random.normal(kproj, (C, C), dtype=jnp.float32) * 0.05

    out = multi_head_attention(x, w_qkv, w_proj, head_num=HEAD_NUM)
    out = jax.block_until_ready(out)

    ref = _reference(x, w_qkv, w_proj, head_num=HEAD_NUM)
    assert out.shape == (B, C, H, W), out.shape
    # bf16 MXU operands -> relaxed tolerance vs. the f32 reference.
    assert jnp.allclose(out, ref, atol=3e-2, rtol=3e-2), (
        float(jnp.max(jnp.abs(out - ref))))

    print("KERNEL_OK")
</pallas_src>

<mosaic_0001>
module attributes {stable_mosaic.version = 11 : i64} {
  func.func @_mha_kernel(%arg0: i32, %arg1: i32, %arg2: memref<1x256x32xf32, #tpu.memory_space<vmem>>, %arg3: memref<32x32xbf16, #tpu.memory_space<vmem>>, %arg4: memref<32x32xbf16, #tpu.memory_space<vmem>>, %arg5: memref<4x32x32xbf16, #tpu.memory_space<vmem>>, %arg6: memref<1x32x256xf32, #tpu.memory_space<vmem>>, %arg7: memref<256x32xbf16, #tpu.memory_space<vmem>>, %arg8: memref<4x256x32xbf16, #tpu.memory_space<vmem>>) attributes {dimension_semantics = [#tpu.dimension_semantics<parallel>, #tpu.dimension_semantics<arbitrary>], iteration_bounds = array<i64: 2, 1>, scalar_prefetch = 0 : i64, scratch_operands = 2 : i64, tpu.core_type = #tpu.core_type<tc>, window_params = [{transform_indices = @transform_0, window_bounds = array<i64: 1, 256, 32>}, {pipeline_mode = #tpu.pipeline_mode<synchronous>, transform_indices = @transform_1, window_bounds = array<i64: 32, 32>}, {pipeline_mode = #tpu.pipeline_mode<synchronous>, transform_indices = @transform_2, window_bounds = array<i64: 32, 32>}, {pipeline_mode = #tpu.pipeline_mode<synchronous>, transform_indices = @transform_3, window_bounds = array<i64: 4, 32, 32>}, {transform_indices = @transform_4, window_bounds = array<i64: 1, 32, 256>}]} {
    %c0_i32 = arith.constant 0 : i32
    %0 = arith.cmpi eq, %arg1, %c0_i32 : i32
    %1 = arith.extui %0 : i1 to i32
    %c0_i32_0 = arith.constant 0 : i32
    %2 = arith.cmpi ne, %1, %c0_i32_0 : i32
    scf.if %2 {
      %c0_55 = arith.constant 0 : index
      %c0_56 = arith.constant 0 : index
      %c0_57 = arith.constant 0 : index
      %101 = vector.load %arg2[%c0_55, %c0_56, %c0_57] : memref<1x256x32xf32, #tpu.memory_space<vmem>>, vector<1x256x32xf32>
      %102 = vector.shape_cast %101 : vector<1x256x32xf32> to vector<256x32xf32>
      %103 = arith.truncf %102 : vector<256x32xf32> to vector<256x32xbf16>
      %c0_58 = arith.constant 0 : index
      %c0_59 = arith.constant 0 : index
      %104 = vector.load %arg4[%c0_58, %c0_59] : memref<32x32xbf16, #tpu.memory_space<vmem>>, vector<32x32xbf16>
      %cst_60 = arith.constant dense<0.000000e+00> : vector<256x32xf32>
      %105 = tpu.matmul %103, %104, %cst_60 {dimension_numbers = #tpu.dot_dimension_numbers<[1], [0], [0], [1], [0, 0, 1, 1], [], []>} : vector<256x32xbf16>, vector<32x32xbf16>, vector<256x32xf32> -> vector<256x32xf32>
      %106 = arith.truncf %105 : vector<256x32xf32> to vector<256x32xbf16>
      %c0_61 = arith.constant 0 : index
      %c0_62 = arith.constant 0 : index
      %107 = vector.load %arg7[%c0_61, %c0_62] : memref<256x32xbf16, #tpu.memory_space<vmem>>, vector<256x32xbf16>
      tpu.vector_store %arg7[%c0_61, %c0_62], %106 {strides = array<i32>} : memref<256x32xbf16, #tpu.memory_space<vmem>>, vector<256x32xbf16>,
      %c0_63 = arith.constant 0 : index
      %c0_64 = arith.constant 0 : index
      %c0_65 = arith.constant 0 : index
      %108 = vector.load %arg5[%c0_63, %c0_64, %c0_65] : memref<4x32x32xbf16, #tpu.memory_space<vmem>>, vector<1x32x32xbf16>
      %109 = vector.shape_cast %108 : vector<1x32x32xbf16> to vector<32x32xbf16>
      %cst_66 = arith.constant dense<0.000000e+00> : vector<256x32xf32>
      %110 = tpu.matmul %103, %109, %cst_66 {dimension_numbers = #tpu.dot_dimension_numbers<[1], [0], [0], [1], [0, 0, 1, 1], [], []>} : vector<256x32xbf16>, vector<32x32xbf16>, vector<256x32xf32> -> vector<256x32xf32>
      %111 = arith.truncf %110 : vector<256x32xf32> to vector<256x32xbf16>
      %c0_67 = arith.constant 0 : index
      %c0_68 = arith.constant 0 : index
      %c0_69 = arith.constant 0 : index
      %112 = vector.load %arg8[%c0_67, %c0_68, %c0_69] : memref<4x256x32xbf16, #tpu.memory_space<vmem>>, vector<1x256x32xbf16>
      %113 = vector.shape_cast %112 : vector<1x256x32xbf16> to vector<256x32xbf16>
      %114 = vector.shape_cast %111 : vector<256x32xbf16> to vector<1x256x32xbf16>
      tpu.vector_store %arg8[%c0_67, %c0_68, %c0_69], %114 {strides = array<i32>} : memref<4x256x32xbf16, #tpu.memory_space<vmem>>, vector<1x256x32xbf16>,
      %c1_70 = arith.constant 1 : index
      %c0_71 = arith.constant 0 : index
      %c0_72 = arith.constant 0 : index
      %115 = vector.load %arg5[%c1_70, %c0_71, %c0_72] : memref<4x32x32xbf16, #tpu.memory_space<vmem>>, vector<1x32x32xbf16>
      %116 = vector.shape_cast %115 : vector<1x32x32xbf16> to vector<32x32xbf16>
      %cst_73 = arith.constant dense<0.000000e+00> : vector<256x32xf32>
      %117 = tpu.matmul %103, %116, %cst_73 {dimension_numbers = #tpu.dot_dimension_numbers<[1], [0], [0], [1], [0, 0, 1, 1], [], []>} : vector<256x32xbf16>, vector<32x32xbf16>, vector<256x32xf32> -> vector<256x32xf32>
      %118 = arith.truncf %117 : vector<256x32xf32> to vector<256x32xbf16>
      %c1_74 = arith.constant 1 : index
      %c0_75 = arith.constant 0 : index
      %c0_76 = arith.constant 0 : index
      %119 = vector.load %arg8[%c1_74, %c0_75, %c0_76] : memref<4x256x32xbf16, #tpu.memory_space<vmem>>, vector<1x256x32xbf16>
      %120 = vector.shape_cast %119 : vector<1x256x32xbf16> to vector<256x32xbf16>
      %121 = vector.shape_cast %118 : vector<256x32xbf16> to vector<1x256x32xbf16>
      tpu.vector_store %arg8[%c1_74, %c0_75, %c0_76], %121 {strides = array<i32>} : memref<4x256x32xbf16, #tpu.memory_space<vmem>>, vector<1x256x32xbf16>,
      %c2_77 = arith.constant 2 : index
      %c0_78 = arith.constant 0 : index
      %c0_79 = arith.constant 0 : index
      %122 = vector.load %arg5[%c2_77, %c0_78, %c0_79] : memref<4x32x32xbf16, #tpu.memory_space<vmem>>, vector<1x32x32xbf16>
      %123 = vector.shape_cast %122 : vector<1x32x32xbf16> to vector<32x32xbf16>
      %cst_80 = arith.constant dense<0.000000e+00> : vector<256x32xf32>
      %124 = tpu.matmul %103, %123, %cst_80 {dimension_numbers = #tpu.dot_dimension_numbers<[1], [0], [0], [1], [0, 0, 1, 1], [], []>} : vector<256x32xbf16>, vector<32x32xbf16>, vector<256x32xf32> -> vector<256x32xf32>
      %125 = arith.truncf %124 : vector<256x32xf32> to vector<256x32xbf16>
      %c2_81 = arith.constant 2 : index
      %c0_82 = arith.constant 0 : index
      %c0_83 = arith.constant 0 : index
      %126 = vector.load %arg8[%c2_81, %c0_82, %c0_83] : memref<4x256x32xbf16, #tpu.memory_space<vmem>>, vector<1x256x32xbf16>
      %127 = vector.shape_cast %126 : vector<1x256x32xbf16> to vector<256x32xbf16>
      %128 = vector.shape_cast %125 : vector<256x32xbf16> to vector<1x256x32xbf16>
      tpu.vector_store %arg8[%c2_81, %c0_82, %c0_83], %128 {strides = array<i32>} : memref<4x256x32xbf16, #tpu.memory_space<vmem>>, vector<1x256x32xbf16>,
      %c3_84 = arith.constant 3 : index
      %c0_85 = arith.constant 0 : index
      %c0_86 = arith.constant 0 : index
      %129 = vector.load %arg5[%c3_84, %c0_85, %c0_86] : memref<4x32x32xbf16, #tpu.memory_space<vmem>>, vector<1x32x32xbf16>
      %130 = vector.shape_cast %129 : vector<1x32x32xbf16> to vector<32x32xbf16>
      %cst_87 = arith.constant dense<0.000000e+00> : vector<256x32xf32>
      %131 = tpu.matmul %103, %130, %cst_87 {dimension_numbers = #tpu.dot_dimension_numbers<[1], [0], [0], [1], [0, 0, 1, 1], [], []>} : vector<256x32xbf16>, vector<32x32xbf16>, vector<256x32xf32> -> vector<256x32xf32>
      %132 = arith.truncf %131 : vector<256x32xf32> to vector<256x32xbf16>
      %c3_88 = arith.constant 3 : index
      %c0_89 = arith.constant 0 : index
      %c0_90 = arith.constant 0 : index
      %133 = vector.load %arg8[%c3_88, %c0_89, %c0_90] : memref<4x256x32xbf16, #tpu.memory_space<vmem>>, vector<1x256x32xbf16>
      %134 = vector.shape_cast %133 : vector<1x256x32xbf16> to vector<256x32xbf16>
      %135 = vector.shape_cast %132 : vector<256x32xbf16> to vector<1x256x32xbf16>
      tpu.vector_store %arg8[%c3_88, %c0_89, %c0_90], %135 {strides = array<i32>} : memref<4x256x32xbf16, #tpu.memory_space<vmem>>, vector<1x256x32xbf16>,
    } else {
    }
    %c256_i32 = arith.constant 256 : i32
    %3 = arith.muli %arg1, %c256_i32 : i32
    %4 = tpu.assume_multiple %3, 256 : i32
    %c0 = arith.constant 0 : index
    %5 = arith.index_cast %4 : i32 to index
    %c0_1 = arith.constant 0 : index
    %6 = vector.load %arg2[%c0, %5, %c0_1] : memref<1x256x32xf32, #tpu.memory_space<vmem>>, vector<1x256x32xf32>
    %7 = vector.shape_cast %6 : vector<1x256x32xf32> to vector<256x32xf32>
    %8 = arith.truncf %7 : vector<256x32xf32> to vector<256x32xbf16>
    %c0_2 = arith.constant 0 : index
    %c0_3 = arith.constant 0 : index
    %9 = vector.load %arg3[%c0_2, %c0_3] : memref<32x32xbf16, #tpu.memory_space<vmem>>, vector<32x32xbf16>
    %cst = arith.constant dense<0.000000e+00> : vector<256x32xf32>
    %10 = tpu.matmul %8, %9, %cst {dimension_numbers = #tpu.dot_dimension_numbers<[1], [0], [0], [1], [0, 0, 1, 1], [], []>} : vector<256x32xbf16>, vector<32x32xbf16>, vector<256x32xf32> -> vector<256x32xf32>
    %11 = arith.truncf %10 : vector<256x32xf32> to vector<256x32xbf16>
    %12 = vector.extract_strided_slice %11 {offsets = [0, 0], sizes = [256, 8], strides = [1, 1]} : vector<256x32xbf16> to vector<256x8xbf16>
    %c0_4 = arith.constant 0 : index
    %c0_5 = arith.constant 0 : index
    %13 = vector.load %arg7[%c0_4, %c0_5] : memref<256x32xbf16, #tpu.memory_space<vmem>>, vector<256x8xbf16>
    %cst_6 = arith.constant dense<0.000000e+00> : vector<256x256xf32>
    %14 = tpu.matmul %13, %12, %cst_6 {dimension_numbers = #tpu.dot_dimension_numbers<[1], [1], [0], [0], [0, 0, 1, 0], [], []>} : vector<256x8xbf16>, vector<256x8xbf16>, vector<256x256xf32> -> vector<256x256xf32>
    %cst_7 = arith.constant dense<0xFF800000> : vector<256xf32>
    %15 = vector.multi_reduction <maximumf>, %14, %cst_7 [0] : vector<256x256xf32> to vector<256xf32>
    %16 = vector.shape_cast %15 : vector<256xf32> to vector<1x256xf32>
    %17 = vector.broadcast %16 : vector<1x256xf32> to vector<256x256xf32>
    %18 = arith.subf %14, %17 : vector<256x256xf32>
    %19 = math.exp %18 : vector<256x256xf32>
    %cst_8 = arith.constant dense<0.000000e+00> : vector<256xf32>
    %20 = vector.multi_reduction <add>, %19, %cst_8 [0] : vector<256x256xf32> to vector<256xf32>
    %21 = vector.shape_cast %20 : vector<256xf32> to vector<1x256xf32>
    %22 = tpu.reciprocal %21 : vector<1x256xf32> -> vector<1x256xf32>
    %c0_9 = arith.constant 0 : index
    %c0_10 = arith.constant 0 : index
    %c0_11 = arith.constant 0 : index
    %23 = vector.load %arg8[%c0_9, %c0_10, %c0_11] : memref<4x256x32xbf16, #tpu.memory_space<vmem>>, vector<1x256x32xbf16>
    %24 = vector.shape_cast %23 : vector<1x256x32xbf16> to vector<256x32xbf16>
    %25 = arith.truncf %19 : vector<256x256xf32> to vector<256x256xbf16>
    %cst_12 = arith.constant dense<0.000000e+00> : vector<32x256xf32>
    %26 = tpu.matmul %24, %25, %cst_12 {dimension_numbers = #tpu.dot_dimension_numbers<[0], [0], [1], [1], [0, 1, 1, 1], [], []>} : vector<256x32xbf16>, vector<256x256xbf16>, vector<32x256xf32> -> vector<32x256xf32>
    %27 = vector.broadcast %22 : vector<1x256xf32> to vector<32x256xf32>
    %28 = arith.mulf %26, %27 : vector<32x256xf32>
    %c0_13 = arith.constant 0 : index
    %c0_14 = arith.constant 0 : index
    %c0_15 = arith.constant 0 : index
    %29 = vector.load %arg6[%c0_13, %c0_14, %c0_15] : memref<1x32x256xf32, #tpu.memory_space<vmem>>, vector<1x32x256xf32>
    %30 = vector.shape_cast %29 : vector<1x32x256xf32> to vector<32x256xf32>
    %31 = vector.shape_cast %28 : vector<32x256xf32> to vector<1x32x256xf32>
    tpu.vector_store %arg6[%c0_13, %c0_14, %c0_15], %31 {strides = array<i32>} : memref<1x32x256xf32, #tpu.memory_space<vmem>>, vector<1x32x256xf32>,
    %32 = vector.extract_strided_slice %11 {offsets = [0, 8], sizes = [256, 8], strides = [1, 1]} : vector<256x32xbf16> to vector<256x8xbf16>
    %c0_16 = arith.constant 0 : index
    %c8 = arith.constant 8 : index
    %33 = vector.load %arg7[%c0_16, %c8] : memref<256x32xbf16, #tpu.memory_space<vmem>>, vector<256x8xbf16>
    %cst_17 = arith.constant dense<0.000000e+00> : vector<256x256xf32>
    %34 = tpu.matmul %33, %32, %cst_17 {dimension_numbers = #tpu.dot_dimension_numbers<[1], [1], [0], [0], [0, 0, 1, 0], [], []>} : vector<256x8xbf16>, vector<256x8xbf16>, vector<256x256xf32> -> vector<256x256xf32>
    %cst_18 = arith.constant dense<0xFF800000> : vector<256xf32>
    %35 = vector.multi_reduction <maximumf>, %34, %cst_18 [0] : vector<256x256xf32> to vector<256xf32>
    %36 = vector.shape_cast %35 : vector<256xf32> to vector<1x256xf32>
    %37 = vector.broadcast %36 : vector<1x256xf32> to vector<256x256xf32>
    %38 = arith.subf %34, %37 : vector<256x256xf32>
    %39 = math.exp %38 : vector<256x256xf32>
    %cst_19 = arith.constant dense<0.000000e+00> : vector<256xf32>
    %40 = vector.multi_reduction <add>, %39, %cst_19 [0] : vector<256x256xf32> to vector<256xf32>
    %41 = vector.shape_cast %40 : vector<256xf32> to vector<1x256xf32>
    %42 = tpu.reciprocal %41 : vector<1x256xf32> -> vector<1x256xf32>
    %c1 = arith.constant 1 : index
    %c0_20 = arith.constant 0 : index
    %c0_21 = arith.constant 0 : index
    %43 = vector.load %arg8[%c1, %c0_20, %c0_21] : memref<4x256x32xbf16, #tpu.memory_space<vmem>>, vector<1x256x32xbf16>
    %44 = vector.shape_cast %43 : vector<1x256x32xbf16> to vector<256x32xbf16>
    %45 = arith.truncf %39 : vector<256x256xf32> to vector<256x256xbf16>
    %cst_22 = arith.constant dense<0.000000e+00> : vector<32x256xf32>
    %46 = tpu.matmul %44, %45, %cst_22 {dimension_numbers = #tpu.dot_dimension_numbers<[0], [0], [1], [1], [0, 1, 1, 1], [], []>} : vector<256x32xbf16>, vector<256x256xbf16>, vector<32x256xf32> -> vector<32x256xf32>
    %47 = vector.broadcast %42 : vector<1x256xf32> to vector<32x256xf32>
    %48 = arith.mulf %46, %47 : vector<32x256xf32>
    %c0_23 = arith.constant 0 : index
    %c0_24 = arith.constant 0 : index
    %c0_25 = arith.constant 0 : index
    %49 = vector.load %arg6[%c0_23, %c0_24, %c0_25] : memref<1x32x256xf32, #tpu.memory_space<vmem>>, vector<1x32x256xf32>
    %50 = vector.shape_cast %49 : vector<1x32x256xf32> to vector<32x256xf32>
    %51 = arith.addf %50, %48 : vector<32x256xf32>
    %c0_26 = arith.constant 0 : index
    %c0_27 = arith.constant 0 : index
    %c0_28 = arith.constant 0 : index
    %52 = vector.load %arg6[%c0_26, %c0_27, %c0_28] : memref<1x32x256xf32, #tpu.memory_space<vmem>>, vector<1x32x256xf32>
    %53 = vector.shape_cast %52 : vector<1x32x256xf32> to vector<32x256xf32>
    %54 = vector.shape_cast %51 : vector<32x256xf32> to vector<1x32x256xf32>
    tpu.vector_store %arg6[%c0_26, %c0_27, %c0_28], %54 {strides = array<i32>} : memref<1x32x256xf32, #tpu.memory_space<vmem>>, vector<1x32x256xf32>,
    %55 = vector.extract_strided_slice %11 {offsets = [0, 16], sizes = [256, 8], strides = [1, 1]} : vector<256x32xbf16> to vector<256x8xbf16>
    %c0_29 = arith.constant 0 : index
    %c16 = arith.constant 16 : index
    %56 = vector.load %arg7[%c0_29, %c16] : memref<256x32xbf16, #tpu.memory_space<vmem>>, vector<256x8xbf16>
    %cst_30 = arith.constant dense<0.000000e+00> : vector<256x256xf32>
    %57 = tpu.matmul %56, %55, %cst_30 {dimension_numbers = #tpu.dot_dimension_numbers<[1], [1], [0], [0], [0, 0, 1, 0], [], []>} : vector<256x8xbf16>, vector<256x8xbf16>, vector<256x256xf32> -> vector<256x256xf32>
    %cst_31 = arith.constant dense<0xFF800000> : vector<256xf32>
    %58 = vector.multi_reduction <maximumf>, %57, %cst_31 [0] : vector<256x256xf32> to vector<256xf32>
    %59 = vector.shape_cast %58 : vector<256xf32> to vector<1x256xf32>
    %60 = vector.broadcast %59 : vector<1x256xf32> to vector<256x256xf32>
    %61 = arith.subf %57, %60 : vector<256x256xf32>
    %62 = math.exp %61 : vector<256x256xf32>
    %cst_32 = arith.constant dense<0.000000e+00> : vector<256xf32>
    %63 = vector.multi_reduction <add>, %62, %cst_32 [0] : vector<256x256xf32> to vector<256xf32>
    %64 = vector.shape_cast %63 : vector<256xf32> to vector<1x256xf32>
    %65 = tpu.reciprocal %64 : vector<1x256xf32> -> vector<1x256xf32>
    %c2 = arith.constant 2 : index
    %c0_33 = arith.constant 0 : index
    %c0_34 = arith.constant 0 : index
    %66 = vector.load %arg8[%c2, %c0_33, %c0_34] : memref<4x256x32xbf16, #tpu.memory_space<vmem>>, vector<1x256x32xbf16>
    %67 = vector.shape_cast %66 : vector<1x256x32xbf16> to vector<256x32xbf16>
    %68 = arith.truncf %62 : vector<256x256xf32> to vector<256x256xbf16>
    %cst_35 = arith.constant dense<0.000000e+00> : vector<32x256xf32>
    %69 = tpu.matmul %67, %68, %cst_35 {dimension_numbers = #tpu.dot_dimension_numbers<[0], [0], [1], [1], [0, 1, 1, 1], [], []>} : vector<256x32xbf16>, vector<256x256xbf16>, vector<32x256xf32> -> vector<32x256xf32>
    %70 = vector.broadcast %65 : vector<1x256xf32> to vector<32x256xf32>
    %71 = arith.mulf %69, %70 : vector<32x256xf32>
    %c0_36 = arith.constant 0 : index
    %c0_37 = arith.constant 0 : index
    %c0_38 = arith.constant 0 : index
    %72 = vector.load %arg6[%c0_36, %c0_37, %c0_38] : memref<1x32x256xf32, #tpu.memory_space<vmem>>, vector<1x32x256xf32>
    %73 = vector.shape_cast %72 : vector<1x32x256xf32> to vector<32x256xf32>
    %74 = arith.addf %73, %71 : vector<32x256xf32>
    %c0_39 = arith.constant 0 : index
    %c0_40 = arith.constant 0 : index
    %c0_41 = arith.constant 0 : index
    %75 = vector.load %arg6[%c0_39, %c0_40, %c0_41] : memref<1x32x256xf32, #tpu.memory_space<vmem>>, vector<1x32x256xf32>
    %76 = vector.shape_cast %75 : vector<1x32x256xf32> to vector<32x256xf32>
    %77 = vector.shape_cast %74 : vector<32x256xf32> to vector<1x32x256xf32>
    tpu.vector_store %arg6[%c0_39, %c0_40, %c0_41], %77 {strides = array<i32>} : memref<1x32x256xf32, #tpu.memory_space<vmem>>, vector<1x32x256xf32>,
    %78 = vector.extract_strided_slice %11 {offsets = [0, 24], sizes = [256, 8], strides = [1, 1]} : vector<256x32xbf16> to vector<256x8xbf16>
    %c0_42 = arith.constant 0 : index
    %c24 = arith.constant 24 : index
    %79 = vector.load %arg7[%c0_42, %c24] : memref<256x32xbf16, #tpu.memory_space<vmem>>, vector<256x8xbf16>
    %cst_43 = arith.constant dense<0.000000e+00> : vector<256x256xf32>
    %80 = tpu.matmul %79, %78, %cst_43 {dimension_numbers = #tpu.dot_dimension_numbers<[1], [1], [0], [0], [0, 0, 1, 0], [], []>} : vector<256x8xbf16>, vector<256x8xbf16>, vector<256x256xf32> -> vector<256x256xf32>
    %cst_44 = arith.constant dense<0xFF800000> : vector<256xf32>
    %81 = vector.multi_reduction <maximumf>, %80, %cst_44 [0] : vector<256x256xf32> to vector<256xf32>
    %82 = vector.shape_cast %81 : vector<256xf32> to vector<1x256xf32>
    %83 = vector.broadcast %82 : vector<1x256xf32> to vector<256x256xf32>
    %84 = arith.subf %80, %83 : vector<256x256xf32>
    %85 = math.exp %84 : vector<256x256xf32>
    %cst_45 = arith.constant dense<0.000000e+00> : vector<256xf32>
    %86 = vector.multi_reduction <add>, %85, %cst_45 [0] : vector<256x256xf32> to vector<256xf32>
    %87 = vector.shape_cast %86 : vector<256xf32> to vector<1x256xf32>
    %88 = tpu.reciprocal %87 : vector<1x256xf32> -> vector<1x256xf32>
    %c3 = arith.constant 3 : index
    %c0_46 = arith.constant 0 : index
    %c0_47 = arith.constant 0 : index
    %89 = vector.load %arg8[%c3, %c0_46, %c0_47] : memref<4x256x32xbf16, #tpu.memory_space<vmem>>, vector<1x256x32xbf16>
    %90 = vector.shape_cast %89 : vector<1x256x32xbf16> to vector<256x32xbf16>
    %91 = arith.truncf %85 : vector<256x256xf32> to vector<256x256xbf16>
    %cst_48 = arith.constant dense<0.000000e+00> : vector<32x256xf32>
    %92 = tpu.matmul %90, %91, %cst_48 {dimension_numbers = #tpu.dot_dimension_numbers<[0], [0], [1], [1], [0, 1, 1, 1], [], []>} : vector<256x32xbf16>, vector<256x256xbf16>, vector<32x256xf32> -> vector<32x256xf32>
    %93 = vector.broadcast %88 : vector<1x256xf32> to vector<32x256xf32>
    %94 = arith.mulf %92, %93 : vector<32x256xf32>
    %c0_49 = arith.constant 0 : index
    %c0_50 = arith.constant 0 : index
    %c0_51 = arith.constant 0 : index
    %95 = vector.load %arg6[%c0_49, %c0_50, %c0_51] : memref<1x32x256xf32, #tpu.memory_space<vmem>>, vector<1x32x256xf32>
    %96 = vector.shape_cast %95 : vector<1x32x256xf32> to vector<32x256xf32>
    %97 = arith.addf %96, %94 : vector<32x256xf32>
    %c0_52 = arith.constant 0 : index
    %c0_53 = arith.constant 0 : index
    %c0_54 = arith.constant 0 : index
    %98 = vector.load %arg6[%c0_52, %c0_53, %c0_54] : memref<1x32x256xf32, #tpu.memory_space<vmem>>, vector<1x32x256xf32>
    %99 = vector.shape_cast %98 : vector<1x32x256xf32> to vector<32x256xf32>
    %100 = vector.shape_cast %97 : vector<32x256xf32> to vector<1x32x256xf32>
    tpu.vector_store %arg6[%c0_52, %c0_53, %c0_54], %100 {strides = array<i32>} : memref<1x32x256xf32, #tpu.memory_space<vmem>>, vector<1x32x256xf32>,
    return
  }
  func.func @transform_0(%arg0: i32, %arg1: i32) -> (i32, i32, i32) {
    %c0_i32 = arith.constant 0 : i32
    %c0_i32_0 = arith.constant 0 : i32
    %c0_i32_1 = arith.constant 0 : i32
    return %arg0, %c0_i32, %c0_i32_0 : i32, i32, i32
  }
  func.func @transform_1(%arg0: i32, %arg1: i32) -> (i32, i32) {
    %c0_i32 = arith.constant 0 : i32
    %c0_i32_0 = arith.constant 0 : i32
    %c0_i32_1 = arith.constant 0 : i32
    return %c0_i32, %c0_i32_0 : i32, i32
  }
  func.func @transform_2(%arg0: i32, %arg1: i32) -> (i32, i32) {
    %c0_i32 = arith.constant 0 : i32
    %c0_i32_0 = arith.constant 0 : i32
    %c0_i32_1 = arith.constant 0 : i32
    return %c0_i32, %c0_i32_0 : i32, i32
  }
  func.func @transform_3(%arg0: i32, %arg1: i32) -> (i32, i32, i32) {
    %c0_i32 = arith.constant 0 : i32
    %c0_i32_0 = arith.constant 0 : i32
    %c0_i32_1 = arith.constant 0 : i32
    %c0_i32_2 = arith.constant 0 : i32
    return %c0_i32, %c0_i32_0, %c0_i32_1 : i32, i32, i32
  }
  func.func @transform_4(%arg0: i32, %arg1: i32) -> (i32, i32, i32) {
    %c0_i32 = arith.constant 0 : i32
    %c0_i32_0 = arith.constant 0 : i32
    return %arg0, %c0_i32, %arg1 : i32, i32, i32
  }
}

</mosaic_0001>

<llo_original>
// kernel: tpu_custom_call.1
$region0: #{tpu_custom_call.1}
  #allocation0 [shape = 'u32[]', space=smem, size = 0x4, offset = 0x4, fixed_abs, tag = 'smem constant byte address 0x4 - core index']
  #allocation1 [shape = 'u32[72,128]{1,0:T(1,128)}', space=vmem, size = 0x9000, scoped, tag = 'internal scratch']
  #allocation2 [shape = 'bf16[256,32]{1,0:T(8,128)(2,1)}', space=vmem, size = 0x10000, scoped, tag = 'scratch operand']
  #allocation3 [shape = 'bf16[4,256,32]{2,1,0:T(8,128)(2,1)}', space=vmem, size = 0x40000, scoped, tag = 'scratch operand']
  %s0 = inlined_call_operand.vmem [shape: f32[2,256,32], index: 0, kind: input, shape index: {}]
  %s1 = inlined_call_operand.vmem [shape: bf16[32,32], index: 1, kind: input, shape index: {}]
  %s2 = inlined_call_operand.vmem [shape: bf16[32,32], index: 2, kind: input, shape index: {}]
  %s3 = inlined_call_operand.vmem [shape: bf16[4,32,32], index: 3, kind: input, shape index: {}]
  %s4 = inlined_call_operand.hbm [shape: f32[2,32,256], index: 4, kind: output, shape index: {}]
  %s5 = sld [smem:[#allocation0]]
  $region53: #{tpu_custom_call.1} parent=0
    _
  %s7 = ssub.s32 1, %s5
  %s8 = scalar_select 0, %s7, %s5
  $region1: #{tpu_custom_call.1} parent=0
    #allocation4 [shape = 'u8[65536]{0}', space=vmem, size = 0x10000, scoped, tag = 'output window, operand 0']
    #allocation5 [shape = 's32[2]{0}', space=sflag, size = 0x8, scoped, tag = 'scoped memory for tpu_custom_call.1']
    %9 = vsyncpa [#allocation5], 0
    %s10 = scalar_lea.sflag [#allocation5], 1
    %11 = vsyncpa %s10, 0
    loop: start=0, step=1, limit=4
    $region2: #{tpu_custom_call.1} parent=1 // loop_pre_header
      _
    $region3: #{tpu_custom_call.1} parent=1 // loop_header
      %s13 = sphi 0, %s17
      %p14 = scmp.ge.s32.totalorder %s13, 4
      %s20 = sphi 0, %s32
      %s21 = sphi 0, %s28
      %s22 = sphi 0, %s20
      %s23 = sphi 0, %s21
      %s24 = sphi 0, %s22
      %s25 = sphi 0, %s23
      %s35 = sphi 0, %s37
      %s38 = sphi 0, %s35
      %s39 = sphi 0, %s38
      %s55 = sphi 0, %s39
      %s59 = sphi 0, %s59
      %s61 = sphi 0, %s59
      %s62 = sphi 0, %s61
      %s76 = sphi 0, %s62
      %s80 = sphi 0, %s80
      %s82 = sphi 0, %s80
      %s83 = sphi 0, %s82
      %s97 = sphi 0, %s83
      %s101 = sphi 0, %s101
      %s103 = sphi 0, %s101
      %s104 = sphi 0, %s103
      %s118 = sphi 0, %s104
      %s126 = sphi 0, %s128
      %s129 = sphi 0, %s126
      %s130 = sphi 0, %s129
      %s146 = sphi 0, %s130
    $region4: #{tpu_custom_call.1} parent=1 // loop_header_branch
      %16 = sbr.rel (%p14) target = $region8
    $region5: #{tpu_custom_call.1} parent=1 // loop_body
      %s18 = ssub.s32 %s13, 1
      %s19 = ssub.s32 %s13, 2
      %s26 = sadd.s32 1, %s21
      %p27 = scmp.ge.s32.totalorder %s26, 1
      %s28 = scalar_select %p27, 0, %s26
      %s29 = sadd.s32 1, %s20
      %s30 = scalar_select %p27, %s29, %s20
      %p31 = scmp.ge.s32.totalorder %s30, 2
      %s32 = scalar_select %p31, 0, %s30
      %s33 = ssub.s32 %s20, %s32
      %p34 = scmp.eq.s32.totalorder %s33, 0
      %s36 = sadd.s32 %s35, 1
      %s37 = scalar_select %p34, %s35, %s36
      %p40 = pneg %p34
      %p41 = scmp.eq.s32.totalorder %s13, 1
      %p42 = por %p40, %p41
      %p43 = scmp.ne.s32.totalorder %s35, %s38
      %p44 = scmp.eq.s32.totalorder %s13, 0
      %p45 = por %p43, %p44
      %p46 = scmp.ne.s32.totalorder %s35, %s38
      %p47 = scmp.eq.s32.totalorder %s18, 1
      %p48 = por %p46, %p47
      %p49 = scmp.ne.s32.totalorder %s38, %s39
      %p50 = scmp.eq.s32.totalorder %s18, 0
      %p51 = por %p49, %p50
      %p52 = scmp.ne.s32.totalorder %s38, %s39
      %p53 = scmp.eq.s32.totalorder %s19, 1
      %p54 = por %p52, %p53
      %p56 = scmp.ne.s32.totalorder %s39, %s55
      %p57 = scmp.eq.s32.totalorder %s19, 0
      %p58 = por %p56, %p57
      %s60 = sadd.s32 %s59, 1
      %p63 = scmp.eq.s32.totalorder %s13, 1
      %p64 = scmp.ne.s32.totalorder %s59, %s61
      %p65 = scmp.eq.s32.totalorder %s13, 0
      %p66 = por %p64, %p65
      %p67 = scmp.ne.s32.totalorder %s59, %s61
      %p68 = scmp.eq.s32.totalorder %s18, 1
      %p69 = por %p67, %p68
      %p70 = scmp.ne.s32.totalorder %s61, %s62
      %p71 = scmp.eq.s32.totalorder %s18, 0
      %p72 = por %p70, %p71
      %p73 = scmp.ne.s32.totalorder %s61, %s62
      %p74 = scmp.eq.s32.totalorder %s19, 1
      %p75 = por %p73, %p74
      %p77 = scmp.ne.s32.totalorder %s62, %s76
      %p78 = scmp.eq.s32.totalorder %s19, 0
      %p79 = por %p77, %p78
      %s81 = sadd.s32 %s80, 1
      %p84 = scmp.eq.s32.totalorder %s13, 1
      %p85 = scmp.ne.s32.totalorder %s80, %s82
      %p86 = scmp.eq.s32.totalorder %s13, 0
      %p87 = por %p85, %p86
      %p88 = scmp.ne.s32.totalorder %s80, %s82
      %p89 = scmp.eq.s32.totalorder %s18, 1
      %p90 = por %p88, %p89
      %p91 = scmp.ne.s32.totalorder %s82, %s83
      %p92 = scmp.eq.s32.totalorder %s18, 0
      %p93 = por %p91, %p92
      %p94 = scmp.ne.s32.totalorder %s82, %s83
      %p95 = scmp.eq.s32.totalorder %s19, 1
      %p96 = por %p94, %p95
      %p98 = scmp.ne.s32.totalorder %s83, %s97
      %p99 = scmp.eq.s32.totalorder %s19, 0
      %p100 = por %p98, %p99
      %s102 = sadd.s32 %s101, 1
      %p105 = scmp.eq.s32.totalorder %s13, 1
      %p106 = scmp.ne.s32.totalorder %s101, %s103
      %p107 = scmp.eq.s32.totalorder %s13, 0
      %p108 = por %p106, %p107
      %p109 = scmp.ne.s32.totalorder %s101, %s103
      %p110 = scmp.eq.s32.totalorder %s18, 1
      %p111 = por %p109, %p110
      %p112 = scmp.ne.s32.totalorder %s103, %s104
      %p113 = scmp.eq.s32.totalorder %s18, 0
      %p114 = por %p112, %p113
      %p115 = scmp.ne.s32.totalorder %s103, %s104
      %p116 = scmp.eq.s32.totalorder %s19, 1
      %p117 = por %p115, %p116
      %p119 = scmp.ne.s32.totalorder %s104, %s118
      %p120 = scmp.eq.s32.totalorder %s19, 0
      %p121 = por %p119, %p120
      %s122 = ssub.s32 %s20, %s32
      %s123 = ssub.s32 %s21, %s28
      %s124 = sor.u32 %s122, %s123
      %p125 = scmp.eq.s32.totalorder %s124, 0
      %s127 = sadd.s32 %s126, 1
      %s128 = scalar_select %p125, %s126, %s127
      %p131 = pneg %p125
      %p132 = scmp.eq.s32.totalorder %s13, 1
      %p133 = por %p131, %p132
      %p134 = scmp.ne.s32.totalorder %s126, %s129
      %p135 = scmp.eq.s32.totalorder %s13, 0
      %p136 = por %p134, %p135
      %p137 = scmp.ne.s32.totalorder %s126, %s129
      %p138 = scmp.eq.s32.totalorder %s18, 1
      %p139 = por %p137, %p138
      %p140 = scmp.ne.s32.totalorder %s129, %s130
      %p141 = scmp.eq.s32.totalorder %s18, 0
      %p142 = por %p140, %p141
      %p143 = scmp.ne.s32.totalorder %s129, %s130
      %p144 = scmp.eq.s32.totalorder %s19, 1
      %p145 = por %p143, %p144
      %p147 = scmp.ne.s32.totalorder %s130, %s146
      %p148 = scmp.eq.s32.totalorder %s19, 0
      %p149 = por %p147, %p148
      %p150 = scmp.le.s32.totalorder 1, %s13
      %p151 = scmp.lt.s32.totalorder %s13, 3
      %p152 = pnand %p150, %p151
      %p153 = pneg %p152
      // Predicated region
      $region9: #{tpu_custom_call.1} parent=5 // pred_check
        _
      $region10: #{tpu_custom_call.1} parent=5 // pred_check_branch
        %155 = sbr.rel (%p152) target = $region12
      $region11: #{tpu_custom_call.1} parent=5 // pred_region
        %s156 = ssub.s32 %s13, 1
        // Predicated region
        $region13: #{tpu_custom_call.1} parent=11 // pred_check
          %p157 = pneg %p72
        $region14: #{tpu_custom_call.1} parent=11 // pred_check_branch
          %159 = sbr.rel (%p157) target = $region16
        $region15: #{tpu_custom_call.1} parent=11 // pred_region
          _
        $region16: #{tpu_custom_call.1} parent=11 // pred_fallthru
          _
        // Predicated region
        $region17: #{tpu_custom_call.1} parent=11 // pred_check
          %p160 = pneg %p93
        $region18: #{tpu_custom_call.1} parent=11 // pred_check_branch
          %162 = sbr.rel (%p160) target = $region20
        $region19: #{tpu_custom_call.1} parent=11 // pred_region
          _
        $region20: #{tpu_custom_call.1} parent=11 // pred_fallthru
          _
        // Predicated region
        $region21: #{tpu_custom_call.1} parent=11 // pred_check
          %p163 = pneg %p114
        $region22: #{tpu_custom_call.1} parent=11 // pred_check_branch
          %165 = sbr.rel (%p163) target = $region24
        $region23: #{tpu_custom_call.1} parent=11 // pred_region
          _
        $region24: #{tpu_custom_call.1} parent=11 // pred_fallthru
          _
      $region12: #{tpu_custom_call.1} parent=5 // pred_fallthru
        _
      %p166 = scmp.lt.s32.totalorder %s13, 2
      // Predicated region
      $region25: #{tpu_custom_call.1} parent=5 // pred_check
        %p167 = pneg %p166
      $region26: #{tpu_custom_call.1} parent=5 // pred_check_branch
        %169 = sbr.rel (%p167) target = $region28
      $region27: #{tpu_custom_call.1} parent=5 // pred_region
        // Predicated region
        $region29: #{tpu_custom_call.1} parent=27 // pred_check
          %p170 = pneg %p45
        $region30: #{tpu_custom_call.1} parent=27 // pred_check_branch
          %172 = sbr.rel (%p170) target = $region32
        $region31: #{tpu_custom_call.1} parent=27 // pred_region
          %p173 = scmp.lt.s32.totalorder %s20, 1
          %s174 = scalar_select %p173, %s20, 1
          %s175 = smul.addr %s174, 32
          %s176 = smul.addr %s175, 8
          %s177 = scalar_lea.vmem %s0, %s176
        $region32: #{tpu_custom_call.1} parent=27 // pred_fallthru
          _
      $region28: #{tpu_custom_call.1} parent=5 // pred_fallthru
        _
      %p178 = scmp.le.s32.totalorder 1, %s13
      %p179 = scmp.lt.s32.totalorder %s13, 3
      %p180 = pnand %p178, %p179
      %p181 = pneg %p180
      // Predicated region
      $region33: #{tpu_custom_call.1} parent=5 // pred_check
        _
      $region34: #{tpu_custom_call.1} parent=5 // pred_check_branch
        %183 = sbr.rel (%p180) target = $region36
      $region35: #{tpu_custom_call.1} parent=5 // pred_region
        %s184 = ssub.s32 %s13, 1
        %p185 = scmp.lt.s32.totalorder %s22, 1
        %s186 = scalar_select %p185, %s22, 1
        %s187 = smul.addr %s186, 32
        %s188 = smul.addr %s187, 8
        %s189 = scalar_lea.vmem %s0, %s188
        %p190 = pneg %p51
        %p191 = pneg %p48
        %p192 = pneg %p72
        %p193 = pneg %p69
        %p194 = pneg %p93
        %p195 = pneg %p90
        %p196 = pneg %p114
        %p197 = pneg %p111
        %p198 = pneg %p142
        %p199 = pneg %p139
        %s200 = sand.u32 %s129, 1
        %s201 = scalar_lea.sflag [#allocation5], %s200
        %s202 = sand.u32 %s129, 1
        %s203 = smul.addr %s202, 64
        %s204 = scalar_lea.vmem [#allocation4], %s203
        %p205 = scmp.lt.s32.totalorder %s22, 1
        %s206 = scalar_select %p205, %s22, 1
        %s207 = smul.addr %s206, 32
        %s208 = smul.addr %s207, 8
        %s209 = scalar_lea.vmem %s0, %s208
        %s210 = smul.u32 2, %s23
        %p212 = scmp.eq.s32.totalorder %s23, 0
        // Predicated region
        $region37: #{tpu_custom_call.1} parent=35 // pred_check
          %p213 = pneg %p212
        $region38: #{tpu_custom_call.1} parent=35 // pred_check_branch
          %215 = sbr.rel (%p213) target = $region40
        $region39: #{tpu_custom_call.1} parent=35 // pred_region
          %v216 = vld [vmem:[%s209] sm:$0xff]
          %v217 = vld [vmem:[%s209 + $0x8] sm:$0xff]
          %v218 = vld [vmem:[%s209 + $0x10] sm:$0xff]
          %v219 = vld [vmem:[%s209 + $0x18] sm:$0xff]
          %v220 = vld [vmem:[%s209 + $0x20] sm:$0xff]
          %v221 = vld [vmem:[%s209 + $0x28] sm:$0xff]
          %v222 = vld [vmem:[%s209 + $0x30] sm:$0xff]
          %v223 = vld [vmem:[%s209 + $0x38] sm:$0xff]
          %v224 = vld [vmem:[%s209 + $0x40] sm:$0xff]
          %v225 = vld [vmem:[%s209 + $0x48] sm:$0xff]
          %v226 = vld [vmem:[%s209 + $0x50] sm:$0xff]
          %v227 = vld [vmem:[%s209 + $0x58] sm:$0xff]
          %v228 = vld [vmem:[%s209 + $0x60] sm:$0xff]
          %v229 = vld [vmem:[%s209 + $0x68] sm:$0xff]
          %v230 = vld [vmem:[%s209 + $0x70] sm:$0xff]
          %v231 = vld [vmem:[%s209 + $0x78] sm:$0xff]
          %v232 = vld [vmem:[%s209 + $0x80] sm:$0xff]
          %v233 = vld [vmem:[%s209 + $0x88] sm:$0xff]
          %v234 = vld [vmem:[%s209 + $0x90] sm:$0xff]
          %v235 = vld [vmem:[%s209 + $0x98] sm:$0xff]
          %v236 = vld [vmem:[%s209 + $0xa0] sm:$0xff]
          %v237 = vld [vmem:[%s209 + $0xa8] sm:$0xff]
          %v238 = vld [vmem:[%s209 + $0xb0] sm:$0xff]
          %v239 = vld [vmem:[%s209 + $0xb8] sm:$0xff]
          %v240 = vld [vmem:[%s209 + $0xc0] sm:$0xff]
          %v241 = vld [vmem:[%s209 + $0xc8] sm:$0xff]
          %v242 = vld [vmem:[%s209 + $0xd0] sm:$0xff]
          %v243 = vld [vmem:[%s209 + $0xd8] sm:$0xff]
          %v244 = vld [vmem:[%s209 + $0xe0] sm:$0xff]
          %v245 = vld [vmem:[%s209 + $0xe8] sm:$0xff]
          %v246 = vld [vmem:[%s209 + $0xf0] sm:$0xff]
          %v247 = vld [vmem:[%s209 + $0xf8] sm:$0xff]
          %v248 = vpack.c.bf16 %v217, %v216
          %v249 = vpack.c.bf16 %v219, %v218
          %v250 = vpack.c.bf16 %v221, %v220
          %v251 = vpack.c.bf16 %v223, %v222
          %v252 = vpack.c.bf16 %v225, %v224
          %v253 = vpack.c.bf16 %v227, %v226
          %v254 = vpack.c.bf16 %v229, %v228
          %v255 = vpack.c.bf16 %v231, %v230
          %v256 = vpack.c.bf16 %v233, %v232
          %v257 = vpack.c.bf16 %v235, %v234
          %v258 = vpack.c.bf16 %v237, %v236
          %v259 = vpack.c.bf16 %v239, %v238
          %v260 = vpack.c.bf16 %v241, %v240
          %v261 = vpack.c.bf16 %v243, %v242
          %v262 = vpack.c.bf16 %v245, %v244
          %v263 = vpack.c.bf16 %v247, %v246
          %v264 = vld [vmem:[%s2] sm:$0xf]
          %v265 = vld [vmem:[%s2 + $0x4] sm:$0xf]
          %v266 = vld [vmem:[%s2 + $0x8] sm:$0xf]
          %v267 = vld [vmem:[%s2 + $0xc] sm:$0xf]
          %v272 = vunpack.c.l.b16 %v264
          %v273 = vunpack.c.l.b16 %v265
          %v274 = vunpack.c.l.b16 %v266
          %v275 = vunpack.c.l.b16 %v267
          %v276 = vpack.c.b16 %v273, %v272
          %v277 = vpack.c.b16 %v275, %v274
          %vm280 = vcmask 261120
          %v282 = vsel %vm280, %v248, 0
          %v285 = vsel %vm280, %v249, 0
          %v288 = vsel %vm280, %v250, 0
          %v291 = vsel %vm280, %v251, 0
          %v294 = vsel %vm280, %v252, 0
          %v297 = vsel %vm280, %v253, 0
          %v300 = vsel %vm280, %v254, 0
          %v303 = vsel %vm280, %v255, 0
          %v306 = vsel %vm280, %v256, 0
          %v309 = vsel %vm280, %v257, 0
          %v312 = vsel %vm280, %v258, 0
          %v315 = vsel %vm280, %v259, 0
          %v318 = vsel %vm280, %v260, 0
          %v321 = vsel %vm280, %v261, 0
          %v324 = vsel %vm280, %v262, 0
          %v327 = vsel %vm280, %v263, 0
          %329 = vmatpush.bf16.msra.mxu0 0
          %330 = vmatpush.bf16.msra.mxu0 0
          %331 = vmatpush.bf16.msra.mxu0 0
          %332 = vmatpush.bf16.msra.mxu0 0
          %333 = vmatpush.bf16.msra.mxu0 0
          %334 = vmatpush.bf16.msra.mxu0 0
          %335 = vmatpush.bf16.msra.mxu0 %v277
          %336 = vmatpush.bf16.msra.mxu0 %v276
          %337 = vmatmul.bf16.gmra.mxu0 %v282
          %v338 = vpop.f32.mrf.mxu0
          %v339 = vadd.f32 0.0, %v338
          %v340 = vpop.f32.mrf.mxu0
          %v341 = vadd.f32 0.0, %v340
          %342 = vmatmul.bf16.gmra.mxu0 %v285
          %v343 = vpop.f32.mrf.mxu0
          %v344 = vadd.f32 0.0, %v343
          %v345 = vpop.f32.mrf.mxu0
          %v346 = vadd.f32 0.0, %v345
          %347 = vmatmul.bf16.gmra.mxu0 %v288
          %v348 = vpop.f32.mrf.mxu0
          %v349 = vadd.f32 0.0, %v348
          %v350 = vpop.f32.mrf.mxu0
          %v351 = vadd.f32 0.0, %v350
          %352 = vmatmul.bf16.gmra.mxu0 %v291
          %v353 = vpop.f32.mrf.mxu0
          %v354 = vadd.f32 0.0, %v353
          %v355 = vpop.f32.mrf.mxu0
          %v356 = vadd.f32 0.0, %v355
          %357 = vmatmul.bf16.gmra.mxu0 %v294
          %v358 = vpop.f32.mrf.mxu0
          %v359 = vadd.f32 0.0, %v358
          %v360 = vpop.f32.mrf.mxu0
          %v361 = vadd.f32 0.0, %v360
          %362 = vmatmul.bf16.gmra.mxu0 %v297
          %v363 = vpop.f32.mrf.mxu0
          %v364 = vadd.f32 0.0, %v363
          %v365 = vpop.f32.mrf.mxu0
          %v366 = vadd.f32 0.0, %v365
          %367 = vmatmul.bf16.gmra.mxu0 %v300
          %v368 = vpop.f32.mrf.mxu0
          %v369 = vadd.f32 0.0, %v368
          %v370 = vpop.f32.mrf.mxu0
          %v371 = vadd.f32 0.0, %v370
          %372 = vmatmul.bf16.gmra.mxu0 %v303
          %v373 = vpop.f32.mrf.mxu0
          %v374 = vadd.f32 0.0, %v373
          %v375 = vpop.f32.mrf.mxu0
          %v376 = vadd.f32 0.0, %v375
          %377 = vmatmul.bf16.gmra.mxu0 %v306
          %v378 = vpop.f32.mrf.mxu0
          %v379 = vadd.f32 0.0, %v378
          %v380 = vpop.f32.mrf.mxu0
          %v381 = vadd.f32 0.0, %v380
          %382 = vmatmul.bf16.gmra.mxu0 %v309
          %v383 = vpop.f32.mrf.mxu0
          %v384 = vadd.f32 0.0, %v383
          %v385 = vpop.f32.mrf.mxu0
          %v386 = vadd.f32 0.0, %v385
          %387 = vmatmul.bf16.gmra.mxu0 %v312
          %v388 = vpop.f32.mrf.mxu0
          %v389 = vadd.f32 0.0, %v388
          %v390 = vpop.f32.mrf.mxu0
          %v391 = vadd.f32 0.0, %v390
          %392 = vmatmul.bf16.gmra.mxu0 %v315
          %v393 = vpop.f32.mrf.mxu0
          %v394 = vadd.f32 0.0, %v393
          %v395 = vpop.f32.mrf.mxu0
          %v396 = vadd.f32 0.0, %v395
          %397 = vmatmul.bf16.gmra.mxu0 %v318
          %v398 = vpop.f32.mrf.mxu0
          %v399 = vadd.f32 0.0, %v398
          %v400 = vpop.f32.mrf.mxu0
          %v401 = vadd.f32 0.0, %v400
          %402 = vmatmul.bf16.gmra.mxu0 %v321
          %v403 = vpop.f32.mrf.mxu0
          %v404 = vadd.f32 0.0, %v403
          %v405 = vpop.f32.mrf.mxu0
          %v406 = vadd.f32 0.0, %v405
          %407 = vmatmul.bf16.gmra.mxu0 %v324
          %v408 = vpop.f32.mrf.mxu0
          %v409 = vadd.f32 0.0, %v408
          %v410 = vpop.f32.mrf.mxu0
          %v411 = vadd.f32 0.0, %v410
          %412 = vmatmul.bf16.gmra.mxu0 %v327
          %v413 = vpop.f32.mrf.mxu0
          %v414 = vadd.f32 0.0, %v413
          %v415 = vpop.f32.mrf.mxu0
          %v416 = vadd.f32 0.0, %v415
          %417 = vdwg.mxu0
          %v418 = vpack.c.bf16 %v339, %v339
          %v419 = vpack.c.bf16 %v341, %v341
          %v420 = vpack.c.bf16 %v344, %v344
          %v421 = vpack.c.bf16 %v346, %v346
          %v422 = vpack.c.bf16 %v349, %v349
          %v423 = vpack.c.bf16 %v351, %v351
          %v424 = vpack.c.bf16 %v354, %v354
          %v425 = vpack.c.bf16 %v356, %v356
          %v426 = vpack.c.bf16 %v359, %v359
          %v427 = vpack.c.bf16 %v361, %v361
          %v428 = vpack.c.bf16 %v364, %v364
          %v429 = vpack.c.bf16 %v366, %v366
          %v430 = vpack.c.bf16 %v369, %v369
          %v431 = vpack.c.bf16 %v371, %v371
          %v432 = vpack.c.bf16 %v374, %v374
          %v433 = vpack.c.bf16 %v376, %v376
          %v434 = vpack.c.bf16 %v379, %v379
          %v435 = vpack.c.bf16 %v381, %v381
          %v436 = vpack.c.bf16 %v384, %v384
          %v437 = vpack.c.bf16 %v386, %v386
          %v438 = vpack.c.bf16 %v389, %v389
          %v439 = vpack.c.bf16 %v391, %v391
          %v440 = vpack.c.bf16 %v394, %v394
          %v441 = vpack.c.bf16 %v396, %v396
          %v442 = vpack.c.bf16 %v399, %v399
          %v443 = vpack.c.bf16 %v401, %v401
          %v444 = vpack.c.bf16 %v404, %v404
          %v445 = vpack.c.bf16 %v406, %v406
          %v446 = vpack.c.bf16 %v409, %v409
          %v447 = vpack.c.bf16 %v411, %v411
          %v448 = vpack.c.bf16 %v414, %v414
          %v449 = vpack.c.bf16 %v416, %v416
          %vm450 = vcmask 257024
          %451 = vst.msk [vmem:[#allocation2] sm:$0xf] %vm450, %v418
          %452 = vst.msk [vmem:[#allocation2 + $0x4] sm:$0xf] %vm450, %v419
          %453 = vst.msk [vmem:[#allocation2 + $0x8] sm:$0xf] %vm450, %v420
          %454 = vst.msk [vmem:[#allocation2 + $0xc] sm:$0xf] %vm450, %v421
          %455 = vst.msk [vmem:[#allocation2 + $0x10] sm:$0xf] %vm450, %v422
          %456 = vst.msk [vmem:[#allocation2 + $0x14] sm:$0xf] %vm450, %v423
          %457 = vst.msk [vmem:[#allocation2 + $0x18] sm:$0xf] %vm450, %v424
          %458 = vst.msk [vmem:[#allocation2 + $0x1c] sm:$0xf] %vm450, %v425
          %459 = vst.msk [vmem:[#allocation2 + $0x20] sm:$0xf] %vm450, %v426
          %460 = vst.msk [vmem:[#allocation2 + $0x24] sm:$0xf] %vm450, %v427
          %461 = vst.msk [vmem:[#allocation2 + $0x28] sm:$0xf] %vm450, %v428
          %462 = vst.msk [vmem:[#allocation2 + $0x2c] sm:$0xf] %vm450, %v429
          %463 = vst.msk [vmem:[#allocation2 + $0x30] sm:$0xf] %vm450, %v430
          %464 = vst.msk [vmem:[#allocation2 + $0x34] sm:$0xf] %vm450, %v431
          %465 = vst.msk [vmem:[#allocation2 + $0x38] sm:$0xf] %vm450, %v432
          %466 = vst.msk [vmem:[#allocation2 + $0x3c] sm:$0xf] %vm450, %v433
          %467 = vst.msk [vmem:[#allocation2 + $0x40] sm:$0xf] %vm450, %v434
          %468 = vst.msk [vmem:[#allocation2 + $0x44] sm:$0xf] %vm450, %v435
          %469 = vst.msk [vmem:[#allocation2 + $0x48] sm:$0xf] %vm450, %v436
          %470 = vst.msk [vmem:[#allocation2 + $0x4c] sm:$0xf] %vm450, %v437
          %471 = vst.msk [vmem:[#allocation2 + $0x50] sm:$0xf] %vm450, %v438
          %472 = vst.msk [vmem:[#allocation2 + $0x54] sm:$0xf] %vm450, %v439
          %473 = vst.msk [vmem:[#allocation2 + $0x58] sm:$0xf] %vm450, %v440
          %474 = vst.msk [vmem:[#allocation2 + $0x5c] sm:$0xf] %vm450, %v441
          %475 = vst.msk [vmem:[#allocation2 + $0x60] sm:$0xf] %vm450, %v442
          %476 = vst.msk [vmem:[#allocation2 + $0x64] sm:$0xf] %vm450, %v443
          %477 = vst.msk [vmem:[#allocation2 + $0x68] sm:$0xf] %vm450, %v444
          %478 = vst.msk [vmem:[#allocation2 + $0x6c] sm:$0xf] %vm450, %v445
          %479 = vst.msk [vmem:[#allocation2 + $0x70] sm:$0xf] %vm450, %v446
          %480 = vst.msk [vmem:[#allocation2 + $0x74] sm:$0xf] %vm450, %v447
          %481 = vst.msk [vmem:[#allocation2 + $0x78] sm:$0xf] %vm450, %v448
          %482 = vst.msk [vmem:[#allocation2 + $0x7c] sm:$0xf] %vm450, %v449
          %v483 = vld [vmem:[%s3] sm:$0xf]
          %v484 = vld [vmem:[%s3 + $0x4] sm:$0xf]
          %v485 = vld [vmem:[%s3 + $0x8] sm:$0xf]
          %v486 = vld [vmem:[%s3 + $0xc] sm:$0xf]
          %v491 = vunpack.c.l.b16 %v483
          %v492 = vunpack.c.l.b16 %v484
          %v493 = vunpack.c.l.b16 %v485
          %v494 = vunpack.c.l.b16 %v486
          %v495 = vpack.c.b16 %v492, %v491
          %v496 = vpack.c.b16 %v494, %v493
          %499 = vmatpush.bf16.msra.mxu0 0
          %500 = vmatpush.bf16.msra.mxu0 0
          %501 = vmatpush.bf16.msra.mxu0 0
          %502 = vmatpush.bf16.msra.mxu0 0
          %503 = vmatpush.bf16.msra.mxu0 0
          %504 = vmatpush.bf16.msra.mxu0 0
          %505 = vmatpush.bf16.msra.mxu0 %v496
          %506 = vmatpush.bf16.msra.mxu0 %v495
          %507 = vmatmul.bf16.gmra.mxu0 %v282
          %v508 = vpop.f32.mrf.mxu0
          %v509 = vadd.f32 0.0, %v508
          %v510 = vpop.f32.mrf.mxu0
          %v511 = vadd.f32 0.0, %v510
          %512 = vmatmul.bf16.gmra.mxu0 %v285
          %v513 = vpop.f32.mrf.mxu0
          %v514 = vadd.f32 0.0, %v513
          %v515 = vpop.f32.mrf.mxu0
          %v516 = vadd.f32 0.0, %v515
          %517 = vmatmul.bf16.gmra.mxu0 %v288
          %v518 = vpop.f32.mrf.mxu0
          %v519 = vadd.f32 0.0, %v518
          %v520 = vpop.f32.mrf.mxu0
          %v521 = vadd.f32 0.0, %v520
          %522 = vmatmul.bf16.gmra.mxu0 %v291
          %v523 = vpop.f32.mrf.mxu0
          %v524 = vadd.f32 0.0, %v523
          %v525 = vpop.f32.mrf.mxu0
          %v526 = vadd.f32 0.0, %v525
          %527 = vmatmul.bf16.gmra.mxu0 %v294
          %v528 = vpop.f32.mrf.mxu0
          %v529 = vadd.f32 0.0, %v528
          %v530 = vpop.f32.mrf.mxu0
          %v531 = vadd.f32 0.0, %v530
          %532 = vmatmul.bf16.gmra.mxu0 %v297
          %v533 = vpop.f32.mrf.mxu0
          %v534 = vadd.f32 0.0, %v533
          %v535 = vpop.f32.mrf.mxu0
          %v536 = vadd.f32 0.0, %v535
          %537 = vmatmul.bf16.gmra.mxu0 %v300
          %v538 = vpop.f32.mrf.mxu0
          %v539 = vadd.f32 0.0, %v538
          %v540 = vpop.f32.mrf.mxu0
          %v541 = vadd.f32 0.0, %v540
          %542 = vmatmul.bf16.gmra.mxu0 %v303
          %v543 = vpop.f32.mrf.mxu0
          %v544 = vadd.f32 0.0, %v543
          %v545 = vpop.f32.mrf.mxu0
          %v546 = vadd.f32 0.0, %v545
          %547 = vmatmul.bf16.gmra.mxu0 %v306
          %v548 = vpop.f32.mrf.mxu0
          %v549 = vadd.f32 0.0, %v548
          %v550 = vpop.f32.mrf.mxu0
          %v551 = vadd.f32 0.0, %v550
          %552 = vmatmul.bf16.gmra.mxu0 %v309
          %v553 = vpop.f32.mrf.mxu0
          %v554 = vadd.f32 0.0, %v553
          %v555 = vpop.f32.mrf.mxu0
          %v556 = vadd.f32 0.0, %v555
          %557 = vmatmul.bf16.gmra.mxu0 %v312
          %v558 = vpop.f32.mrf.mxu0
          %v559 = vadd.f32 0.0, %v558
          %v560 = vpop.f32.mrf.mxu0
          %v561 = vadd.f32 0.0, %v560
          %562 = vmatmul.bf16.gmra.mxu0 %v315
          %v563 = vpop.f32.mrf.mxu0
          %v564 = vadd.f32 0.0, %v563
          %v565 = vpop.f32.mrf.mxu0
          %v566 = vadd.f32 0.0, %v565
          %567 = vmatmul.bf16.gmra.mxu0 %v318
          %v568 = vpop.f32.mrf.mxu0
          %v569 = vadd.f32 0.0, %v568
          %v570 = vpop.f32.mrf.mxu0
          %v571 = vadd.f32 0.0, %v570
          %572 = vmatmul.bf16.gmra.mxu0 %v321
          %v573 = vpop.f32.mrf.mxu0
          %v574 = vadd.f32 0.0, %v573
          %v575 = vpop.f32.mrf.mxu0
          %v576 = vadd.f32 0.0, %v575
          %577 = vmatmul.bf16.gmra.mxu0 %v324
          %v578 = vpop.f32.mrf.mxu0
          %v579 = vadd.f32 0.0, %v578
          %v580 = vpop.f32.mrf.mxu0
          %v581 = vadd.f32 0.0, %v580
          %582 = vmatmul.bf16.gmra.mxu0 %v327
          %v583 = vpop.f32.mrf.mxu0
          %v584 = vadd.f32 0.0, %v583
          %v585 = vpop.f32.mrf.mxu0
          %v586 = vadd.f32 0.0, %v585
          %587 = vdwg.mxu0
          %v588 = vpack.c.bf16 %v509, %v509
          %v589 = vpack.c.bf16 %v511, %v511
          %v590 = vpack.c.bf16 %v514, %v514
          %v591 = vpack.c.bf16 %v516, %v516
          %v592 = vpack.c.bf16 %v519, %v519
          %v593 = vpack.c.bf16 %v521, %v521
          %v594 = vpack.c.bf16 %v524, %v524
          %v595 = vpack.c.bf16 %v526, %v526
          %v596 = vpack.c.bf16 %v529, %v529
          %v597 = vpack.c.bf16 %v531, %v531
          %v598 = vpack.c.bf16 %v534, %v534
          %v599 = vpack.c.bf16 %v536, %v536
          %v600 = vpack.c.bf16 %v539, %v539
          %v601 = vpack.c.bf16 %v541, %v541
          %v602 = vpack.c.bf16 %v544, %v544
          %v603 = vpack.c.bf16 %v546, %v546
          %v604 = vpack.c.bf16 %v549, %v549
          %v605 = vpack.c.bf16 %v551, %v551
          %v606 = vpack.c.bf16 %v554, %v554
          %v607 = vpack.c.bf16 %v556, %v556
          %v608 = vpack.c.bf16 %v559, %v559
          %v609 = vpack.c.bf16 %v561, %v561
          %v610 = vpack.c.bf16 %v564, %v564
          %v611 = vpack.c.bf16 %v566, %v566
          %v612 = vpack.c.bf16 %v569, %v569
          %v613 = vpack.c.bf16 %v571, %v571
          %v614 = vpack.c.bf16 %v574, %v574
          %v615 = vpack.c.bf16 %v576, %v576
          %v616 = vpack.c.bf16 %v579, %v579
          %v617 = vpack.c.bf16 %v581, %v581
          %v618 = vpack.c.bf16 %v584, %v584
          %v619 = vpack.c.bf16 %v586, %v586
          %620 = vst.msk [vmem:[#allocation3] sm:$0xf] %vm450, %v588
          %621 = vst.msk [vmem:[#allocation3 + $0x4] sm:$0xf] %vm450, %v589
          %622 = vst.msk [vmem:[#allocation3 + $0x8] sm:$0xf] %vm450, %v590
          %623 = vst.msk [vmem:[#allocation3 + $0xc] sm:$0xf] %vm450, %v591
          %624 = vst.msk [vmem:[#allocation3 + $0x10] sm:$0xf] %vm450, %v592
          %625 = vst.msk [vmem:[#allocation3 + $0x14] sm:$0xf] %vm450, %v593
          %626 = vst.msk [vmem:[#allocation3 + $0x18] sm:$0xf] %vm450, %v594
          %627 = vst.msk [vmem:[#allocation3 + $0x1c] sm:$0xf] %vm450, %v595
          %628 = vst.msk [vmem:[#allocation3 + $0x20] sm:$0xf] %vm450, %v596
          %629 = vst.msk [vmem:[#allocation3 + $0x24] sm:$0xf] %vm450, %v597
          %630 = vst.msk [vmem:[#allocation3 + $0x28] sm:$0xf] %vm450, %v598
          %631 = vst.msk [vmem:[#allocation3 + $0x2c] sm:$0xf] %vm450, %v599
          %632 = vst.msk [vmem:[#allocation3 + $0x30] sm:$0xf] %vm450, %v600
          %633 = vst.msk [vmem:[#allocation3 + $0x34] sm:$0xf] %vm450, %v601
          %634 = vst.msk [vmem:[#allocation3 + $0x38] sm:$0xf] %vm450, %v602
          %635 = vst.msk [vmem:[#allocation3 + $0x3c] sm:$0xf] %vm450, %v603
          %636 = vst.msk [vmem:[#allocation3 + $0x40] sm:$0xf] %vm450, %v604
          %637 = vst.msk [vmem:[#allocation3 + $0x44] sm:$0xf] %vm450, %v605
          %638 = vst.msk [vmem:[#allocation3 + $0x48] sm:$0xf] %vm450, %v606
          %639 = vst.msk [vmem:[#allocation3 + $0x4c] sm:$0xf] %vm450, %v607
          %640 = vst.msk [vmem:[#allocation3 + $0x50] sm:$0xf] %vm450, %v608
          %641 = vst.msk [vmem:[#allocation3 + $0x54] sm:$0xf] %vm450, %v609
          %642 = vst.msk [vmem:[#allocation3 + $0x58] sm:$0xf] %vm450, %v610
          %643 = vst.msk [vmem:[#allocation3 + $0x5c] sm:$0xf] %vm450, %v611
          %644 = vst.msk [vmem:[#allocation3 + $0x60] sm:$0xf] %vm450, %v612
          %645 = vst.msk [vmem:[#allocation3 + $0x64] sm:$0xf] %vm450, %v613
          %646 = vst.msk [vmem:[#allocation3 + $0x68] sm:$0xf] %vm450, %v614
          %647 = vst.msk [vmem:[#allocation3 + $0x6c] sm:$0xf] %vm450, %v615
          %648 = vst.msk [vmem:[#allocation3 + $0x70] sm:$0xf] %vm450, %v616
          %649 = vst.msk [vmem:[#allocation3 + $0x74] sm:$0xf] %vm450, %v617
          %650 = vst.msk [vmem:[#allocation3 + $0x78] sm:$0xf] %vm450, %v618
          %651 = vst.msk [vmem:[#allocation3 + $0x7c] sm:$0xf] %vm450, %v619
          %s652 = scalar_lea.vmem %s3, 16
          %v653 = vld [vmem:[%s652] sm:$0xf]
          %v654 = vld [vmem:[%s652 + $0x4] sm:$0xf]
          %v655 = vld [vmem:[%s652 + $0x8] sm:$0xf]
          %v656 = vld [vmem:[%s652 + $0xc] sm:$0xf]
          %v661 = vunpack.c.l.b16 %v653
          %v662 = vunpack.c.l.b16 %v654
          %v663 = vunpack.c.l.b16 %v655
          %v664 = vunpack.c.l.b16 %v656
          %v665 = vpack.c.b16 %v662, %v661
          %v666 = vpack.c.b16 %v664, %v663
          %669 = vmatpush.bf16.msra.mxu0 0
          %670 = vmatpush.bf16.msra.mxu0 0
          %671 = vmatpush.bf16.msra.mxu0 0
          %672 = vmatpush.bf16.msra.mxu0 0
          %673 = vmatpush.bf16.msra.mxu0 0
          %674 = vmatpush.bf16.msra.mxu0 0
          %675 = vmatpush.bf16.msra.mxu0 %v666
          %676 = vmatpush.bf16.msra.mxu0 %v665
          %677 = vmatmul.bf16.gmra.mxu0 %v282
          %v678 = vpop.f32.mrf.mxu0
          %v679 = vadd.f32 0.0, %v678
          %v680 = vpop.f32.mrf.mxu0
          %v681 = vadd.f32 0.0, %v680
          %682 = vmatmul.bf16.gmra.mxu0 %v285
          %v683 = vpop.f32.mrf.mxu0
          %v684 = vadd.f32 0.0, %v683
          %v685 = vpop.f32.mrf.mxu0
          %v686 = vadd.f32 0.0, %v685
          %687 = vmatmul.bf16.gmra.mxu0 %v288
          %v688 = vpop.f32.mrf.mxu0
          %v689 = vadd.f32 0.0, %v688
          %v690 = vpop.f32.mrf.mxu0
          %v691 = vadd.f32 0.0, %v690
          %692 = vmatmul.bf16.gmra.mxu0 %v291
          %v693 = vpop.f32.mrf.mxu0
          %v694 = vadd.f32 0.0, %v693
          %v695 = vpop.f32.mrf.mxu0
          %v696 = vadd.f32 0.0, %v695
          %697 = vmatmul.bf16.gmra.mxu0 %v294
          %v698 = vpop.f32.mrf.mxu0
          %v699 = vadd.f32 0.0, %v698
          %v700 = vpop.f32.mrf.mxu0
          %v701 = vadd.f32 0.0, %v700
          %702 = vmatmul.bf16.gmra.mxu0 %v297
          %v703 = vpop.f32.mrf.mxu0
          %v704 = vadd.f32 0.0, %v703
          %v705 = vpop.f32.mrf.mxu0
          %v706 = vadd.f32 0.0, %v705
          %707 = vmatmul.bf16.gmra.mxu0 %v300
          %v708 = vpop.f32.mrf.mxu0
          %v709 = vadd.f32 0.0, %v708
          %v710 = vpop.f32.mrf.mxu0
          %v711 = vadd.f32 0.0, %v710
          %712 = vmatmul.bf16.gmra.mxu0 %v303
          %v713 = vpop.f32.mrf.mxu0
          %v714 = vadd.f32 0.0, %v713
          %v715 = vpop.f32.mrf.mxu0
          %v716 = vadd.f32 0.0, %v715
          %717 = vmatmul.bf16.gmra.mxu0 %v306
          %v718 = vpop.f32.mrf.mxu0
          %v719 = vadd.f32 0.0, %v718
          %v720 = vpop.f32.mrf.mxu0
          %v721 = vadd.f32 0.0, %v720
          %722 = vmatmul.bf16.gmra.mxu0 %v309
          %v723 = vpop.f32.mrf.mxu0
          %v724 = vadd.f32 0.0, %v723
          %v725 = vpop.f32.mrf.mxu0
          %v726 = vadd.f32 0.0, %v725
          %727 = vmatmul.bf16.gmra.mxu0 %v312
          %v728 = vpop.f32.mrf.mxu0
          %v729 = vadd.f32 0.0, %v728
          %v730 = vpop.f32.mrf.mxu0
          %v731 = vadd.f32 0.0, %v730
          %732 = vmatmul.bf16.gmra.mxu0 %v315
          %v733 = vpop.f32.mrf.mxu0
          %v734 = vadd.f32 0.0, %v733
          %v735 = vpop.f32.mrf.mxu0
          %v736 = vadd.f32 0.0, %v735
          %737 = vmatmul.bf16.gmra.mxu0 %v318
          %v738 = vpop.f32.mrf.mxu0
          %v739 = vadd.f32 0.0, %v738
          %v740 = vpop.f32.mrf.mxu0
          %v741 = vadd.f32 0.0, %v740
          %742 = vmatmul.bf16.gmra.mxu0 %v321
          %v743 = vpop.f32.mrf.mxu0
          %v744 = vadd.f32 0.0, %v743
          %v745 = vpop.f32.mrf.mxu0
          %v746 = vadd.f32 0.0, %v745
          %747 = vmatmul.bf16.gmra.mxu0 %v324
          %v748 = vpop.f32.mrf.mxu0
          %v749 = vadd.f32 0.0, %v748
          %v750 = vpop.f32.mrf.mxu0
          %v751 = vadd.f32 0.0, %v750
          %752 = vmatmul.bf16.gmra.mxu0 %v327
          %v753 = vpop.f32.mrf.mxu0
          %v754 = vadd.f32 0.0, %v753
          %v755 = vpop.f32.mrf.mxu0
          %v756 = vadd.f32 0.0, %v755
          %757 = vdwg.mxu0
          %v758 = vpack.c.bf16 %v679, %v679
          %v759 = vpack.c.bf16 %v681, %v681
          %v760 = vpack.c.bf16 %v684, %v684
          %v761 = vpack.c.bf16 %v686, %v686
          %v762 = vpack.c.bf16 %v689, %v689
          %v763 = vpack.c.bf16 %v691, %v691
          %v764 = vpack.c.bf16 %v694, %v694
          %v765 = vpack.c.bf16 %v696, %v696
          %v766 = vpack.c.bf16 %v699, %v699
          %v767 = vpack.c.bf16 %v701, %v701
          %v768 = vpack.c.bf16 %v704, %v704
          %v769 = vpack.c.bf16 %v706, %v706
          %v770 = vpack.c.bf16 %v709, %v709
          %v771 = vpack.c.bf16 %v711, %v711
          %v772 = vpack.c.bf16 %v714, %v714
          %v773 = vpack.c.bf16 %v716, %v716
          %v774 = vpack.c.bf16 %v719, %v719
          %v775 = vpack.c.bf16 %v721, %v721
          %v776 = vpack.c.bf16 %v724, %v724
          %v777 = vpack.c.bf16 %v726, %v726
          %v778 = vpack.c.bf16 %v729, %v729
          %v779 = vpack.c.bf16 %v731, %v731
          %v780 = vpack.c.bf16 %v734, %v734
          %v781 = vpack.c.bf16 %v736, %v736
          %v782 = vpack.c.bf16 %v739, %v739
          %v783 = vpack.c.bf16 %v741, %v741
          %v784 = vpack.c.bf16 %v744, %v744
          %v785 = vpack.c.bf16 %v746, %v746
          %v786 = vpack.c.bf16 %v749, %v749
          %v787 = vpack.c.bf16 %v751, %v751
          %v788 = vpack.c.bf16 %v754, %v754
          %v789 = vpack.c.bf16 %v756, %v756
          %s790 = scalar_lea.vmem [#allocation3], 128
          %791 = vst.msk [vmem:[%s790] sm:$0xf] %vm450, %v758
          %792 = vst.msk [vmem:[%s790 + $0x4] sm:$0xf] %vm450, %v759
          %793 = vst.msk [vmem:[%s790 + $0x8] sm:$0xf] %vm450, %v760
          %794 = vst.msk [vmem:[%s790 + $0xc] sm:$0xf] %vm450, %v761
          %795 = vst.msk [vmem:[%s790 + $0x10] sm:$0xf] %vm450, %v762
          %796 = vst.msk [vmem:[%s790 + $0x14] sm:$0xf] %vm450, %v763
          %797 = vst.msk [vmem:[%s790 + $0x18] sm:$0xf] %vm450, %v764
          %798 = vst.msk [vmem:[%s790 + $0x1c] sm:$0xf] %vm450, %v765
          %799 = vst.msk [vmem:[%s790 + $0x20] sm:$0xf] %vm450, %v766
          %800 = vst.msk [vmem:[%s790 + $0x24] sm:$0xf] %vm450, %v767
          %801 = vst.msk [vmem:[%s790 + $0x28] sm:$0xf] %vm450, %v768
          %802 = vst.msk [vmem:[%s790 + $0x2c] sm:$0xf] %vm450, %v769
          %803 = vst.msk [vmem:[%s790 + $0x30] sm:$0xf] %vm450, %v770
          %804 = vst.msk [vmem:[%s790 + $0x34] sm:$0xf] %vm450, %v771
          %805 = vst.msk [vmem:[%s790 + $0x38] sm:$0xf] %vm450, %v772
          %806 = vst.msk [vmem:[%s790 + $0x3c] sm:$0xf] %vm450, %v773
          %807 = vst.msk [vmem:[%s790 + $0x40] sm:$0xf] %vm450, %v774
          %808 = vst.msk [vmem:[%s790 + $0x44] sm:$0xf] %vm450, %v775
          %809 = vst.msk [vmem:[%s790 + $0x48] sm:$0xf] %vm450, %v776
          %810 = vst.msk [vmem:[%s790 + $0x4c] sm:$0xf] %vm450, %v777
          %811 = vst.msk [vmem:[%s790 + $0x50] sm:$0xf] %vm450, %v778
          %812 = vst.msk [vmem:[%s790 + $0x54] sm:$0xf] %vm450, %v779
          %813 = vst.msk [vmem:[%s790 + $0x58] sm:$0xf] %vm450, %v780
          %814 = vst.msk [vmem:[%s790 + $0x5c] sm:$0xf] %vm450, %v781
          %815 = vst.msk [vmem:[%s790 + $0x60] sm:$0xf] %vm450, %v782
          %816 = vst.msk [vmem:[%s790 + $0x64] sm:$0xf] %vm450, %v783
          %817 = vst.msk [vmem:[%s790 + $0x68] sm:$0xf] %vm450, %v784
          %818 = vst.msk [vmem:[%s790 + $0x6c] sm:$0xf] %vm450, %v785
          %819 = vst.msk [vmem:[%s790 + $0x70] sm:$0xf] %vm450, %v786
          %820 = vst.msk [vmem:[%s790 + $0x74] sm:$0xf] %vm450, %v787
          %821 = vst.msk [vmem:[%s790 + $0x78] sm:$0xf] %vm450, %v788
          %822 = vst.msk [vmem:[%s790 + $0x7c] sm:$0xf] %vm450, %v789
          %s823 = scalar_lea.vmem %s3, 32
          %v824 = vld [vmem:[%s823] sm:$0xf]
          %v825 = vld [vmem:[%s823 + $0x4] sm:$0xf]
          %v826 = vld [vmem:[%s823 + $0x8] sm:$0xf]
          %v827 = vld [vmem:[%s823 + $0xc] sm:$0xf]
          %v832 = vunpack.c.l.b16 %v824
          %v833 = vunpack.c.l.b16 %v825
          %v834 = vunpack.c.l.b16 %v826
          %v835 = vunpack.c.l.b16 %v827
          %v836 = vpack.c.b16 %v833, %v832
          %v837 = vpack.c.b16 %v835, %v834
          %840 = vmatpush.bf16.msra.mxu0 0
          %841 = vmatpush.bf16.msra.mxu0 0
          %842 = vmatpush.bf16.msra.mxu0 0
          %843 = vmatpush.bf16.msra.mxu0 0
          %844 = vmatpush.bf16.msra.mxu0 0
          %845 = vmatpush.bf16.msra.mxu0 0
          %846 = vmatpush.bf16.msra.mxu0 %v837
          %847 = vmatpush.bf16.msra.mxu0 %v836
          %848 = vmatmul.bf16.gmra.mxu0 %v282
          %v849 = vpop.f32.mrf.mxu0
          %v850 = vadd.f32 0.0, %v849
          %v851 = vpop.f32.mrf.mxu0
          %v852 = vadd.f32 0.0, %v851
          %853 = vmatmul.bf16.gmra.mxu0 %v285
          %v854 = vpop.f32.mrf.mxu0
          %v855 = vadd.f32 0.0, %v854
          %v856 = vpop.f32.mrf.mxu0
          %v857 = vadd.f32 0.0, %v856
          %858 = vmatmul.bf16.gmra.mxu0 %v288
          %v859 = vpop.f32.mrf.mxu0
          %v860 = vadd.f32 0.0, %v859
          %v861 = vpop.f32.mrf.mxu0
          %v862 = vadd.f32 0.0, %v861
          %863 = vmatmul.bf16.gmra.mxu0 %v291
          %v864 = vpop.f32.mrf.mxu0
          %v865 = vadd.f32 0.0, %v864
          %v866 = vpop.f32.mrf.mxu0
          %v867 = vadd.f32 0.0, %v866
          %868 = vmatmul.bf16.gmra.mxu0 %v294
          %v869 = vpop.f32.mrf.mxu0
          %v870 = vadd.f32 0.0, %v869
          %v871 = vpop.f32.mrf.mxu0
          %v872 = vadd.f32 0.0, %v871
          %873 = vmatmul.bf16.gmra.mxu0 %v297
          %v874 = vpop.f32.mrf.mxu0
          %v875 = vadd.f32 0.0, %v874
          %v876 = vpop.f32.mrf.mxu0
          %v877 = vadd.f32 0.0, %v876
          %878 = vmatmul.bf16.gmra.mxu0 %v300
          %v879 = vpop.f32.mrf.mxu0
          %v880 = vadd.f32 0.0, %v879
          %v881 = vpop.f32.mrf.mxu0
          %v882 = vadd.f32 0.0, %v881
          %883 = vmatmul.bf16.gmra.mxu0 %v303
          %v884 = vpop.f32.mrf.mxu0
          %v885 = vadd.f32 0.0, %v884
          %v886 = vpop.f32.mrf.mxu0
          %v887 = vadd.f32 0.0, %v886
          %888 = vmatmul.bf16.gmra.mxu0 %v306
          %v889 = vpop.f32.mrf.mxu0
          %v890 = vadd.f32 0.0, %v889
          %v891 = vpop.f32.mrf.mxu0
          %v892 = vadd.f32 0.0, %v891
          %893 = vmatmul.bf16.gmra.mxu0 %v309
          %v894 = vpop.f32.mrf.mxu0
          %v895 = vadd.f32 0.0, %v894
          %v896 = vpop.f32.mrf.mxu0
          %v897 = vadd.f32 0.0, %v896
          %898 = vmatmul.bf16.gmra.mxu0 %v312
          %v899 = vpop.f32.mrf.mxu0
          %v900 = vadd.f32 0.0, %v899
          %v901 = vpop.f32.mrf.mxu0
          %v902 = vadd.f32 0.0, %v901
          %903 = vmatmul.bf16.gmra.mxu0 %v315
          %v904 = vpop.f32.mrf.mxu0
          %v905 = vadd.f32 0.0, %v904
          %v906 = vpop.f32.mrf.mxu0
          %v907 = vadd.f32 0.0, %v906
          %908 = vmatmul.bf16.gmra.mxu0 %v318
          %v909 = vpop.f32.mrf.mxu0
          %v910 = vadd.f32 0.0, %v909
          %v911 = vpop.f32.mrf.mxu0
          %v912 = vadd.f32 0.0, %v911
          %913 = vmatmul.bf16.gmra.mxu0 %v321
          %v914 = vpop.f32.mrf.mxu0
          %v915 = vadd.f32 0.0, %v914
          %v916 = vpop.f32.mrf.mxu0
          %v917 = vadd.f32 0.0, %v916
          %918 = vmatmul.bf16.gmra.mxu0 %v324
          %v919 = vpop.f32.mrf.mxu0
          %v920 = vadd.f32 0.0, %v919
          %v921 = vpop.f32.mrf.mxu0
          %v922 = vadd.f32 0.0, %v921
          %923 = vmatmul.bf16.gmra.mxu0 %v327
          %v924 = vpop.f32.mrf.mxu0
          %v925 = vadd.f32 0.0, %v924
          %v926 = vpop.f32.mrf.mxu0
          %v927 = vadd.f32 0.0, %v926
          %928 = vdwg.mxu0
          %v929 = vpack.c.bf16 %v850, %v850
          %v930 = vpack.c.bf16 %v852, %v852
          %v931 = vpack.c.bf16 %v855, %v855
          %v932 = vpack.c.bf16 %v857, %v857
          %v933 = vpack.c.bf16 %v860, %v860
          %v934 = vpack.c.bf16 %v862, %v862
          %v935 = vpack.c.bf16 %v865, %v865
          %v936 = vpack.c.bf16 %v867, %v867
          %v937 = vpack.c.bf16 %v870, %v870
          %v938 = vpack.c.bf16 %v872, %v872
          %v939 = vpack.c.bf16 %v875, %v875
          %v940 = vpack.c.bf16 %v877, %v877
          %v941 = vpack.c.bf16 %v880, %v880
          %v942 = vpack.c.bf16 %v882, %v882
          %v943 = vpack.c.bf16 %v885, %v885
          %v944 = vpack.c.bf16 %v887, %v887
          %v945 = vpack.c.bf16 %v890, %v890
          %v946 = vpack.c.bf16 %v892, %v892
          %v947 = vpack.c.bf16 %v895, %v895
          %v948 = vpack.c.bf16 %v897, %v897
          %v949 = vpack.c.bf16 %v900, %v900
          %v950 = vpack.c.bf16 %v902, %v902
          %v951 = vpack.c.bf16 %v905, %v905
          %v952 = vpack.c.bf16 %v907, %v907
          %v953 = vpack.c.bf16 %v910, %v910
          %v954 = vpack.c.bf16 %v912, %v912
          %v955 = vpack.c.bf16 %v915, %v915
          %v956 = vpack.c.bf16 %v917, %v917
          %v957 = vpack.c.bf16 %v920, %v920
          %v958 = vpack.c.bf16 %v922, %v922
          %v959 = vpack.c.bf16 %v925, %v925
          %v960 = vpack.c.bf16 %v927, %v927
          %s961 = scalar_lea.vmem [#allocation3], 256
          %962 = vst.msk [vmem:[%s961] sm:$0xf] %vm450, %v929
          %963 = vst.msk [vmem:[%s961 + $0x4] sm:$0xf] %vm450, %v930
          %964 = vst.msk [vmem:[%s961 + $0x8] sm:$0xf] %vm450, %v931
          %965 = vst.msk [vmem:[%s961 + $0xc] sm:$0xf] %vm450, %v932
          %966 = vst.msk [vmem:[%s961 + $0x10] sm:$0xf] %vm450, %v933
          %967 = vst.msk [vmem:[%s961 + $0x14] sm:$0xf] %vm450, %v934
          %968 = vst.msk [vmem:[%s961 + $0x18] sm:$0xf] %vm450, %v935
          %969 = vst.msk [vmem:[%s961 + $0x1c] sm:$0xf] %vm450, %v936
          %970 = vst.msk [vmem:[%s961 + $0x20] sm:$0xf] %vm450, %v937
          %971 = vst.msk [vmem:[%s961 + $0x24] sm:$0xf] %vm450, %v938
          %972 = vst.msk [vmem:[%s961 + $0x28] sm:$0xf] %vm450, %v939
          %973 = vst.msk [vmem:[%s961 + $0x2c] sm:$0xf] %vm450, %v940
          %974 = vst.msk [vmem:[%s961 + $0x30] sm:$0xf] %vm450, %v941
          %975 = vst.msk [vmem:[%s961 + $0x34] sm:$0xf] %vm450, %v942
          %976 = vst.msk [vmem:[%s961 + $0x38] sm:$0xf] %vm450, %v943
          %977 = vst.msk [vmem:[%s961 + $0x3c] sm:$0xf] %vm450, %v944
          %978 = vst.msk [vmem:[%s961 + $0x40] sm:$0xf] %vm450, %v945
          %979 = vst.msk [vmem:[%s961 + $0x44] sm:$0xf] %vm450, %v946
          %980 = vst.msk [vmem:[%s961 + $0x48] sm:$0xf] %vm450, %v947
          %981 = vst.msk [vmem:[%s961 + $0x4c] sm:$0xf] %vm450, %v948
          %982 = vst.msk [vmem:[%s961 + $0x50] sm:$0xf] %vm450, %v949
          %983 = vst.msk [vmem:[%s961 + $0x54] sm:$0xf] %vm450, %v950
          %984 = vst.msk [vmem:[%s961 + $0x58] sm:$0xf] %vm450, %v951
          %985 = vst.msk [vmem:[%s961 + $0x5c] sm:$0xf] %vm450, %v952
          %986 = vst.msk [vmem:[%s961 + $0x60] sm:$0xf] %vm450, %v953
          %987 = vst.msk [vmem:[%s961 + $0x64] sm:$0xf] %vm450, %v954
          %988 = vst.msk [vmem:[%s961 + $0x68] sm:$0xf] %vm450, %v955
          %989 = vst.msk [vmem:[%s961 + $0x6c] sm:$0xf] %vm450, %v956
          %990 = vst.msk [vmem:[%s961 + $0x70] sm:$0xf] %vm450, %v957
          %991 = vst.msk [vmem:[%s961 + $0x74] sm:$0xf] %vm450, %v958
          %992 = vst.msk [vmem:[%s961 + $0x78] sm:$0xf] %vm450, %v959
          %993 = vst.msk [vmem:[%s961 + $0x7c] sm:$0xf] %vm450, %v960
          %s994 = scalar_lea.vmem %s3, 48
          %v995 = vld [vmem:[%s994] sm:$0xf]
          %v996 = vld [vmem:[%s994 + $0x4] sm:$0xf]
          %v997 = vld [vmem:[%s994 + $0x8] sm:$0xf]
          %v998 = vld [vmem:[%s994 + $0xc] sm:$0xf]
          %v1003 = vunpack.c.l.b16 %v995
          %v1004 = vunpack.c.l.b16 %v996
          %v1005 = vunpack.c.l.b16 %v997
          %v1006 = vunpack.c.l.b16 %v998
          %v1007 = vpack.c.b16 %v1004, %v1003
          %v1008 = vpack.c.b16 %v1006, %v1005
          %1011 = vmatpush.bf16.msra.mxu0 0
          %1012 = vmatpush.bf16.msra.mxu0 0
          %1013 = vmatpush.bf16.msra.mxu0 0
          %1014 = vmatpush.bf16.msra.mxu0 0
          %1015 = vmatpush.bf16.msra.mxu0 0
          %1016 = vmatpush.bf16.msra.mxu0 0
          %1017 = vmatpush.bf16.msra.mxu0 %v1008
          %1018 = vmatpush.bf16.msra.mxu0 %v1007
          %1019 = vmatmul.bf16.gmra.mxu0 %v282
          %v1020 = vpop.f32.mrf.mxu0
          %v1021 = vadd.f32 0.0, %v1020
          %v1022 = vpop.f32.mrf.mxu0
          %v1023 = vadd.f32 0.0, %v1022
          %1024 = vmatmul.bf16.gmra.mxu0 %v285
          %v1025 = vpop.f32.mrf.mxu0
          %v1026 = vadd.f32 0.0, %v1025
          %v1027 = vpop.f32.mrf.mxu0
          %v1028 = vadd.f32 0.0, %v1027
          %1029 = vmatmul.bf16.gmra.mxu0 %v288
          %v1030 = vpop.f32.mrf.mxu0
          %v1031 = vadd.f32 0.0, %v1030
          %v1032 = vpop.f32.mrf.mxu0
          %v1033 = vadd.f32 0.0, %v1032
          %1034 = vmatmul.bf16.gmra.mxu0 %v291
          %v1035 = vpop.f32.mrf.mxu0
          %v1036 = vadd.f32 0.0, %v1035
          %v1037 = vpop.f32.mrf.mxu0
          %v1038 = vadd.f32 0.0, %v1037
          %1039 = vmatmul.bf16.gmra.mxu0 %v294
          %v1040 = vpop.f32.mrf.mxu0
          %v1041 = vadd.f32 0.0, %v1040
          %v1042 = vpop.f32.mrf.mxu0
          %v1043 = vadd.f32 0.0, %v1042
          %1044 = vmatmul.bf16.gmra.mxu0 %v297
          %v1045 = vpop.f32.mrf.mxu0
          %v1046 = vadd.f32 0.0, %v1045
          %v1047 = vpop.f32.mrf.mxu0
          %v1048 = vadd.f32 0.0, %v1047
          %1049 = vmatmul.bf16.gmra.mxu0 %v300
          %v1050 = vpop.f32.mrf.mxu0
          %v1051 = vadd.f32 0.0, %v1050
          %v1052 = vpop.f32.mrf.mxu0
          %v1053 = vadd.f32 0.0, %v1052
          %1054 = vmatmul.bf16.gmra.mxu0 %v303
          %v1055 = vpop.f32.mrf.mxu0
          %v1056 = vadd.f32 0.0, %v1055
          %v1057 = vpop.f32.mrf.mxu0
          %v1058 = vadd.f32 0.0, %v1057
          %1059 = vmatmul.bf16.gmra.mxu0 %v306
          %v1060 = vpop.f32.mrf.mxu0
          %v1061 = vadd.f32 0.0, %v1060
          %v1062 = vpop.f32.mrf.mxu0
          %v1063 = vadd.f32 0.0, %v1062
          %1064 = vmatmul.bf16.gmra.mxu0 %v309
          %v1065 = vpop.f32.mrf.mxu0
          %v1066 = vadd.f32 0.0, %v1065
          %v1067 = vpop.f32.mrf.mxu0
          %v1068 = vadd.f32 0.0, %v1067
          %1069 = vmatmul.bf16.gmra.mxu0 %v312
          %v1070 = vpop.f32.mrf.mxu0
          %v1071 = vadd.f32 0.0, %v1070
          %v1072 = vpop.f32.mrf.mxu0
          %v1073 = vadd.f32 0.0, %v1072
          %1074 = vmatmul.bf16.gmra.mxu0 %v315
          %v1075 = vpop.f32.mrf.mxu0
          %v1076 = vadd.f32 0.0, %v1075
          %v1077 = vpop.f32.mrf.mxu0
          %v1078 = vadd.f32 0.0, %v1077
          %1079 = vmatmul.bf16.gmra.mxu0 %v318
          %v1080 = vpop.f32.mrf.mxu0
          %v1081 = vadd.f32 0.0, %v1080
          %v1082 = vpop.f32.mrf.mxu0
          %v1083 = vadd.f32 0.0, %v1082
          %1084 = vmatmul.bf16.gmra.mxu0 %v321
          %v1085 = vpop.f32.mrf.mxu0
          %v1086 = vadd.f32 0.0, %v1085
          %v1087 = vpop.f32.mrf.mxu0
          %v1088 = vadd.f32 0.0, %v1087
          %1089 = vmatmul.bf16.gmra.mxu0 %v324
          %v1090 = vpop.f32.mrf.mxu0
          %v1091 = vadd.f32 0.0, %v1090
          %v1092 = vpop.f32.mrf.mxu0
          %v1093 = vadd.f32 0.0, %v1092
          %1094 = vmatmul.bf16.gmra.mxu0 %v327
          %v1095 = vpop.f32.mrf.mxu0
          %v1096 = vadd.f32 0.0, %v1095
          %v1097 = vpop.f32.mrf.mxu0
          %v1098 = vadd.f32 0.0, %v1097
          %1099 = vdwg.mxu0
          %v1100 = vpack.c.bf16 %v1021, %v1021
          %v1101 = vpack.c.bf16 %v1023, %v1023
          %v1102 = vpack.c.bf16 %v1026, %v1026
          %v1103 = vpack.c.bf16 %v1028, %v1028
          %v1104 = vpack.c.bf16 %v1031, %v1031
          %v1105 = vpack.c.bf16 %v1033, %v1033
          %v1106 = vpack.c.bf16 %v1036, %v1036
          %v1107 = vpack.c.bf16 %v1038, %v1038
          %v1108 = vpack.c.bf16 %v1041, %v1041
          %v1109 = vpack.c.bf16 %v1043, %v1043
          %v1110 = vpack.c.bf16 %v1046, %v1046
          %v1111 = vpack.c.bf16 %v1048, %v1048
          %v1112 = vpack.c.bf16 %v1051, %v1051
          %v1113 = vpack.c.bf16 %v1053, %v1053
          %v1114 = vpack.c.bf16 %v1056, %v1056
          %v1115 = vpack.c.bf16 %v1058, %v1058
          %v1116 = vpack.c.bf16 %v1061, %v1061
          %v1117 = vpack.c.bf16 %v1063, %v1063
          %v1118 = vpack.c.bf16 %v1066, %v1066
          %v1119 = vpack.c.bf16 %v1068, %v1068
          %v1120 = vpack.c.bf16 %v1071, %v1071
          %v1121 = vpack.c.bf16 %v1073, %v1073
          %v1122 = vpack.c.bf16 %v1076, %v1076
          %v1123 = vpack.c.bf16 %v1078, %v1078
          %v1124 = vpack.c.bf16 %v1081, %v1081
          %v1125 = vpack.c.bf16 %v1083, %v1083
          %v1126 = vpack.c.bf16 %v1086, %v1086
          %v1127 = vpack.c.bf16 %v1088, %v1088
          %v1128 = vpack.c.bf16 %v1091, %v1091
          %v1129 = vpack.c.bf16 %v1093, %v1093
          %v1130 = vpack.c.bf16 %v1096, %v1096
          %v1131 = vpack.c.bf16 %v1098, %v1098
          %s1132 = scalar_lea.vmem [#allocation3], 384
          %1133 = vst.msk [vmem:[%s1132] sm:$0xf] %vm450, %v1100
          %1134 = vst.msk [vmem:[%s1132 + $0x4] sm:$0xf] %vm450, %v1101
          %1135 = vst.msk [vmem:[%s1132 + $0x8] sm:$0xf] %vm450, %v1102
          %1136 = vst.msk [vmem:[%s1132 + $0xc] sm:$0xf] %vm450, %v1103
          %1137 = vst.msk [vmem:[%s1132 + $0x10] sm:$0xf] %vm450, %v1104
          %1138 = vst.msk [vmem:[%s1132 + $0x14] sm:$0xf] %vm450, %v1105
          %1139 = vst.msk [vmem:[%s1132 + $0x18] sm:$0xf] %vm450, %v1106
          %1140 = vst.msk [vmem:[%s1132 + $0x1c] sm:$0xf] %vm450, %v1107
          %1141 = vst.msk [vmem:[%s1132 + $0x20] sm:$0xf] %vm450, %v1108
          %1142 = vst.msk [vmem:[%s1132 + $0x24] sm:$0xf] %vm450, %v1109
          %1143 = vst.msk [vmem:[%s1132 + $0x28] sm:$0xf] %vm450, %v1110
          %1144 = vst.msk [vmem:[%s1132 + $0x2c] sm:$0xf] %vm450, %v1111
          %1145 = vst.msk [vmem:[%s1132 + $0x30] sm:$0xf] %vm450, %v1112
          %1146 = vst.msk [vmem:[%s1132 + $0x34] sm:$0xf] %vm450, %v1113
          %1147 = vst.msk [vmem:[%s1132 + $0x38] sm:$0xf] %vm450, %v1114
          %1148 = vst.msk [vmem:[%s1132 + $0x3c] sm:$0xf] %vm450, %v1115
          %1149 = vst.msk [vmem:[%s1132 + $0x40] sm:$0xf] %vm450, %v1116
          %1150 = vst.msk [vmem:[%s1132 + $0x44] sm:$0xf] %vm450, %v1117
          %1151 = vst.msk [vmem:[%s1132 + $0x48] sm:$0xf] %vm450, %v1118
          %1152 = vst.msk [vmem:[%s1132 + $0x4c] sm:$0xf] %vm450, %v1119
          %1153 = vst.msk [vmem:[%s1132 + $0x50] sm:$0xf] %vm450, %v1120
          %1154 = vst.msk [vmem:[%s1132 + $0x54] sm:$0xf] %vm450, %v1121
          %1155 = vst.msk [vmem:[%s1132 + $0x58] sm:$0xf] %vm450, %v1122
          %1156 = vst.msk [vmem:[%s1132 + $0x5c] sm:$0xf] %vm450, %v1123
          %1157 = vst.msk [vmem:[%s1132 + $0x60] sm:$0xf] %vm450, %v1124
          %1158 = vst.msk [vmem:[%s1132 + $0x64] sm:$0xf] %vm450, %v1125
          %1159 = vst.msk [vmem:[%s1132 + $0x68] sm:$0xf] %vm450, %v1126
          %1160 = vst.msk [vmem:[%s1132 + $0x6c] sm:$0xf] %vm450, %v1127
          %1161 = vst.msk [vmem:[%s1132 + $0x70] sm:$0xf] %vm450, %v1128
          %1162 = vst.msk [vmem:[%s1132 + $0x74] sm:$0xf] %vm450, %v1129
          %1163 = vst.msk [vmem:[%s1132 + $0x78] sm:$0xf] %vm450, %v1130
          %1164 = vst.msk [vmem:[%s1132 + $0x7c] sm:$0xf] %vm450, %v1131
        $region40: #{tpu_custom_call.1} parent=35 // pred_fallthru
          _
        %s1165 = smul.u32 %s23, 256
        %s1166 = scalar_lea.vmem %s209, %s1165
        %v1167 = vld [vmem:[%s1166] sm:$0xff]
        %v1168 = vld [vmem:[%s1166 + $0x8] sm:$0xff]
        %v1169 = vld [vmem:[%s1166 + $0x10] sm:$0xff]
        %v1170 = vld [vmem:[%s1166 + $0x18] sm:$0xff]
        %v1171 = vld [vmem:[%s1166 + $0x20] sm:$0xff]
        %v1172 = vld [vmem:[%s1166 + $0x28] sm:$0xff]
        %v1173 = vld [vmem:[%s1166 + $0x30] sm:$0xff]
        %v1174 = vld [vmem:[%s1166 + $0x38] sm:$0xff]
        %v1175 = vld [vmem:[%s1166 + $0x40] sm:$0xff]
        %v1176 = vld [vmem:[%s1166 + $0x48] sm:$0xff]
        %v1177 = vld [vmem:[%s1166 + $0x50] sm:$0xff]
        %v1178 = vld [vmem:[%s1166 + $0x58] sm:$0xff]
        %v1179 = vld [vmem:[%s1166 + $0x60] sm:$0xff]
        %v1180 = vld [vmem:[%s1166 + $0x68] sm:$0xff]
        %v1181 = vld [vmem:[%s1166 + $0x70] sm:$0xff]
        %v1182 = vld [vmem:[%s1166 + $0x78] sm:$0xff]
        %v1183 = vld [vmem:[%s1166 + $0x80] sm:$0xff]
        %v1184 = vld [vmem:[%s1166 + $0x88] sm:$0xff]
        %v1185 = vld [vmem:[%s1166 + $0x90] sm:$0xff]
        %v1186 = vld [vmem:[%s1166 + $0x98] sm:$0xff]
        %v1187 = vld [vmem:[%s1166 + $0xa0] sm:$0xff]
        %v1188 = vld [vmem:[%s1166 + $0xa8] sm:$0xff]
        %v1189 = vld [vmem:[%s1166 + $0xb0] sm:$0xff]
        %v1190 = vld [vmem:[%s1166 + $0xb8] sm:$0xff]
        %v1191 = vld [vmem:[%s1166 + $0xc0] sm:$0xff]
        %v1192 = vld [vmem:[%s1166 + $0xc8] sm:$0xff]
        %v1193 = vld [vmem:[%s1166 + $0xd0] sm:$0xff]
        %v1194 = vld [vmem:[%s1166 + $0xd8] sm:$0xff]
        %v1195 = vld [vmem:[%s1166 + $0xe0] sm:$0xff]
        %v1196 = vld [vmem:[%s1166 + $0xe8] sm:$0xff]
        %v1197 = vld [vmem:[%s1166 + $0xf0] sm:$0xff]
        %v1198 = vld [vmem:[%s1166 + $0xf8] sm:$0xff]
        %v1199 = vpack.c.bf16 %v1168, %v1167
        %v1200 = vpack.c.bf16 %v1170, %v1169
        %v1201 = vpack.c.bf16 %v1172, %v1171
        %v1202 = vpack.c.bf16 %v1174, %v1173
        %v1203 = vpack.c.bf16 %v1176, %v1175
        %v1204 = vpack.c.bf16 %v1178, %v1177
        %v1205 = vpack.c.bf16 %v1180, %v1179
        %v1206 = vpack.c.bf16 %v1182, %v1181
        %v1207 = vpack.c.bf16 %v1184, %v1183
        %v1208 = vpack.c.bf16 %v1186, %v1185
        %v1209 = vpack.c.bf16 %v1188, %v1187
        %v1210 = vpack.c.bf16 %v1190, %v1189
        %v1211 = vpack.c.bf16 %v1192, %v1191
        %v1212 = vpack.c.bf16 %v1194, %v1193
        %v1213 = vpack.c.bf16 %v1196, %v1195
        %v1214 = vpack.c.bf16 %v1198, %v1197
        %v1215 = vld [vmem:[%s1] sm:$0xf]
        %v1216 = vld [vmem:[%s1 + $0x4] sm:$0xf]
        %v1217 = vld [vmem:[%s1 + $0x8] sm:$0xf]
        %v1218 = vld [vmem:[%s1 + $0xc] sm:$0xf]
        %v1223 = vunpack.c.l.b16 %v1215
        %v1224 = vunpack.c.l.b16 %v1216
        %v1225 = vunpack.c.l.b16 %v1217
        %v1226 = vunpack.c.l.b16 %v1218
        %v1227 = vpack.c.b16 %v1224, %v1223
        %v1228 = vpack.c.b16 %v1226, %v1225
        %vm1231 = vcmask 261120
        %v1233 = vsel %vm1231, %v1199, 0
        %v1236 = vsel %vm1231, %v1200, 0
        %v1239 = vsel %vm1231, %v1201, 0
        %v1242 = vsel %vm1231, %v1202, 0
        %v1245 = vsel %vm1231, %v1203, 0
        %v1248 = vsel %vm1231, %v1204, 0
        %v1251 = vsel %vm1231, %v1205, 0
        %v1254 = vsel %vm1231, %v1206, 0
        %v1257 = vsel %vm1231, %v1207, 0
        %v1260 = vsel %vm1231, %v1208, 0
        %v1263 = vsel %vm1231, %v1209, 0
        %v1266 = vsel %vm1231, %v1210, 0
        %v1269 = vsel %vm1231, %v1211, 0
        %v1272 = vsel %vm1231, %v1212, 0
        %v1275 = vsel %vm1231, %v1213, 0
        %v1278 = vsel %vm1231, %v1214, 0
        %1280 = vmatpush.bf16.msra.mxu0 0
        %1281 = vmatpush.bf16.msra.mxu0 0
        %1282 = vmatpush.bf16.msra.mxu0 0
        %1283 = vmatpush.bf16.msra.mxu0 0
        %1284 = vmatpush.bf16.msra.mxu0 0
        %1285 = vmatpush.bf16.msra.mxu0 0
        %1286 = vmatpush.bf16.msra.mxu0 %v1228
        %1287 = vmatpush.bf16.msra.mxu0 %v1227
        %1288 = vmatmul.bf16.gmra.mxu0 %v1233
        %v1289 = vpop.f32.mrf.mxu0
        %v1290 = vadd.f32 0.0, %v1289
        %v1291 = vpop.f32.mrf.mxu0
        %v1292 = vadd.f32 0.0, %v1291
        %1293 = vmatmul.bf16.gmra.mxu0 %v1236
        %v1294 = vpop.f32.mrf.mxu0
        %v1295 = vadd.f32 0.0, %v1294
        %v1296 = vpop.f32.mrf.mxu0
        %v1297 = vadd.f32 0.0, %v1296
        %1298 = vmatmul.bf16.gmra.mxu0 %v1239
        %v1299 = vpop.f32.mrf.mxu0
        %v1300 = vadd.f32 0.0, %v1299
        %v1301 = vpop.f32.mrf.mxu0
        %v1302 = vadd.f32 0.0, %v1301
        %1303 = vmatmul.bf16.gmra.mxu0 %v1242
        %v1304 = vpop.f32.mrf.mxu0
        %v1305 = vadd.f32 0.0, %v1304
        %v1306 = vpop.f32.mrf.mxu0
        %v1307 = vadd.f32 0.0, %v1306
        %1308 = vmatmul.bf16.gmra.mxu0 %v1245
        %v1309 = vpop.f32.mrf.mxu0
        %v1310 = vadd.f32 0.0, %v1309
        %v1311 = vpop.f32.mrf.mxu0
        %v1312 = vadd.f32 0.0, %v1311
        %1313 = vmatmul.bf16.gmra.mxu0 %v1248
        %v1314 = vpop.f32.mrf.mxu0
        %v1315 = vadd.f32 0.0, %v1314
        %v1316 = vpop.f32.mrf.mxu0
        %v1317 = vadd.f32 0.0, %v1316
        %1318 = vmatmul.bf16.gmra.mxu0 %v1251
        %v1319 = vpop.f32.mrf.mxu0
        %v1320 = vadd.f32 0.0, %v1319
        %v1321 = vpop.f32.mrf.mxu0
        %v1322 = vadd.f32 0.0, %v1321
        %1323 = vmatmul.bf16.gmra.mxu0 %v1254
        %v1324 = vpop.f32.mrf.mxu0
        %v1325 = vadd.f32 0.0, %v1324
        %v1326 = vpop.f32.mrf.mxu0
        %v1327 = vadd.f32 0.0, %v1326
        %1328 = vmatmul.bf16.gmra.mxu0 %v1257
        %v1329 = vpop.f32.mrf.mxu0
        %v1330 = vadd.f32 0.0, %v1329
        %v1331 = vpop.f32.mrf.mxu0
        %v1332 = vadd.f32 0.0, %v1331
        %1333 = vmatmul.bf16.gmra.mxu0 %v1260
        %v1334 = vpop.f32.mrf.mxu0
        %v1335 = vadd.f32 0.0, %v1334
        %v1336 = vpop.f32.mrf.mxu0
        %v1337 = vadd.f32 0.0, %v1336
        %1338 = vmatmul.bf16.gmra.mxu0 %v1263
        %v1339 = vpop.f32.mrf.mxu0
        %v1340 = vadd.f32 0.0, %v1339
        %v1341 = vpop.f32.mrf.mxu0
        %v1342 = vadd.f32 0.0, %v1341
        %1343 = vmatmul.bf16.gmra.mxu0 %v1266
        %v1344 = vpop.f32.mrf.mxu0
        %v1345 = vadd.f32 0.0, %v1344
        %v1346 = vpop.f32.mrf.mxu0
        %v1347 = vadd.f32 0.0, %v1346
        %1348 = vmatmul.bf16.gmra.mxu0 %v1269
        %v1349 = vpop.f32.mrf.mxu0
        %v1350 = vadd.f32 0.0, %v1349
        %v1351 = vpop.f32.mrf.mxu0
        %v1352 = vadd.f32 0.0, %v1351
        %1353 = vmatmul.bf16.gmra.mxu0 %v1272
        %v1354 = vpop.f32.mrf.mxu0
        %v1355 = vadd.f32 0.0, %v1354
        %v1356 = vpop.f32.mrf.mxu0
        %v1357 = vadd.f32 0.0, %v1356
        %1358 = vmatmul.bf16.gmra.mxu0 %v1275
        %v1359 = vpop.f32.mrf.mxu0
        %v1360 = vadd.f32 0.0, %v1359
        %v1361 = vpop.f32.mrf.mxu0
        %v1362 = vadd.f32 0.0, %v1361
        %1363 = vmatmul.bf16.gmra.mxu0 %v1278
        %v1364 = vpop.f32.mrf.mxu0
        %v1365 = vadd.f32 0.0, %v1364
        %v1366 = vpop.f32.mrf.mxu0
        %v1367 = vadd.f32 0.0, %v1366
        %1368 = vdwg.mxu0
        %v1369 = vpack.c.bf16 %v1290, %v1290
        %v1370 = vpack.c.bf16 %v1292, %v1292
        %v1371 = vpack.c.bf16 %v1295, %v1295
        %v1372 = vpack.c.bf16 %v1297, %v1297
        %v1373 = vpack.c.bf16 %v1300, %v1300
        %v1374 = vpack.c.bf16 %v1302, %v1302
        %v1375 = vpack.c.bf16 %v1305, %v1305
        %v1376 = vpack.c.bf16 %v1307, %v1307
        %v1377 = vpack.c.bf16 %v1310, %v1310
        %v1378 = vpack.c.bf16 %v1312, %v1312
        %v1379 = vpack.c.bf16 %v1315, %v1315
        %v1380 = vpack.c.bf16 %v1317, %v1317
        %v1381 = vpack.c.bf16 %v1320, %v1320
        %v1382 = vpack.c.bf16 %v1322, %v1322
        %v1383 = vpack.c.bf16 %v1325, %v1325
        %v1384 = vpack.c.bf16 %v1327, %v1327
        %v1385 = vpack.c.bf16 %v1330, %v1330
        %v1386 = vpack.c.bf16 %v1332, %v1332
        %v1387 = vpack.c.bf16 %v1335, %v1335
        %v1388 = vpack.c.bf16 %v1337, %v1337
        %v1389 = vpack.c.bf16 %v1340, %v1340
        %v1390 = vpack.c.bf16 %v1342, %v1342
        %v1391 = vpack.c.bf16 %v1345, %v1345
        %v1392 = vpack.c.bf16 %v1347, %v1347
        %v1393 = vpack.c.bf16 %v1350, %v1350
        %v1394 = vpack.c.bf16 %v1352, %v1352
        %v1395 = vpack.c.bf16 %v1355, %v1355
        %v1396 = vpack.c.bf16 %v1357, %v1357
        %v1397 = vpack.c.bf16 %v1360, %v1360
        %v1398 = vpack.c.bf16 %v1362, %v1362
        %v1399 = vpack.c.bf16 %v1365, %v1365
        %v1400 = vpack.c.bf16 %v1367, %v1367
        %v1401 = vld [vmem:[#allocation2] sm:$0xf]
        %v1402 = vld [vmem:[#allocation2 + $0x4] sm:$0xf]
        %v1403 = vld [vmem:[#allocation2 + $0x8] sm:$0xf]
        %v1404 = vld [vmem:[#allocation2 + $0xc] sm:$0xf]
        %v1405 = vld [vmem:[#allocation2 + $0x10] sm:$0xf]
        %v1406 = vld [vmem:[#allocation2 + $0x14] sm:$0xf]
        %v1407 = vld [vmem:[#allocation2 + $0x18] sm:$0xf]
        %v1408 = vld [vmem:[#allocation2 + $0x1c] sm:$0xf]
        %v1409 = vld [vmem:[#allocation2 + $0x20] sm:$0xf]
        %v1410 = vld [vmem:[#allocation2 + $0x24] sm:$0xf]
        %v1411 = vld [vmem:[#allocation2 + $0x28] sm:$0xf]
        %v1412 = vld [vmem:[#allocation2 + $0x2c] sm:$0xf]
        %v1413 = vld [vmem:[#allocation2 + $0x30] sm:$0xf]
        %v1414 = vld [vmem:[#allocation2 + $0x34] sm:$0xf]
        %v1415 = vld [vmem:[#allocation2 + $0x38] sm:$0xf]
        %v1416 = vld [vmem:[#allocation2 + $0x3c] sm:$0xf]
        %v1417 = vld [vmem:[#allocation2 + $0x40] sm:$0xf]
        %v1418 = vld [vmem:[#allocation2 + $0x44] sm:$0xf]
        %v1419 = vld [vmem:[#allocation2 + $0x48] sm:$0xf]
        %v1420 = vld [vmem:[#allocation2 + $0x4c] sm:$0xf]
        %v1421 = vld [vmem:[#allocation2 + $0x50] sm:$0xf]
        %v1422 = vld [vmem:[#allocation2 + $0x54] sm:$0xf]
        %v1423 = vld [vmem:[#allocation2 + $0x58] sm:$0xf]
        %v1424 = vld [vmem:[#allocation2 + $0x5c] sm:$0xf]
        %v1425 = vld [vmem:[#allocation2 + $0x60] sm:$0xf]
        %v1426 = vld [vmem:[#allocation2 + $0x64] sm:$0xf]
        %v1427 = vld [vmem:[#allocation2 + $0x68] sm:$0xf]
        %v1428 = vld [vmem:[#allocation2 + $0x6c] sm:$0xf]
        %v1429 = vld [vmem:[#allocation2 + $0x70] sm:$0xf]
        %v1430 = vld [vmem:[#allocation2 + $0x74] sm:$0xf]
        %v1431 = vld [vmem:[#allocation2 + $0x78] sm:$0xf]
        %v1432 = vld [vmem:[#allocation2 + $0x7c] sm:$0xf]
        %v1465 = vunpack.c.l.b16 %v1401
        %v1466 = vunpack.c.l.b16 %v1402
        %v1467 = vunpack.c.l.b16 %v1403
        %v1468 = vunpack.c.l.b16 %v1404
        %v1469 = vunpack.c.l.b16 %v1405
        %v1470 = vunpack.c.l.b16 %v1406
        %v1471 = vunpack.c.l.b16 %v1407
        %v1472 = vunpack.c.l.b16 %v1408
        %v1473 = vunpack.c.l.b16 %v1409
        %v1474 = vunpack.c.l.b16 %v1410
        %v1475 = vunpack.c.l.b16 %v1411
        %v1476 = vunpack.c.l.b16 %v1412
        %v1477 = vunpack.c.l.b16 %v1413
        %v1478 = vunpack.c.l.b16 %v1414
        %v1479 = vunpack.c.l.b16 %v1415
        %v1480 = vunpack.c.l.b16 %v1416
        %v1481 = vunpack.c.l.b16 %v1417
        %v1482 = vunpack.c.l.b16 %v1418
        %v1483 = vunpack.c.l.b16 %v1419
        %v1484 = vunpack.c.l.b16 %v1420
        %v1485 = vunpack.c.l.b16 %v1421
        %v1486 = vunpack.c.l.b16 %v1422
        %v1487 = vunpack.c.l.b16 %v1423
        %v1488 = vunpack.c.l.b16 %v1424
        %v1489 = vunpack.c.l.b16 %v1425
        %v1490 = vunpack.c.l.b16 %v1426
        %v1491 = vunpack.c.l.b16 %v1427
        %v1492 = vunpack.c.l.b16 %v1428
        %v1493 = vunpack.c.l.b16 %v1429
        %v1494 = vunpack.c.l.b16 %v1430
        %v1495 = vunpack.c.l.b16 %v1431
        %v1496 = vunpack.c.l.b16 %v1432
        %v1497 = vpack.c.b16 %v1466, %v1465
        %v1498 = vpack.c.b16 %v1468, %v1467
        %v1499 = vpack.c.b16 %v1470, %v1469
        %v1500 = vpack.c.b16 %v1472, %v1471
        %v1501 = vpack.c.b16 %v1474, %v1473
        %v1502 = vpack.c.b16 %v1476, %v1475
        %v1503 = vpack.c.b16 %v1478, %v1477
        %v1504 = vpack.c.b16 %v1480, %v1479
        %v1505 = vpack.c.b16 %v1482, %v1481
        %v1506 = vpack.c.b16 %v1484, %v1483
        %v1507 = vpack.c.b16 %v1486, %v1485
        %v1508 = vpack.c.b16 %v1488, %v1487
        %v1509 = vpack.c.b16 %v1490, %v1489
        %v1510 = vpack.c.b16 %v1492, %v1491
        %v1511 = vpack.c.b16 %v1494, %v1493
        %v1512 = vpack.c.b16 %v1496, %v1495
        %v1545 = vunpack.c.l.b16 %v1369
        %v1546 = vunpack.c.l.b16 %v1370
        %v1547 = vunpack.c.l.b16 %v1371
        %v1548 = vunpack.c.l.b16 %v1372
        %v1549 = vunpack.c.l.b16 %v1373
        %v1550 = vunpack.c.l.b16 %v1374
        %v1551 = vunpack.c.l.b16 %v1375
        %v1552 = vunpack.c.l.b16 %v1376
        %v1553 = vunpack.c.l.b16 %v1377
        %v1554 = vunpack.c.l.b16 %v1378
        %v1555 = vunpack.c.l.b16 %v1379
        %v1556 = vunpack.c.l.b16 %v1380
        %v1557 = vunpack.c.l.b16 %v1381
        %v1558 = vunpack.c.l.b16 %v1382
        %v1559 = vunpack.c.l.b16 %v1383
        %v1560 = vunpack.c.l.b16 %v1384
        %v1561 = vunpack.c.l.b16 %v1385
        %v1562 = vunpack.c.l.b16 %v1386
        %v1563 = vunpack.c.l.b16 %v1387
        %v1564 = vunpack.c.l.b16 %v1388
        %v1565 = vunpack.c.l.b16 %v1389
        %v1566 = vunpack.c.l.b16 %v1390
        %v1567 = vunpack.c.l.b16 %v1391
        %v1568 = vunpack.c.l.b16 %v1392
        %v1569 = vunpack.c.l.b16 %v1393
        %v1570 = vunpack.c.l.b16 %v1394
        %v1571 = vunpack.c.l.b16 %v1395
        %v1572 = vunpack.c.l.b16 %v1396
        %v1573 = vunpack.c.l.b16 %v1397
        %v1574 = vunpack.c.l.b16 %v1398
        %v1575 = vunpack.c.l.b16 %v1399
        %v1576 = vunpack.c.l.b16 %v1400
        %v1577 = vpack.c.b16 %v1546, %v1545
        %v1578 = vpack.c.b16 %v1548, %v1547
        %v1579 = vpack.c.b16 %v1550, %v1549
        %v1580 = vpack.c.b16 %v1552, %v1551
        %v1581 = vpack.c.b16 %v1554, %v1553
        %v1582 = vpack.c.b16 %v1556, %v1555
        %v1583 = vpack.c.b16 %v1558, %v1557
        %v1584 = vpack.c.b16 %v1560, %v1559
        %v1585 = vpack.c.b16 %v1562, %v1561
        %v1586 = vpack.c.b16 %v1564, %v1563
        %v1587 = vpack.c.b16 %v1566, %v1565
        %v1588 = vpack.c.b16 %v1568, %v1567
        %v1589 = vpack.c.b16 %v1570, %v1569
        %v1590 = vpack.c.b16 %v1572, %v1571
        %v1591 = vpack.c.b16 %v1574, %v1573
        %v1592 = vpack.c.b16 %v1576, %v1575
        %vm1593 = vcmask 64512
        %v1595 = vsel %vm1593, %v1497, 0
        %v1598 = vsel %vm1593, %v1498, 0
        %v1601 = vsel %vm1593, %v1499, 0
        %v1604 = vsel %vm1593, %v1500, 0
        %v1607 = vsel %vm1593, %v1501, 0
        %v1610 = vsel %vm1593, %v1502, 0
        %v1613 = vsel %vm1593, %v1503, 0
        %v1616 = vsel %vm1593, %v1504, 0
        %v1619 = vsel %vm1593, %v1505, 0
        %v1622 = vsel %vm1593, %v1506, 0
        %v1625 = vsel %vm1593, %v1507, 0
        %v1628 = vsel %vm1593, %v1508, 0
        %v1631 = vsel %vm1593, %v1509, 0
        %v1634 = vsel %vm1593, %v1510, 0
        %v1637 = vsel %vm1593, %v1511, 0
        %v1640 = vsel %vm1593, %v1512, 0
        %v1643 = vsel %vm1593, %v1577, 0
        %v1646 = vsel %vm1593, %v1578, 0
        %v1649 = vsel %vm1593, %v1579, 0
        %v1652 = vsel %vm1593, %v1580, 0
        %v1655 = vsel %vm1593, %v1581, 0
        %v1658 = vsel %vm1593, %v1582, 0
        %v1661 = vsel %vm1593, %v1583, 0
        %v1664 = vsel %vm1593, %v1584, 0
        %v1667 = vsel %vm1593, %v1585, 0
        %v1670 = vsel %vm1593, %v1586, 0
        %v1673 = vsel %vm1593, %v1587, 0
        %v1676 = vsel %vm1593, %v1588, 0
        %v1679 = vsel %vm1593, %v1589, 0
        %v1682 = vsel %vm1593, %v1590, 0
        %v1685 = vsel %vm1593, %v1591, 0
        %v1688 = vsel %vm1593, %v1592, 0
        %1690 = vmatpush.bf16.xpose.msra.mxu0 %v1664
        %1691 = vmatpush.bf16.xpose.msra.mxu0 %v1661
        %1692 = vmatpush.bf16.xpose.msra.mxu0 %v1658
        %1693 = vmatpush.bf16.xpose.msra.mxu0 %v1655
        %1694 = vmatpush.bf16.xpose.msra.mxu0 %v1652
        %1695 = vmatpush.bf16.xpose.msra.mxu0 %v1649
        %1696 = vmatpush.bf16.xpose.msra.mxu0 %v1646
        %1697 = vmatpush.bf16.xpose.msra.mxu0 %v1643
        %1698 = vmatmul.bf16.gmra.mxu0 %v1595
        %v1699 = vpop.f32.mrf.mxu0
        %v1700 = vadd.f32 0.0, %v1699
        %v1701 = vpop.f32.mrf.mxu0
        %v1702 = vadd.f32 0.0, %v1701
        %1703 = vmatmul.bf16.gmra.mxu0 %v1598
        %v1704 = vpop.f32.mrf.mxu0
        %v1705 = vadd.f32 0.0, %v1704
        %v1706 = vpop.f32.mrf.mxu0
        %v1707 = vadd.f32 0.0, %v1706
        %1708 = vmatmul.bf16.gmra.mxu0 %v1601
        %v1709 = vpop.f32.mrf.mxu0
        %v1710 = vadd.f32 0.0, %v1709
        %v1711 = vpop.f32.mrf.mxu0
        %v1712 = vadd.f32 0.0, %v1711
        %1713 = vmatmul.bf16.gmra.mxu0 %v1604
        %v1714 = vpop.f32.mrf.mxu0
        %v1715 = vadd.f32 0.0, %v1714
        %v1716 = vpop.f32.mrf.mxu0
        %v1717 = vadd.f32 0.0, %v1716
        %1718 = vmatmul.bf16.gmra.mxu0 %v1607
        %v1719 = vpop.f32.mrf.mxu0
        %v1720 = vadd.f32 0.0, %v1719
        %v1721 = vpop.f32.mrf.mxu0
        %v1722 = vadd.f32 0.0, %v1721
        %1723 = vmatmul.bf16.gmra.mxu0 %v1610
        %v1724 = vpop.f32.mrf.mxu0
        %v1725 = vadd.f32 0.0, %v1724
        %v1726 = vpop.f32.mrf.mxu0
        %v1727 = vadd.f32 0.0, %v1726
        %1728 = vmatmul.bf16.gmra.mxu0 %v1613
        %v1729 = vpop.f32.mrf.mxu0
        %v1730 = vadd.f32 0.0, %v1729
        %v1731 = vpop.f32.mrf.mxu0
        %v1732 = vadd.f32 0.0, %v1731
        %1733 = vmatmul.bf16.gmra.mxu0 %v1616
        %v1734 = vpop.f32.mrf.mxu0
        %v1735 = vadd.f32 0.0, %v1734
        %v1736 = vpop.f32.mrf.mxu0
        %v1737 = vadd.f32 0.0, %v1736
        %1738 = vmatmul.bf16.gmra.mxu0 %v1619
        %v1739 = vpop.f32.mrf.mxu0
        %v1740 = vadd.f32 0.0, %v1739
        %v1741 = vpop.f32.mrf.mxu0
        %v1742 = vadd.f32 0.0, %v1741
        %1743 = vmatmul.bf16.gmra.mxu0 %v1622
        %v1744 = vpop.f32.mrf.mxu0
        %v1745 = vadd.f32 0.0, %v1744
        %v1746 = vpop.f32.mrf.mxu0
        %v1747 = vadd.f32 0.0, %v1746
        %1748 = vmatmul.bf16.gmra.mxu0 %v1625
        %v1749 = vpop.f32.mrf.mxu0
        %v1750 = vadd.f32 0.0, %v1749
        %v1751 = vpop.f32.mrf.mxu0
        %v1752 = vadd.f32 0.0, %v1751
        %1753 = vmatmul.bf16.gmra.mxu0 %v1628
        %v1754 = vpop.f32.mrf.mxu0
        %v1755 = vadd.f32 0.0, %v1754
        %v1756 = vpop.f32.mrf.mxu0
        %v1757 = vadd.f32 0.0, %v1756
        %1758 = vmatmul.bf16.gmra.mxu0 %v1631
        %v1759 = vpop.f32.mrf.mxu0
        %v1760 = vadd.f32 0.0, %v1759
        %v1761 = vpop.f32.mrf.mxu0
        %v1762 = vadd.f32 0.0, %v1761
        %1763 = vmatmul.bf16.gmra.mxu0 %v1634
        %v1764 = vpop.f32.mrf.mxu0
        %v1765 = vadd.f32 0.0, %v1764
        %v1766 = vpop.f32.mrf.mxu0
        %v1767 = vadd.f32 0.0, %v1766
        %1768 = vmatmul.bf16.gmra.mxu0 %v1637
        %v1769 = vpop.f32.mrf.mxu0
        %v1770 = vadd.f32 0.0, %v1769
        %v1771 = vpop.f32.mrf.mxu0
        %v1772 = vadd.f32 0.0, %v1771
        %1773 = vmatmul.bf16.gmra.mxu0 %v1640
        %v1774 = vpop.f32.mrf.mxu0
        %v1775 = vadd.f32 0.0, %v1774
        %v1776 = vpop.f32.mrf.mxu0
        %v1777 = vadd.f32 0.0, %v1776
        %1778 = vdwg.mxu0
        %1779 = vmatpush.bf16.xpose.msra.mxu0 %v1688
        %1780 = vmatpush.bf16.xpose.msra.mxu0 %v1685
        %1781 = vmatpush.bf16.xpose.msra.mxu0 %v1682
        %1782 = vmatpush.bf16.xpose.msra.mxu0 %v1679
        %1783 = vmatpush.bf16.xpose.msra.mxu0 %v1676
        %1784 = vmatpush.bf16.xpose.msra.mxu0 %v1673
        %1785 = vmatpush.bf16.xpose.msra.mxu0 %v1670
        %1786 = vmatpush.bf16.xpose.msra.mxu0 %v1667
        %1787 = vmatmul.bf16.gmra.mxu0 %v1595
        %v1788 = vpop.f32.mrf.mxu0
        %v1789 = vadd.f32 0.0, %v1788
        %v1790 = vpop.f32.mrf.mxu0
        %v1791 = vadd.f32 0.0, %v1790
        %1792 = vmatmul.bf16.gmra.mxu0 %v1598
        %v1793 = vpop.f32.mrf.mxu0
        %v1794 = vadd.f32 0.0, %v1793
        %v1795 = vpop.f32.mrf.mxu0
        %v1796 = vadd.f32 0.0, %v1795
        %1797 = vmatmul.bf16.gmra.mxu0 %v1601
        %v1798 = vpop.f32.mrf.mxu0
        %v1799 = vadd.f32 0.0, %v1798
        %v1800 = vpop.f32.mrf.mxu0
        %v1801 = vadd.f32 0.0, %v1800
        %1802 = vmatmul.bf16.gmra.mxu0 %v1604
        %v1803 = vpop.f32.mrf.mxu0
        %v1804 = vadd.f32 0.0, %v1803
        %v1805 = vpop.f32.mrf.mxu0
        %v1806 = vadd.f32 0.0, %v1805
        %1807 = vmatmul.bf16.gmra.mxu0 %v1607
        %v1808 = vpop.f32.mrf.mxu0
        %v1809 = vadd.f32 0.0, %v1808
        %v1810 = vpop.f32.mrf.mxu0
        %v1811 = vadd.f32 0.0, %v1810
        %1812 = vmatmul.bf16.gmra.mxu0 %v1610
        %v1813 = vpop.f32.mrf.mxu0
        %v1814 = vadd.f32 0.0, %v1813
        %v1815 = vpop.f32.mrf.mxu0
        %v1816 = vadd.f32 0.0, %v1815
        %1817 = vmatmul.bf16.gmra.mxu0 %v1613
        %v1818 = vpop.f32.mrf.mxu0
        %v1819 = vadd.f32 0.0, %v1818
        %v1820 = vpop.f32.mrf.mxu0
        %v1821 = vadd.f32 0.0, %v1820
        %1822 = vmatmul.bf16.gmra.mxu0 %v1616
        %v1823 = vpop.f32.mrf.mxu0
        %v1824 = vadd.f32 0.0, %v1823
        %v1825 = vpop.f32.mrf.mxu0
        %v1826 = vadd.f32 0.0, %v1825
        %1827 = vmatmul.bf16.gmra.mxu0 %v1619
        %v1828 = vpop.f32.mrf.mxu0
        %v1829 = vadd.f32 0.0, %v1828
        %v1830 = vpop.f32.mrf.mxu0
        %v1831 = vadd.f32 0.0, %v1830
        %1832 = vmatmul.bf16.gmra.mxu0 %v1622
        %v1833 = vpop.f32.mrf.mxu0
        %v1834 = vadd.f32 0.0, %v1833
        %v1835 = vpop.f32.mrf.mxu0
        %v1836 = vadd.f32 0.0, %v1835
        %1837 = vmatmul.bf16.gmra.mxu0 %v1625
        %v1838 = vpop.f32.mrf.mxu0
        %v1839 = vadd.f32 0.0, %v1838
        %v1840 = vpop.f32.mrf.mxu0
        %v1841 = vadd.f32 0.0, %v1840
        %1842 = vmatmul.bf16.gmra.mxu0 %v1628
        %v1843 = vpop.f32.mrf.mxu0
        %v1844 = vadd.f32 0.0, %v1843
        %v1845 = vpop.f32.mrf.mxu0
        %v1846 = vadd.f32 0.0, %v1845
        %1847 = vmatmul.bf16.gmra.mxu0 %v1631
        %v1848 = vpop.f32.mrf.mxu0
        %v1849 = vadd.f32 0.0, %v1848
        %v1850 = vpop.f32.mrf.mxu0
        %v1851 = vadd.f32 0.0, %v1850
        %1852 = vmatmul.bf16.gmra.mxu0 %v1634
        %v1853 = vpop.f32.mrf.mxu0
        %v1854 = vadd.f32 0.0, %v1853
        %v1855 = vpop.f32.mrf.mxu0
        %v1856 = vadd.f32 0.0, %v1855
        %1857 = vmatmul.bf16.gmra.mxu0 %v1637
        %v1858 = vpop.f32.mrf.mxu0
        %v1859 = vadd.f32 0.0, %v1858
        %v1860 = vpop.f32.mrf.mxu0
        %v1861 = vadd.f32 0.0, %v1860
        %1862 = vmatmul.bf16.gmra.mxu0 %v1640
        %v1863 = vpop.f32.mrf.mxu0
        %v1864 = vadd.f32 0.0, %v1863
        %v1865 = vpop.f32.mrf.mxu0
        %v1866 = vadd.f32 0.0, %v1865
        %1867 = vdwg.mxu0
        %v1868 = vmax.f32 %v1700, %v1705
        %v1869 = vmax.f32 %v1702, %v1707
        %v1870 = vmax.f32 %v1868, %v1710
        %v1871 = vmax.f32 %v1869, %v1712
        %v1872 = vmax.f32 %v1870, %v1715
        %v1873 = vmax.f32 %v1871, %v1717
        %v1874 = vmax.f32 %v1872, %v1720
        %v1875 = vmax.f32 %v1873, %v1722
        %v1876 = vmax.f32 %v1874, %v1725
        %v1877 = vmax.f32 %v1875, %v1727
        %v1878 = vmax.f32 %v1876, %v1730
        %v1879 = vmax.f32 %v1877, %v1732
        %v1880 = vmax.f32 %v1878, %v1735
        %v1881 = vmax.f32 %v1879, %v1737
        %v1882 = vmax.f32 %v1880, %v1740
        %v1883 = vmax.f32 %v1881, %v1742
        %v1884 = vmax.f32 %v1882, %v1745
        %v1885 = vmax.f32 %v1883, %v1747
        %v1886 = vmax.f32 %v1884, %v1750
        %v1887 = vmax.f32 %v1885, %v1752
        %v1888 = vmax.f32 %v1886, %v1755
        %v1889 = vmax.f32 %v1887, %v1757
        %v1890 = vmax.f32 %v1888, %v1760
        %v1891 = vmax.f32 %v1889, %v1762
        %v1892 = vmax.f32 %v1890, %v1765
        %v1893 = vmax.f32 %v1891, %v1767
        %v1894 = vmax.f32 %v1892, %v1770
        %v1895 = vmax.f32 %v1893, %v1772
        %v1896 = vmax.f32 %v1894, %v1775
        %v1897 = vmax.f32 %v1895, %v1777
        %v1898 = vmax.f32 %v1896, %v1897
        %v1899 = vrot.slane %v1898, 4
        %v1900 = vmax.f32 %v1898, %v1899
        %v1901 = vrot.slane %v1900, 2
        %v1902 = vmax.f32 %v1900, %v1901
        %v1903 = vrot.slane %v1902, 1
        %v1904 = vmax.f32 %v1902, %v1903
        %v1905 = vmax.f32 %v1789, %v1794
        %v1906 = vmax.f32 %v1791, %v1796
        %v1907 = vmax.f32 %v1905, %v1799
        %v1908 = vmax.f32 %v1906, %v1801
        %v1909 = vmax.f32 %v1907, %v1804
        %v1910 = vmax.f32 %v1908, %v1806
        %v1911 = vmax.f32 %v1909, %v1809
        %v1912 = vmax.f32 %v1910, %v1811
        %v1913 = vmax.f32 %v1911, %v1814
        %v1914 = vmax.f32 %v1912, %v1816
        %v1915 = vmax.f32 %v1913, %v1819
        %v1916 = vmax.f32 %v1914, %v1821
        %v1917 = vmax.f32 %v1915, %v1824
        %v1918 = vmax.f32 %v1916, %v1826
        %v1919 = vmax.f32 %v1917, %v1829
        %v1920 = vmax.f32 %v1918, %v1831
        %v1921 = vmax.f32 %v1919, %v1834
        %v1922 = vmax.f32 %v1920, %v1836
        %v1923 = vmax.f32 %v1921, %v1839
        %v1924 = vmax.f32 %v1922, %v1841
        %v1925 = vmax.f32 %v1923, %v1844
        %v1926 = vmax.f32 %v1924, %v1846
        %v1927 = vmax.f32 %v1925, %v1849
        %v1928 = vmax.f32 %v1926, %v1851
        %v1929 = vmax.f32 %v1927, %v1854
        %v1930 = vmax.f32 %v1928, %v1856
        %v1931 = vmax.f32 %v1929, %v1859
        %v1932 = vmax.f32 %v1930, %v1861
        %v1933 = vmax.f32 %v1931, %v1864
        %v1934 = vmax.f32 %v1932, %v1866
        %v1935 = vmax.f32 %v1933, %v1934
        %v1936 = vrot.slane %v1935, 4
        %v1937 = vmax.f32 %v1935, %v1936
        %v1938 = vrot.slane %v1937, 2
        %v1939 = vmax.f32 %v1937, %v1938
        %v1940 = vrot.slane %v1939, 1
        %v1941 = vmax.f32 %v1939, %v1940
        %v1942 = vsub.f32 %v1700, %v1904
        %v1943 = vsub.f32 %v1789, %v1941
        %v1944 = vsub.f32 %v1702, %v1904
        %v1945 = vsub.f32 %v1791, %v1941
        %v1946 = vsub.f32 %v1705, %v1904
        %v1947 = vsub.f32 %v1794, %v1941
        %v1948 = vsub.f32 %v1707, %v1904
        %v1949 = vsub.f32 %v1796, %v1941
        %v1950 = vsub.f32 %v1710, %v1904
        %v1951 = vsub.f32 %v1799, %v1941
        %v1952 = vsub.f32 %v1712, %v1904
        %v1953 = vsub.f32 %v1801, %v1941
        %v1954 = vsub.f32 %v1715, %v1904
        %v1955 = vsub.f32 %v1804, %v1941
        %v1956 = vsub.f32 %v1717, %v1904
        %v1957 = vsub.f32 %v1806, %v1941
        %v1958 = vsub.f32 %v1720, %v1904
        %v1959 = vsub.f32 %v1809, %v1941
        %v1960 = vsub.f32 %v1722, %v1904
        %v1961 = vsub.f32 %v1811, %v1941
        %v1962 = vsub.f32 %v1725, %v1904
        %v1963 = vsub.f32 %v1814, %v1941
        %v1964 = vsub.f32 %v1727, %v1904
        %v1965 = vsub.f32 %v1816, %v1941
        %v1966 = vsub.f32 %v1730, %v1904
        %v1967 = vsub.f32 %v1819, %v1941
        %v1968 = vsub.f32 %v1732, %v1904
        %v1969 = vsub.f32 %v1821, %v1941
        %v1970 = vsub.f32 %v1735, %v1904
        %v1971 = vsub.f32 %v1824, %v1941
        %v1972 = vsub.f32 %v1737, %v1904
        %v1973 = vsub.f32 %v1826, %v1941
        %v1974 = vsub.f32 %v1740, %v1904
        %v1975 = vsub.f32 %v1829, %v1941
        %v1976 = vsub.f32 %v1742, %v1904
        %v1977 = vsub.f32 %v1831, %v1941
        %v1978 = vsub.f32 %v1745, %v1904
        %v1979 = vsub.f32 %v1834, %v1941
        %v1980 = vsub.f32 %v1747, %v1904
        %v1981 = vsub.f32 %v1836, %v1941
        %v1982 = vsub.f32 %v1750, %v1904
        %v1983 = vsub.f32 %v1839, %v1941
        %v1984 = vsub.f32 %v1752, %v1904
        %v1985 = vsub.f32 %v1841, %v1941
        %v1986 = vsub.f32 %v1755, %v1904
        %v1987 = vsub.f32 %v1844, %v1941
        %v1988 = vsub.f32 %v1757, %v1904
        %v1989 = vsub.f32 %v1846, %v1941
        %v1990 = vsub.f32 %v1760, %v1904
        %v1991 = vsub.f32 %v1849, %v1941
        %v1992 = vsub.f32 %v1762, %v1904
        %v1993 = vsub.f32 %v1851, %v1941
        %v1994 = vsub.f32 %v1765, %v1904
        %v1995 = vsub.f32 %v1854, %v1941
        %v1996 = vsub.f32 %v1767, %v1904
        %v1997 = vsub.f32 %v1856, %v1941
        %v1998 = vsub.f32 %v1770, %v1904
        %v1999 = vsub.f32 %v1859, %v1941
        %v2000 = vsub.f32 %v1772, %v1904
        %v2001 = vsub.f32 %v1861, %v1941
        %v2002 = vsub.f32 %v1775, %v1904
        %v2003 = vsub.f32 %v1864, %v1941
        %v2004 = vsub.f32 %v1777, %v1904
        %v2005 = vsub.f32 %v1866, %v1941
        %v2006 = vmul.f32 %v1942, 1.442695
        %v2007 = vpow.pop %v2006
        %v2008 = vmul.f32 %v1943, 1.442695
        %v2009 = vpow.pop %v2008
        %v2010 = vmul.f32 %v1944, 1.442695
        %v2011 = vpow.pop %v2010
        %v2012 = vmul.f32 %v1945, 1.442695
        %v2013 = vpow.pop %v2012
        %v2014 = vmul.f32 %v1946, 1.442695
        %v2015 = vpow.pop %v2014
        %v2016 = vmul.f32 %v1947, 1.442695
        %v2017 = vpow.pop %v2016
        %v2018 = vmul.f32 %v1948, 1.442695
        %v2019 = vpow.pop %v2018
        %v2020 = vmul.f32 %v1949, 1.442695
        %v2021 = vpow.pop %v2020
        %v2022 = vmul.f32 %v1950, 1.442695
        %v2023 = vpow.pop %v2022
        %v2024 = vmul.f32 %v1951, 1.442695
        %v2025 = vpow.pop %v2024
        %v2026 = vmul.f32 %v1952, 1.442695
        %v2027 = vpow.pop %v2026
        %v2028 = vmul.f32 %v1953, 1.442695
        %v2029 = vpow.pop %v2028
        %v2030 = vmul.f32 %v1954, 1.442695
        %v2031 = vpow.pop %v2030
        %v2032 = vmul.f32 %v1955, 1.442695
        %v2033 = vpow.pop %v2032
        %v2034 = vmul.f32 %v1956, 1.442695
        %v2035 = vpow.pop %v2034
        %v2036 = vmul.f32 %v1957, 1.442695
        %v2037 = vpow.pop %v2036
        %v2038 = vmul.f32 %v1958, 1.442695
        %v2039 = vpow.pop %v2038
        %v2040 = vmul.f32 %v1959, 1.442695
        %v2041 = vpow.pop %v2040
        %v2042 = vmul.f32 %v1960, 1.442695
        %v2043 = vpow.pop %v2042
        %v2044 = vmul.f32 %v1961, 1.442695
        %v2045 = vpow.pop %v2044
        %v2046 = vmul.f32 %v1962, 1.442695
        %v2047 = vpow.pop %v2046
        %v2048 = vmul.f32 %v1963, 1.442695
        %v2049 = vpow.pop %v2048
        %v2050 = vmul.f32 %v1964, 1.442695
        %v2051 = vpow.pop %v2050
        %v2052 = vmul.f32 %v1965, 1.442695
        %v2053 = vpow.pop %v2052
        %v2054 = vmul.f32 %v1966, 1.442695
        %v2055 = vpow.pop %v2054
        %v2056 = vmul.f32 %v1967, 1.442695
        %v2057 = vpow.pop %v2056
        %v2058 = vmul.f32 %v1968, 1.442695
        %v2059 = vpow.pop %v2058
        %v2060 = vmul.f32 %v1969, 1.442695
        %v2061 = vpow.pop %v2060
        %v2062 = vmul.f32 %v1970, 1.442695
        %v2063 = vpow.pop %v2062
        %v2064 = vmul.f32 %v1971, 1.442695
        %v2065 = vpow.pop %v2064
        %v2066 = vmul.f32 %v1972, 1.442695
        %v2067 = vpow.pop %v2066
        %v2068 = vmul.f32 %v1973, 1.442695
        %v2069 = vpow.pop %v2068
        %v2070 = vmul.f32 %v1974, 1.442695
        %v2071 = vpow.pop %v2070
        %v2072 = vmul.f32 %v1975, 1.442695
        %v2073 = vpow.pop %v2072
        %v2074 = vmul.f32 %v1976, 1.442695
        %v2075 = vpow.pop %v2074
        %v2076 = vmul.f32 %v1977, 1.442695
        %v2077 = vpow.pop %v2076
        %v2078 = vmul.f32 %v1978, 1.442695
        %v2079 = vpow.pop %v2078
        %v2080 = vmul.f32 %v1979, 1.442695
        %v2081 = vpow.pop %v2080
        %v2082 = vmul.f32 %v1980, 1.442695
        %v2083 = vpow.pop %v2082
        %v2084 = vmul.f32 %v1981, 1.442695
        %v2085 = vpow.pop %v2084
        %v2086 = vmul.f32 %v1982, 1.442695
        %v2087 = vpow.pop %v2086
        %v2088 = vmul.f32 %v1983, 1.442695
        %v2089 = vpow.pop %v2088
        %v2090 = vmul.f32 %v1984, 1.442695
        %v2091 = vpow.pop %v2090
        %v2092 = vmul.f32 %v1985, 1.442695
        %v2093 = vpow.pop %v2092
        %v2094 = vmul.f32 %v1986, 1.442695
        %v2095 = vpow.pop %v2094
        %v2096 = vmul.f32 %v1987, 1.442695
        %v2097 = vpow.pop %v2096
        %v2098 = vmul.f32 %v1988, 1.442695
        %v2099 = vpow.pop %v2098
        %v2100 = vmul.f32 %v1989, 1.442695
        %v2101 = vpow.pop %v2100
        %v2102 = vmul.f32 %v1990, 1.442695
        %v2103 = vpow.pop %v2102
        %v2104 = vmul.f32 %v1991, 1.442695
        %v2105 = vpow.pop %v2104
        %v2106 = vmul.f32 %v1992, 1.442695
        %v2107 = vpow.pop %v2106
        %v2108 = vmul.f32 %v1993, 1.442695
        %v2109 = vpow.pop %v2108
        %v2110 = vmul.f32 %v1994, 1.442695
        %v2111 = vpow.pop %v2110
        %v2112 = vmul.f32 %v1995, 1.442695
        %v2113 = vpow.pop %v2112
        %v2114 = vmul.f32 %v1996, 1.442695
        %v2115 = vpow.pop %v2114
        %v2116 = vmul.f32 %v1997, 1.442695
        %v2117 = vpow.pop %v2116
        %v2118 = vmul.f32 %v1998, 1.442695
        %v2119 = vpow.pop %v2118
        %v2120 = vmul.f32 %v1999, 1.442695
        %v2121 = vpow.pop %v2120
        %v2122 = vmul.f32 %v2000, 1.442695
        %v2123 = vpow.pop %v2122
        %v2124 = vmul.f32 %v2001, 1.442695
        %v2125 = vpow.pop %v2124
        %v2126 = vmul.f32 %v2002, 1.442695
        %v2127 = vpow.pop %v2126
        %v2128 = vmul.f32 %v2003, 1.442695
        %v2129 = vpow.pop %v2128
        %v2130 = vmul.f32 %v2004, 1.442695
        %v2131 = vpow.pop %v2130
        %v2132 = vmul.f32 %v2005, 1.442695
        %v2133 = vpow.pop %v2132
        %v2134 = vadd.f32 %v2007, %v2011
        %v2135 = vadd.f32 %v2134, %v2015
        %v2136 = vadd.f32 %v2135, %v2019
        %v2137 = vadd.f32 %v2136, %v2023
        %v2138 = vadd.f32 %v2137, %v2027
        %v2139 = vadd.f32 %v2138, %v2031
        %v2140 = vadd.f32 %v2139, %v2035
        %v2141 = vadd.f32 %v2140, %v2039
        %v2142 = vadd.f32 %v2141, %v2043
        %v2143 = vadd.f32 %v2142, %v2047
        %v2144 = vadd.f32 %v2143, %v2051
        %v2145 = vadd.f32 %v2144, %v2055
        %v2146 = vadd.f32 %v2145, %v2059
        %v2147 = vadd.f32 %v2146, %v2063
        %v2148 = vadd.f32 %v2147, %v2067
        %v2149 = vadd.f32 %v2148, %v2071
        %v2150 = vadd.f32 %v2149, %v2075
        %v2151 = vadd.f32 %v2150, %v2079
        %v2152 = vadd.f32 %v2151, %v2083
        %v2153 = vadd.f32 %v2152, %v2087
        %v2154 = vadd.f32 %v2153, %v2091
        %v2155 = vadd.f32 %v2154, %v2095
        %v2156 = vadd.f32 %v2155, %v2099
        %v2157 = vadd.f32 %v2156, %v2103
        %v2158 = vadd.f32 %v2157, %v2107
        %v2159 = vadd.f32 %v2158, %v2111
        %v2160 = vadd.f32 %v2159, %v2115
        %v2161 = vadd.f32 %v2160, %v2119
        %v2162 = vadd.f32 %v2161, %v2123
        %v2163 = vadd.f32 %v2162, %v2127
        %v2164 = vadd.f32 %v2163, %v2131
        %v2165 = vrot.slane %v2164, 4
        %v2166 = vadd.f32 %v2164, %v2165
        %v2167 = vrot.slane %v2166, 2
        %v2168 = vadd.f32 %v2166, %v2167
        %v2169 = vrot.slane %v2168, 1
        %v2170 = vadd.f32 %v2168, %v2169
        %v2171 = vadd.f32 %v2009, %v2013
        %v2172 = vadd.f32 %v2171, %v2017
        %v2173 = vadd.f32 %v2172, %v2021
        %v2174 = vadd.f32 %v2173, %v2025
        %v2175 = vadd.f32 %v2174, %v2029
        %v2176 = vadd.f32 %v2175, %v2033
        %v2177 = vadd.f32 %v2176, %v2037
        %v2178 = vadd.f32 %v2177, %v2041
        %v2179 = vadd.f32 %v2178, %v2045
        %v2180 = vadd.f32 %v2179, %v2049
        %v2181 = vadd.f32 %v2180, %v2053
        %v2182 = vadd.f32 %v2181, %v2057
        %v2183 = vadd.f32 %v2182, %v2061
        %v2184 = vadd.f32 %v2183, %v2065
        %v2185 = vadd.f32 %v2184, %v2069
        %v2186 = vadd.f32 %v2185, %v2073
        %v2187 = vadd.f32 %v2186, %v2077
        %v2188 = vadd.f32 %v2187, %v2081
        %v2189 = vadd.f32 %v2188, %v2085
        %v2190 = vadd.f32 %v2189, %v2089
        %v2191 = vadd.f32 %v2190, %v2093
        %v2192 = vadd.f32 %v2191, %v2097
        %v2193 = vadd.f32 %v2192, %v2101
        %v2194 = vadd.f32 %v2193, %v2105
        %v2195 = vadd.f32 %v2194, %v2109
        %v2196 = vadd.f32 %v2195, %v2113
        %v2197 = vadd.f32 %v2196, %v2117
        %v2198 = vadd.f32 %v2197, %v2121
        %v2199 = vadd.f32 %v2198, %v2125
        %v2200 = vadd.f32 %v2199, %v2129
        %v2201 = vadd.f32 %v2200, %v2133
        %v2202 = vrot.slane %v2201, 4
        %v2203 = vadd.f32 %v2201, %v2202
        %v2204 = vrot.slane %v2203, 2
        %v2205 = vadd.f32 %v2203, %v2204
        %v2206 = vrot.slane %v2205, 1
        %v2207 = vadd.f32 %v2205, %v2206
        %v2208 = vrcp.pop %v2170
        %v2209 = vmul.f32 %v2170, %v2208
        %v2210 = vsub.f32 1.0, %v2209
        %v2211 = vmul.f32 %v2208, %v2210
        %v2212 = vadd.f32 %v2208, %v2211
        %vm2213 = vweird.f32 %v2170
        %vm2214 = vweird.f32 %v2208
        %vm2215 = vmor %vm2213, %vm2214
        %v2216 = vsel %vm2215, %v2208, %v2212
        %v2217 = vand.u32 2147483647, %v2170
        %vm2218 = vcmp.eq.f32.partialorder %v2217, 8.507059e+37
        %v2219 = vand.u32 %v2170, 2147483648
        %v2220 = vor.u32 1.1754944e-38, %v2219
        %v2221 = vsel %vm2218, %v2220, %v2216
        %v2222 = vrcp.pop %v2207
        %v2223 = vmul.f32 %v2207, %v2222
        %v2224 = vsub.f32 1.0, %v2223
        %v2225 = vmul.f32 %v2222, %v2224
        %v2226 = vadd.f32 %v2222, %v2225
        %vm2227 = vweird.f32 %v2207
        %vm2228 = vweird.f32 %v2222
        %vm2229 = vmor %vm2227, %vm2228
        %v2230 = vsel %vm2229, %v2222, %v2226
        %v2231 = vand.u32 2147483647, %v2207
        %vm2232 = vcmp.eq.f32.partialorder %v2231, 8.507059e+37
        %v2233 = vand.u32 %v2207, 2147483648
        %v2234 = vor.u32 1.1754944e-38, %v2233
        %v2235 = vsel %vm2232, %v2234, %v2230
        %v2236 = vld [vmem:[#allocation3] sm:$0xf]
        %v2237 = vld [vmem:[#allocation3 + $0x4] sm:$0xf]
        %v2238 = vld [vmem:[#allocation3 + $0x8] sm:$0xf]
        %v2239 = vld [vmem:[#allocation3 + $0xc] sm:$0xf]
        %v2240 = vld [vmem:[#allocation3 + $0x10] sm:$0xf]
        %v2241 = vld [vmem:[#allocation3 + $0x14] sm:$0xf]
        %v2242 = vld [vmem:[#allocation3 + $0x18] sm:$0xf]
        %v2243 = vld [vmem:[#allocation3 + $0x1c] sm:$0xf]
        %v2244 = vld [vmem:[#allocation3 + $0x20] sm:$0xf]
        %v2245 = vld [vmem:[#allocation3 + $0x24] sm:$0xf]
        %v2246 = vld [vmem:[#allocation3 + $0x28] sm:$0xf]
        %v2247 = vld [vmem:[#allocation3 + $0x2c] sm:$0xf]
        %v2248 = vld [vmem:[#allocation3 + $0x30] sm:$0xf]
        %v2249 = vld [vmem:[#allocation3 + $0x34] sm:$0xf]
        %v2250 = vld [vmem:[#allocation3 + $0x38] sm:$0xf]
        %v2251 = vld [vmem:[#allocation3 + $0x3c] sm:$0xf]
        %v2252 = vld [vmem:[#allocation3 + $0x40] sm:$0xf]
        %v2253 = vld [vmem:[#allocation3 + $0x44] sm:$0xf]
        %v2254 = vld [vmem:[#allocation3 + $0x48] sm:$0xf]
        %v2255 = vld [vmem:[#allocation3 + $0x4c] sm:$0xf]
        %v2256 = vld [vmem:[#allocation3 + $0x50] sm:$0xf]
        %v2257 = vld [vmem:[#allocation3 + $0x54] sm:$0xf]
        %v2258 = vld [vmem:[#allocation3 + $0x58] sm:$0xf]
        %v2259 = vld [vmem:[#allocation3 + $0x5c] sm:$0xf]
        %v2260 = vld [vmem:[#allocation3 + $0x60] sm:$0xf]
        %v2261 = vld [vmem:[#allocation3 + $0x64] sm:$0xf]
        %v2262 = vld [vmem:[#allocation3 + $0x68] sm:$0xf]
        %v2263 = vld [vmem:[#allocation3 + $0x6c] sm:$0xf]
        %v2264 = vld [vmem:[#allocation3 + $0x70] sm:$0xf]
        %v2265 = vld [vmem:[#allocation3 + $0x74] sm:$0xf]
        %v2266 = vld [vmem:[#allocation3 + $0x78] sm:$0xf]
        %v2267 = vld [vmem:[#allocation3 + $0x7c] sm:$0xf]
        %v2268 = vpack.c.bf16 %v2011, %v2007
        %v2269 = vpack.c.bf16 %v2013, %v2009
        %v2270 = vpack.c.bf16 %v2019, %v2015
        %v2271 = vpack.c.bf16 %v2021, %v2017
        %v2272 = vpack.c.bf16 %v2027, %v2023
        %v2273 = vpack.c.bf16 %v2029, %v2025
        %v2274 = vpack.c.bf16 %v2035, %v2031
        %v2275 = vpack.c.bf16 %v2037, %v2033
        %v2276 = vpack.c.bf16 %v2043, %v2039
        %v2277 = vpack.c.bf16 %v2045, %v2041
        %v2278 = vpack.c.bf16 %v2051, %v2047
        %v2279 = vpack.c.bf16 %v2053, %v2049
        %v2280 = vpack.c.bf16 %v2059, %v2055
        %v2281 = vpack.c.bf16 %v2061, %v2057
        %v2282 = vpack.c.bf16 %v2067, %v2063
        %v2283 = vpack.c.bf16 %v2069, %v2065
        %v2284 = vpack.c.bf16 %v2075, %v2071
        %v2285 = vpack.c.bf16 %v2077, %v2073
        %v2286 = vpack.c.bf16 %v2083, %v2079
        %v2287 = vpack.c.bf16 %v2085, %v2081
        %v2288 = vpack.c.bf16 %v2091, %v2087
        %v2289 = vpack.c.bf16 %v2093, %v2089
        %v2290 = vpack.c.bf16 %v2099, %v2095
        %v2291 = vpack.c.bf16 %v2101, %v2097
        %v2292 = vpack.c.bf16 %v2107, %v2103
        %v2293 = vpack.c.bf16 %v2109, %v2105
        %v2294 = vpack.c.bf16 %v2115, %v2111
        %v2295 = vpack.c.bf16 %v2117, %v2113
        %v2296 = vpack.c.bf16 %v2123, %v2119
        %v2297 = vpack.c.bf16 %v2125, %v2121
        %v2298 = vpack.c.bf16 %v2131, %v2127
        %v2299 = vpack.c.bf16 %v2133, %v2129
        %v2332 = vunpack.c.l.b16 %v2236
        %v2333 = vunpack.c.l.b16 %v2237
        %v2334 = vunpack.c.l.b16 %v2238
        %v2335 = vunpack.c.l.b16 %v2239
        %v2336 = vunpack.c.l.b16 %v2240
        %v2337 = vunpack.c.l.b16 %v2241
        %v2338 = vunpack.c.l.b16 %v2242
        %v2339 = vunpack.c.l.b16 %v2243
        %v2340 = vunpack.c.l.b16 %v2244
        %v2341 = vunpack.c.l.b16 %v2245
        %v2342 = vunpack.c.l.b16 %v2246
        %v2343 = vunpack.c.l.b16 %v2247
        %v2344 = vunpack.c.l.b16 %v2248
        %v2345 = vunpack.c.l.b16 %v2249
        %v2346 = vunpack.c.l.b16 %v2250
        %v2347 = vunpack.c.l.b16 %v2251
        %v2348 = vunpack.c.l.b16 %v2252
        %v2349 = vunpack.c.l.b16 %v2253
        %v2350 = vunpack.c.l.b16 %v2254
        %v2351 = vunpack.c.l.b16 %v2255
        %v2352 = vunpack.c.l.b16 %v2256
        %v2353 = vunpack.c.l.b16 %v2257
        %v2354 = vunpack.c.l.b16 %v2258
        %v2355 = vunpack.c.l.b16 %v2259
        %v2356 = vunpack.c.l.b16 %v2260
        %v2357 = vunpack.c.l.b16 %v2261
        %v2358 = vunpack.c.l.b16 %v2262
        %v2359 = vunpack.c.l.b16 %v2263
        %v2360 = vunpack.c.l.b16 %v2264
        %v2361 = vunpack.c.l.b16 %v2265
        %v2362 = vunpack.c.l.b16 %v2266
        %v2363 = vunpack.c.l.b16 %v2267
        %v2364 = vpack.c.b16 %v2333, %v2332
        %v2365 = vpack.c.b16 %v2335, %v2334
        %v2366 = vpack.c.b16 %v2337, %v2336
        %v2367 = vpack.c.b16 %v2339, %v2338
        %v2368 = vpack.c.b16 %v2341, %v2340
        %v2369 = vpack.c.b16 %v2343, %v2342
        %v2370 = vpack.c.b16 %v2345, %v2344
        %v2371 = vpack.c.b16 %v2347, %v2346
        %v2372 = vpack.c.b16 %v2349, %v2348
        %v2373 = vpack.c.b16 %v2351, %v2350
        %v2374 = vpack.c.b16 %v2353, %v2352
        %v2375 = vpack.c.b16 %v2355, %v2354
        %v2376 = vpack.c.b16 %v2357, %v2356
        %v2377 = vpack.c.b16 %v2359, %v2358
        %v2378 = vpack.c.b16 %v2361, %v2360
        %v2379 = vpack.c.b16 %v2363, %v2362
        %2396 = vxpose.xlu0.c.b16.start [1/8] %v2364, 128
        %2397 = vxpose.xlu0.c.b16.cont [2/8] %v2365, 128
        %2398 = vxpose.xlu0.c.b16.cont [3/8] %v2366, 128
        %2399 = vxpose.xlu0.c.b16.cont [4/8] %v2367, 128
        %2400 = vxpose.xlu0.c.b16.cont [5/8] %v2368, 128
        %2401 = vxpose.xlu0.c.b16.cont [6/8] %v2369, 128
        %2402 = vxpose.xlu0.c.b16.cont [7/8] %v2370, 128
        %2403 = vxpose.xlu0.c.b16.end [8/8] %v2371, 128
        %v2404 = vpop.trf.xlu0
        %v2405 = vpop.trf.xlu0
        %v2406 = vpop.trf.xlu0
        %v2407 = vpop.trf.xlu0
        %v2408 = vpop.trf.xlu0
        %v2409 = vpop.trf.xlu0
        %v2410 = vpop.trf.xlu0
        %v2411 = vpop.trf.xlu0
        %2412 = vxpose.xlu0.c.b16.start [1/8] %v2372, 128
        %2413 = vxpose.xlu0.c.b16.cont [2/8] %v2373, 128
        %2414 = vxpose.xlu0.c.b16.cont [3/8] %v2374, 128
        %2415 = vxpose.xlu0.c.b16.cont [4/8] %v2375, 128
        %2416 = vxpose.xlu0.c.b16.cont [5/8] %v2376, 128
        %2417 = vxpose.xlu0.c.b16.cont [6/8] %v2377, 128
        %2418 = vxpose.xlu0.c.b16.cont [7/8] %v2378, 128
        %2419 = vxpose.xlu0.c.b16.end [8/8] %v2379, 128
        %v2420 = vpop.trf.xlu0
        %v2421 = vpop.trf.xlu0
        %v2422 = vpop.trf.xlu0
        %v2423 = vpop.trf.xlu0
        %v2424 = vpop.trf.xlu0
        %v2425 = vpop.trf.xlu0
        %v2426 = vpop.trf.xlu0
        %v2427 = vpop.trf.xlu0
        %2428 = vmatpush.bf16.msra.mxu0 %v2282
        %2429 = vmatpush.bf16.msra.mxu0 %v2280
        %2430 = vmatpush.bf16.msra.mxu0 %v2278
        %2431 = vmatpush.bf16.msra.mxu0 %v2276
        %2432 = vmatpush.bf16.msra.mxu0 %v2274
        %2433 = vmatpush.bf16.msra.mxu0 %v2272
        %2434 = vmatpush.bf16.msra.mxu0 %v2270
        %2435 = vmatpush.bf16.msra.mxu0 %v2268
        %2436 = vmatmul.bf16.gmra.mxu0 %v2404
        %v2437 = vpop.f32.mrf.mxu0
        %v2438 = vadd.f32 0.0, %v2437
        %v2439 = vpop.f32.mrf.mxu0
        %v2440 = vadd.f32 0.0, %v2439
        %2441 = vmatmul.bf16.gmra.mxu0 %v2405
        %v2442 = vpop.f32.mrf.mxu0
        %v2443 = vadd.f32 0.0, %v2442
        %v2444 = vpop.f32.mrf.mxu0
        %v2445 = vadd.f32 0.0, %v2444
        %2446 = vdwg.mxu0
        %2447 = vmatpush.bf16.msra.mxu0 %v2298
        %2448 = vmatpush.bf16.msra.mxu0 %v2296
        %2449 = vmatpush.bf16.msra.mxu0 %v2294
        %2450 = vmatpush.bf16.msra.mxu0 %v2292
        %2451 = vmatpush.bf16.msra.mxu0 %v2290
        %2452 = vmatpush.bf16.msra.mxu0 %v2288
        %2453 = vmatpush.bf16.msra.mxu0 %v2286
        %2454 = vmatpush.bf16.msra.mxu0 %v2284
        %2455 = vmatmul.bf16.gmra.mxu0 %v2420
        %v2456 = vpop.f32.mrf.mxu0
        %v2457 = vadd.f32 %v2438, %v2456
        %v2458 = vpop.f32.mrf.mxu0
        %v2459 = vadd.f32 %v2440, %v2458
        %2460 = vmatmul.bf16.gmra.mxu0 %v2421
        %v2461 = vpop.f32.mrf.mxu0
        %v2462 = vadd.f32 %v2443, %v2461
        %v2463 = vpop.f32.mrf.mxu0
        %v2464 = vadd.f32 %v2445, %v2463
        %2465 = vdwg.mxu0
        %2466 = vmatpush.bf16.msra.mxu0 %v2283
        %2467 = vmatpush.bf16.msra.mxu0 %v2281
        %2468 = vmatpush.bf16.msra.mxu0 %v2279
        %2469 = vmatpush.bf16.msra.mxu0 %v2277
        %2470 = vmatpush.bf16.msra.mxu0 %v2275
        %2471 = vmatpush.bf16.msra.mxu0 %v2273
        %2472 = vmatpush.bf16.msra.mxu0 %v2271
        %2473 = vmatpush.bf16.msra.mxu0 %v2269
        %2474 = vmatmul.bf16.gmra.mxu0 %v2404
        %v2475 = vpop.f32.mrf.mxu0
        %v2476 = vadd.f32 0.0, %v2475
        %v2477 = vpop.f32.mrf.mxu0
        %v2478 = vadd.f32 0.0, %v2477
        %2479 = vmatmul.bf16.gmra.mxu0 %v2405
        %v2480 = vpop.f32.mrf.mxu0
        %v2481 = vadd.f32 0.0, %v2480
        %v2482 = vpop.f32.mrf.mxu0
        %v2483 = vadd.f32 0.0, %v2482
        %2484 = vdwg.mxu0
        %2485 = vmatpush.bf16.msra.mxu0 %v2299
        %2486 = vmatpush.bf16.msra.mxu0 %v2297
        %2487 = vmatpush.bf16.msra.mxu0 %v2295
        %2488 = vmatpush.bf16.msra.mxu0 %v2293
        %2489 = vmatpush.bf16.msra.mxu0 %v2291
        %2490 = vmatpush.bf16.msra.mxu0 %v2289
        %2491 = vmatpush.bf16.msra.mxu0 %v2287
        %2492 = vmatpush.bf16.msra.mxu0 %v2285
        %2493 = vmatmul.bf16.gmra.mxu0 %v2420
        %v2494 = vpop.f32.mrf.mxu0
        %v2495 = vadd.f32 %v2476, %v2494
        %v2496 = vpop.f32.mrf.mxu0
        %v2497 = vadd.f32 %v2478, %v2496
        %2498 = vmatmul.bf16.gmra.mxu0 %v2421
        %v2499 = vpop.f32.mrf.mxu0
        %v2500 = vadd.f32 %v2481, %v2499
        %v2501 = vpop.f32.mrf.mxu0
        %v2502 = vadd.f32 %v2483, %v2501
        %2503 = vdwg.mxu0
        %v2504 = vmul.f32 %v2457, %v2221
        %v2505 = vmul.f32 %v2495, %v2235
        %v2506 = vmul.f32 %v2459, %v2221
        %v2507 = vmul.f32 %v2497, %v2235
        %v2508 = vmul.f32 %v2462, %v2221
        %v2509 = vmul.f32 %v2500, %v2235
        %v2510 = vmul.f32 %v2464, %v2221
        %v2511 = vmul.f32 %v2502, %v2235
        %2512 = vst [vmem:[%s204] sm:$0xff] %v2504
        %2513 = vst [vmem:[%s204 + $0x8] sm:$0xff] %v2505
        %2514 = vst [vmem:[%s204 + $0x10] sm:$0xff] %v2506
        %2515 = vst [vmem:[%s204 + $0x18] sm:$0xff] %v2507
        %2516 = vst [vmem:[%s204 + $0x20] sm:$0xff] %v2508
        %2517 = vst [vmem:[%s204 + $0x28] sm:$0xff] %v2509
        %2518 = vst [vmem:[%s204 + $0x30] sm:$0xff] %v2510
        %2519 = vst [vmem:[%s204 + $0x38] sm:$0xff] %v2511
        %v2520 = vld [vmem:[#allocation2] sm:$0xf]
        %v2521 = vld [vmem:[#allocation2 + $0x4] sm:$0xf]
        %v2522 = vld [vmem:[#allocation2 + $0x8] sm:$0xf]
        %v2523 = vld [vmem:[#allocation2 + $0xc] sm:$0xf]
        %v2524 = vld [vmem:[#allocation2 + $0x10] sm:$0xf]
        %v2525 = vld [vmem:[#allocation2 + $0x14] sm:$0xf]
        %v2526 = vld [vmem:[#allocation2 + $0x18] sm:$0xf]
        %v2527 = vld [vmem:[#allocation2 + $0x1c] sm:$0xf]
        %v2528 = vld [vmem:[#allocation2 + $0x20] sm:$0xf]
        %v2529 = vld [vmem:[#allocation2 + $0x24] sm:$0xf]
        %v2530 = vld [vmem:[#allocation2 + $0x28] sm:$0xf]
        %v2531 = vld [vmem:[#allocation2 + $0x2c] sm:$0xf]
        %v2532 = vld [vmem:[#allocation2 + $0x30] sm:$0xf]
        %v2533 = vld [vmem:[#allocation2 + $0x34] sm:$0xf]
        %v2534 = vld [vmem:[#allocation2 + $0x38] sm:$0xf]
        %v2535 = vld [vmem:[#allocation2 + $0x3c] sm:$0xf]
        %v2536 = vld [vmem:[#allocation2 + $0x40] sm:$0xf]
        %v2537 = vld [vmem:[#allocation2 + $0x44] sm:$0xf]
        %v2538 = vld [vmem:[#allocation2 + $0x48] sm:$0xf]
        %v2539 = vld [vmem:[#allocation2 + $0x4c] sm:$0xf]
        %v2540 = vld [vmem:[#allocation2 + $0x50] sm:$0xf]
        %v2541 = vld [vmem:[#allocation2 + $0x54] sm:$0xf]
        %v2542 = vld [vmem:[#allocation2 + $0x58] sm:$0xf]
        %v2543 = vld [vmem:[#allocation2 + $0x5c] sm:$0xf]
        %v2544 = vld [vmem:[#allocation2 + $0x60] sm:$0xf]
        %v2545 = vld [vmem:[#allocation2 + $0x64] sm:$0xf]
        %v2546 = vld [vmem:[#allocation2 + $0x68] sm:$0xf]
        %v2547 = vld [vmem:[#allocation2 + $0x6c] sm:$0xf]
        %v2548 = vld [vmem:[#allocation2 + $0x70] sm:$0xf]
        %v2549 = vld [vmem:[#allocation2 + $0x74] sm:$0xf]
        %v2550 = vld [vmem:[#allocation2 + $0x78] sm:$0xf]
        %v2551 = vld [vmem:[#allocation2 + $0x7c] sm:$0xf]
        %v2584 = vunpack.c.l.b16 %v2520
        %v2585 = vunpack.c.l.b16 %v2521
        %v2586 = vunpack.c.l.b16 %v2522
        %v2587 = vunpack.c.l.b16 %v2523
        %v2588 = vunpack.c.l.b16 %v2524
        %v2589 = vunpack.c.l.b16 %v2525
        %v2590 = vunpack.c.l.b16 %v2526
        %v2591 = vunpack.c.l.b16 %v2527
        %v2592 = vunpack.c.l.b16 %v2528
        %v2593 = vunpack.c.l.b16 %v2529
        %v2594 = vunpack.c.l.b16 %v2530
        %v2595 = vunpack.c.l.b16 %v2531
        %v2596 = vunpack.c.l.b16 %v2532
        %v2597 = vunpack.c.l.b16 %v2533
        %v2598 = vunpack.c.l.b16 %v2534
        %v2599 = vunpack.c.l.b16 %v2535
        %v2600 = vunpack.c.l.b16 %v2536
        %v2601 = vunpack.c.l.b16 %v2537
        %v2602 = vunpack.c.l.b16 %v2538
        %v2603 = vunpack.c.l.b16 %v2539
        %v2604 = vunpack.c.l.b16 %v2540
        %v2605 = vunpack.c.l.b16 %v2541
        %v2606 = vunpack.c.l.b16 %v2542
        %v2607 = vunpack.c.l.b16 %v2543
        %v2608 = vunpack.c.l.b16 %v2544
        %v2609 = vunpack.c.l.b16 %v2545
        %v2610 = vunpack.c.l.b16 %v2546
        %v2611 = vunpack.c.l.b16 %v2547
        %v2612 = vunpack.c.l.b16 %v2548
        %v2613 = vunpack.c.l.b16 %v2549
        %v2614 = vunpack.c.l.b16 %v2550
        %v2615 = vunpack.c.l.b16 %v2551
        %v2616 = vpack.c.b16 %v2585, %v2584
        %v2617 = vpack.c.b16 %v2587, %v2586
        %v2618 = vpack.c.b16 %v2589, %v2588
        %v2619 = vpack.c.b16 %v2591, %v2590
        %v2620 = vpack.c.b16 %v2593, %v2592
        %v2621 = vpack.c.b16 %v2595, %v2594
        %v2622 = vpack.c.b16 %v2597, %v2596
        %v2623 = vpack.c.b16 %v2599, %v2598
        %v2624 = vpack.c.b16 %v2601, %v2600
        %v2625 = vpack.c.b16 %v2603, %v2602
        %v2626 = vpack.c.b16 %v2605, %v2604
        %v2627 = vpack.c.b16 %v2607, %v2606
        %v2628 = vpack.c.b16 %v2609, %v2608
        %v2629 = vpack.c.b16 %v2611, %v2610
        %v2630 = vpack.c.b16 %v2613, %v2612
        %v2631 = vpack.c.b16 %v2615, %v2614
        %2632 = vrot.lane.b32.xlu0 %v2616, 120
        %v2633 = vpop.permute.xlu0 %2632
        %2634 = vrot.lane.b32.xlu0 %v2617, 120
        %v2635 = vpop.permute.xlu0 %2634
        %2636 = vrot.lane.b32.xlu0 %v2618, 120
        %v2637 = vpop.permute.xlu0 %2636
        %2638 = vrot.lane.b32.xlu0 %v2619, 120
        %v2639 = vpop.permute.xlu0 %2638
        %2640 = vrot.lane.b32.xlu0 %v2620, 120
        %v2641 = vpop.permute.xlu0 %2640
        %2642 = vrot.lane.b32.xlu0 %v2621, 120
        %v2643 = vpop.permute.xlu0 %2642
        %2644 = vrot.lane.b32.xlu0 %v2622, 120
        %v2645 = vpop.permute.xlu0 %2644
        %2646 = vrot.lane.b32.xlu0 %v2623, 120
        %v2647 = vpop.permute.xlu0 %2646
        %2648 = vrot.lane.b32.xlu0 %v2624, 120
        %v2649 = vpop.permute.xlu0 %2648
        %2650 = vrot.lane.b32.xlu0 %v2625, 120
        %v2651 = vpop.permute.xlu0 %2650
        %2652 = vrot.lane.b32.xlu0 %v2626, 120
        %v2653 = vpop.permute.xlu0 %2652
        %2654 = vrot.lane.b32.xlu0 %v2627, 120
        %v2655 = vpop.permute.xlu0 %2654
        %2656 = vrot.lane.b32.xlu0 %v2628, 120
        %v2657 = vpop.permute.xlu0 %2656
        %2658 = vrot.lane.b32.xlu0 %v2629, 120
        %v2659 = vpop.permute.xlu0 %2658
        %2660 = vrot.lane.b32.xlu0 %v2630, 120
        %v2661 = vpop.permute.xlu0 %2660
        %2662 = vrot.lane.b32.xlu0 %v2631, 120
        %v2663 = vpop.permute.xlu0 %2662
        %2664 = vrot.lane.b32.xlu0 %v1577, 120
        %v2665 = vpop.permute.xlu0 %2664
        %2666 = vrot.lane.b32.xlu0 %v1578, 120
        %v2667 = vpop.permute.xlu0 %2666
        %2668 = vrot.lane.b32.xlu0 %v1579, 120
        %v2669 = vpop.permute.xlu0 %2668
        %2670 = vrot.lane.b32.xlu0 %v1580, 120
        %v2671 = vpop.permute.xlu0 %2670
        %2672 = vrot.lane.b32.xlu0 %v1581, 120
        %v2673 = vpop.permute.xlu0 %2672
        %2674 = vrot.lane.b32.xlu0 %v1582, 120
        %v2675 = vpop.permute.xlu0 %2674
        %2676 = vrot.lane.b32.xlu0 %v1583, 120
        %v2677 = vpop.permute.xlu0 %2676
        %2678 = vrot.lane.b32.xlu0 %v1584, 120
        %v2679 = vpop.permute.xlu0 %2678
        %2680 = vrot.lane.b32.xlu0 %v1585, 120
        %v2681 = vpop.permute.xlu0 %2680
        %2682 = vrot.lane.b32.xlu0 %v1586, 120
        %v2683 = vpop.permute.xlu0 %2682
        %2684 = vrot.lane.b32.xlu0 %v1587, 120
        %v2685 = vpop.permute.xlu0 %2684
        %2686 = vrot.lane.b32.xlu0 %v1588, 120
        %v2687 = vpop.permute.xlu0 %2686
        %2688 = vrot.lane.b32.xlu0 %v1589, 120
        %v2689 = vpop.permute.xlu0 %2688
        %2690 = vrot.lane.b32.xlu0 %v1590, 120
        %v2691 = vpop.permute.xlu0 %2690
        %2692 = vrot.lane.b32.xlu0 %v1591, 120
        %v2693 = vpop.permute.xlu0 %2692
        %2694 = vrot.lane.b32.xlu0 %v1592, 120
        %v2695 = vpop.permute.xlu0 %2694
        %v2697 = vsel %vm1593, %v2633, 0
        %v2700 = vsel %vm1593, %v2635, 0
        %v2703 = vsel %vm1593, %v2637, 0
        %v2706 = vsel %vm1593, %v2639, 0
        %v2709 = vsel %vm1593, %v2641, 0
        %v2712 = vsel %vm1593, %v2643, 0
        %v2715 = vsel %vm1593, %v2645, 0
        %v2718 = vsel %vm1593, %v2647, 0
        %v2721 = vsel %vm1593, %v2649, 0
        %v2724 = vsel %vm1593, %v2651, 0
        %v2727 = vsel %vm1593, %v2653, 0
        %v2730 = vsel %vm1593, %v2655, 0
        %v2733 = vsel %vm1593, %v2657, 0
        %v2736 = vsel %vm1593, %v2659, 0
        %v2739 = vsel %vm1593, %v2661, 0
        %v2742 = vsel %vm1593, %v2663, 0
        %v2745 = vsel %vm1593, %v2665, 0
        %v2748 = vsel %vm1593, %v2667, 0
        %v2751 = vsel %vm1593, %v2669, 0
        %v2754 = vsel %vm1593, %v2671, 0
        %v2757 = vsel %vm1593, %v2673, 0
        %v2760 = vsel %vm1593, %v2675, 0
        %v2763 = vsel %vm1593, %v2677, 0
        %v2766 = vsel %vm1593, %v2679, 0
        %v2769 = vsel %vm1593, %v2681, 0
        %v2772 = vsel %vm1593, %v2683, 0
        %v2775 = vsel %vm1593, %v2685, 0
        %v2778 = vsel %vm1593, %v2687, 0
        %v2781 = vsel %vm1593, %v2689, 0
        %v2784 = vsel %vm1593, %v2691, 0
        %v2787 = vsel %vm1593, %v2693, 0
        %v2790 = vsel %vm1593, %v2695, 0
        %2792 = vmatpush.bf16.xpose.msra.mxu0 %v2766
        %2793 = vmatpush.bf16.xpose.msra.mxu0 %v2763
        %2794 = vmatpush.bf16.xpose.msra.mxu0 %v2760
        %2795 = vmatpush.bf16.xpose.msra.mxu0 %v2757
        %2796 = vmatpush.bf16.xpose.msra.mxu0 %v2754
        %2797 = vmatpush.bf16.xpose.msra.mxu0 %v2751
        %2798 = vmatpush.bf16.xpose.msra.mxu0 %v2748
        %2799 = vmatpush.bf16.xpose.msra.mxu0 %v2745
        %2800 = vmatmul.bf16.gmra.mxu0 %v2697
        %v2801 = vpop.f32.mrf.mxu0
        %v2802 = vadd.f32 0.0, %v2801
        %v2803 = vpop.f32.mrf.mxu0
        %v2804 = vadd.f32 0.0, %v2803
        %2805 = vmatmul.bf16.gmra.mxu0 %v2700
        %v2806 = vpop.f32.mrf.mxu0
        %v2807 = vadd.f32 0.0, %v2806
        %v2808 = vpop.f32.mrf.mxu0
        %v2809 = vadd.f32 0.0, %v2808
        %2810 = vmatmul.bf16.gmra.mxu0 %v2703
        %v2811 = vpop.f32.mrf.mxu0
        %v2812 = vadd.f32 0.0, %v2811
        %v2813 = vpop.f32.mrf.mxu0
        %v2814 = vadd.f32 0.0, %v2813
        %2815 = vmatmul.bf16.gmra.mxu0 %v2706
        %v2816 = vpop.f32.mrf.mxu0
        %v2817 = vadd.f32 0.0, %v2816
        %v2818 = vpop.f32.mrf.mxu0
        %v2819 = vadd.f32 0.0, %v2818
        %2820 = vmatmul.bf16.gmra.mxu0 %v2709
        %v2821 = vpop.f32.mrf.mxu0
        %v2822 = vadd.f32 0.0, %v2821
        %v2823 = vpop.f32.mrf.mxu0
        %v2824 = vadd.f32 0.0, %v2823
        %2825 = vmatmul.bf16.gmra.mxu0 %v2712
        %v2826 = vpop.f32.mrf.mxu0
        %v2827 = vadd.f32 0.0, %v2826
        %v2828 = vpop.f32.mrf.mxu0
        %v2829 = vadd.f32 0.0, %v2828
        %2830 = vmatmul.bf16.gmra.mxu0 %v2715
        %v2831 = vpop.f32.mrf.mxu0
        %v2832 = vadd.f32 0.0, %v2831
        %v2833 = vpop.f32.mrf.mxu0
        %v2834 = vadd.f32 0.0, %v2833
        %2835 = vmatmul.bf16.gmra.mxu0 %v2718
        %v2836 = vpop.f32.mrf.mxu0
        %v2837 = vadd.f32 0.0, %v2836
        %v2838 = vpop.f32.mrf.mxu0
        %v2839 = vadd.f32 0.0, %v2838
        %2840 = vmatmul.bf16.gmra.mxu0 %v2721
        %v2841 = vpop.f32.mrf.mxu0
        %v2842 = vadd.f32 0.0, %v2841
        %v2843 = vpop.f32.mrf.mxu0
        %v2844 = vadd.f32 0.0, %v2843
        %2845 = vmatmul.bf16.gmra.mxu0 %v2724
        %v2846 = vpop.f32.mrf.mxu0
        %v2847 = vadd.f32 0.0, %v2846
        %v2848 = vpop.f32.mrf.mxu0
        %v2849 = vadd.f32 0.0, %v2848
        %2850 = vmatmul.bf16.gmra.mxu0 %v2727
        %v2851 = vpop.f32.mrf.mxu0
        %v2852 = vadd.f32 0.0, %v2851
        %v2853 = vpop.f32.mrf.mxu0
        %v2854 = vadd.f32 0.0, %v2853
        %2855 = vmatmul.bf16.gmra.mxu0 %v2730
        %v2856 = vpop.f32.mrf.mxu0
        %v2857 = vadd.f32 0.0, %v2856
        %v2858 = vpop.f32.mrf.mxu0
        %v2859 = vadd.f32 0.0, %v2858
        %2860 = vmatmul.bf16.gmra.mxu0 %v2733
        %v2861 = vpop.f32.mrf.mxu0
        %v2862 = vadd.f32 0.0, %v2861
        %v2863 = vpop.f32.mrf.mxu0
        %v2864 = vadd.f32 0.0, %v2863
        %2865 = vmatmul.bf16.gmra.mxu0 %v2736
        %v2866 = vpop.f32.mrf.mxu0
        %v2867 = vadd.f32 0.0, %v2866
        %v2868 = vpop.f32.mrf.mxu0
        %v2869 = vadd.f32 0.0, %v2868
        %2870 = vmatmul.bf16.gmra.mxu0 %v2739
        %v2871 = vpop.f32.mrf.mxu0
        %v2872 = vadd.f32 0.0, %v2871
        %v2873 = vpop.f32.mrf.mxu0
        %v2874 = vadd.f32 0.0, %v2873
        %2875 = vmatmul.bf16.gmra.mxu0 %v2742
        %v2876 = vpop.f32.mrf.mxu0
        %v2877 = vadd.f32 0.0, %v2876
        %v2878 = vpop.f32.mrf.mxu0
        %v2879 = vadd.f32 0.0, %v2878
        %2880 = vdwg.mxu0
        %2881 = vmatpush.bf16.xpose.msra.mxu0 %v2790
        %2882 = vmatpush.bf16.xpose.msra.mxu0 %v2787
        %2883 = vmatpush.bf16.xpose.msra.mxu0 %v2784
        %2884 = vmatpush.bf16.xpose.msra.mxu0 %v2781
        %2885 = vmatpush.bf16.xpose.msra.mxu0 %v2778
        %2886 = vmatpush.bf16.xpose.msra.mxu0 %v2775
        %2887 = vmatpush.bf16.xpose.msra.mxu0 %v2772
        %2888 = vmatpush.bf16.xpose.msra.mxu0 %v2769
        %2889 = vmatmul.bf16.gmra.mxu0 %v2697
        %v2890 = vpop.f32.mrf.mxu0
        %v2891 = vadd.f32 0.0, %v2890
        %v2892 = vpop.f32.mrf.mxu0
        %v2893 = vadd.f32 0.0, %v2892
        %2894 = vmatmul.bf16.gmra.mxu0 %v2700
        %v2895 = vpop.f32.mrf.mxu0
        %v2896 = vadd.f32 0.0, %v2895
        %v2897 = vpop.f32.mrf.mxu0
        %v2898 = vadd.f32 0.0, %v2897
        %2899 = vmatmul.bf16.gmra.mxu0 %v2703
        %v2900 = vpop.f32.mrf.mxu0
        %v2901 = vadd.f32 0.0, %v2900
        %v2902 = vpop.f32.mrf.mxu0
        %v2903 = vadd.f32 0.0, %v2902
        %2904 = vmatmul.bf16.gmra.mxu0 %v2706
        %v2905 = vpop.f32.mrf.mxu0
        %v2906 = vadd.f32 0.0, %v2905
        %v2907 = vpop.f32.mrf.mxu0
        %v2908 = vadd.f32 0.0, %v2907
        %2909 = vmatmul.bf16.gmra.mxu0 %v2709
        %v2910 = vpop.f32.mrf.mxu0
        %v2911 = vadd.f32 0.0, %v2910
        %v2912 = vpop.f32.mrf.mxu0
        %v2913 = vadd.f32 0.0, %v2912
        %2914 = vmatmul.bf16.gmra.mxu0 %v2712
        %v2915 = vpop.f32.mrf.mxu0
        %v2916 = vadd.f32 0.0, %v2915
        %v2917 = vpop.f32.mrf.mxu0
        %v2918 = vadd.f32 0.0, %v2917
        %2919 = vmatmul.bf16.gmra.mxu0 %v2715
        %v2920 = vpop.f32.mrf.mxu0
        %v2921 = vadd.f32 0.0, %v2920
        %v2922 = vpop.f32.mrf.mxu0
        %v2923 = vadd.f32 0.0, %v2922
        %2924 = vmatmul.bf16.gmra.mxu0 %v2718
        %v2925 = vpop.f32.mrf.mxu0
        %v2926 = vadd.f32 0.0, %v2925
        %v2927 = vpop.f32.mrf.mxu0
        %v2928 = vadd.f32 0.0, %v2927
        %2929 = vmatmul.bf16.gmra.mxu0 %v2721
        %v2930 = vpop.f32.mrf.mxu0
        %v2931 = vadd.f32 0.0, %v2930
        %v2932 = vpop.f32.mrf.mxu0
        %v2933 = vadd.f32 0.0, %v2932
        %2934 = vmatmul.bf16.gmra.mxu0 %v2724
        %v2935 = vpop.f32.mrf.mxu0
        %v2936 = vadd.f32 0.0, %v2935
        %v2937 = vpop.f32.mrf.mxu0
        %v2938 = vadd.f32 0.0, %v2937
        %2939 = vmatmul.bf16.gmra.mxu0 %v2727
        %v2940 = vpop.f32.mrf.mxu0
        %v2941 = vadd.f32 0.0, %v2940
        %v2942 = vpop.f32.mrf.mxu0
        %v2943 = vadd.f32 0.0, %v2942
        %2944 = vmatmul.bf16.gmra.mxu0 %v2730
        %v2945 = vpop.f32.mrf.mxu0
        %v2946 = vadd.f32 0.0, %v2945
        %v2947 = vpop.f32.mrf.mxu0
        %v2948 = vadd.f32 0.0, %v2947
        %2949 = vmatmul.bf16.gmra.mxu0 %v2733
        %v2950 = vpop.f32.mrf.mxu0
        %v2951 = vadd.f32 0.0, %v2950
        %v2952 = vpop.f32.mrf.mxu0
        %v2953 = vadd.f32 0.0, %v2952
        %2954 = vmatmul.bf16.gmra.mxu0 %v2736
        %v2955 = vpop.f32.mrf.mxu0
        %v2956 = vadd.f32 0.0, %v2955
        %v2957 = vpop.f32.mrf.mxu0
        %v2958 = vadd.f32 0.0, %v2957
        %2959 = vmatmul.bf16.gmra.mxu0 %v2739
        %v2960 = vpop.f32.mrf.mxu0
        %v2961 = vadd.f32 0.0, %v2960
        %v2962 = vpop.f32.mrf.mxu0
        %v2963 = vadd.f32 0.0, %v2962
        %2964 = vmatmul.bf16.gmra.mxu0 %v2742
        %v2965 = vpop.f32.mrf.mxu0
        %v2966 = vadd.f32 0.0, %v2965
        %v2967 = vpop.f32.mrf.mxu0
        %v2968 = vadd.f32 0.0, %v2967
        %2969 = vdwg.mxu0
        %v2970 = vmax.f32 %v2802, %v2807
        %v2971 = vmax.f32 %v2804, %v2809
        %v2972 = vmax.f32 %v2970, %v2812
        %v2973 = vmax.f32 %v2971, %v2814
        %v2974 = vmax.f32 %v2972, %v2817
        %v2975 = vmax.f32 %v2973, %v2819
        %v2976 = vmax.f32 %v2974, %v2822
        %v2977 = vmax.f32 %v2975, %v2824
        %v2978 = vmax.f32 %v2976, %v2827
        %v2979 = vmax.f32 %v2977, %v2829
        %v2980 = vmax.f32 %v2978, %v2832
        %v2981 = vmax.f32 %v2979, %v2834
        %v2982 = vmax.f32 %v2980, %v2837
        %v2983 = vmax.f32 %v2981, %v2839
        %v2984 = vmax.f32 %v2982, %v2842
        %v2985 = vmax.f32 %v2983, %v2844
        %v2986 = vmax.f32 %v2984, %v2847
        %v2987 = vmax.f32 %v2985, %v2849
        %v2988 = vmax.f32 %v2986, %v2852
        %v2989 = vmax.f32 %v2987, %v2854
        %v2990 = vmax.f32 %v2988, %v2857
        %v2991 = vmax.f32 %v2989, %v2859
        %v2992 = vmax.f32 %v2990, %v2862
        %v2993 = vmax.f32 %v2991, %v2864
        %v2994 = vmax.f32 %v2992, %v2867
        %v2995 = vmax.f32 %v2993, %v2869
        %v2996 = vmax.f32 %v2994, %v2872
        %v2997 = vmax.f32 %v2995, %v2874
        %v2998 = vmax.f32 %v2996, %v2877
        %v2999 = vmax.f32 %v2997, %v2879
        %v3000 = vmax.f32 %v2998, %v2999
        %v3001 = vrot.slane %v3000, 4
        %v3002 = vmax.f32 %v3000, %v3001
        %v3003 = vrot.slane %v3002, 2
        %v3004 = vmax.f32 %v3002, %v3003
        %v3005 = vrot.slane %v3004, 1
        %v3006 = vmax.f32 %v3004, %v3005
        %v3007 = vmax.f32 %v2891, %v2896
        %v3008 = vmax.f32 %v2893, %v2898
        %v3009 = vmax.f32 %v3007, %v2901
        %v3010 = vmax.f32 %v3008, %v2903
        %v3011 = vmax.f32 %v3009, %v2906
        %v3012 = vmax.f32 %v3010, %v2908
        %v3013 = vmax.f32 %v3011, %v2911
        %v3014 = vmax.f32 %v3012, %v2913
        %v3015 = vmax.f32 %v3013, %v2916
        %v3016 = vmax.f32 %v3014, %v2918
        %v3017 = vmax.f32 %v3015, %v2921
        %v3018 = vmax.f32 %v3016, %v2923
        %v3019 = vmax.f32 %v3017, %v2926
        %v3020 = vmax.f32 %v3018, %v2928
        %v3021 = vmax.f32 %v3019, %v2931
        %v3022 = vmax.f32 %v3020, %v2933
        %v3023 = vmax.f32 %v3021, %v2936
        %v3024 = vmax.f32 %v3022, %v2938
        %v3025 = vmax.f32 %v3023, %v2941
        %v3026 = vmax.f32 %v3024, %v2943
        %v3027 = vmax.f32 %v3025, %v2946
        %v3028 = vmax.f32 %v3026, %v2948
        %v3029 = vmax.f32 %v3027, %v2951
        %v3030 = vmax.f32 %v3028, %v2953
        %v3031 = vmax.f32 %v3029, %v2956
        %v3032 = vmax.f32 %v3030, %v2958
        %v3033 = vmax.f32 %v3031, %v2961
        %v3034 = vmax.f32 %v3032, %v2963
        %v3035 = vmax.f32 %v3033, %v2966
        %v3036 = vmax.f32 %v3034, %v2968
        %v3037 = vmax.f32 %v3035, %v3036
        %v3038 = vrot.slane %v3037, 4
        %v3039 = vmax.f32 %v3037, %v3038
        %v3040 = vrot.slane %v3039, 2
        %v3041 = vmax.f32 %v3039, %v3040
        %v3042 = vrot.slane %v3041, 1
        %v3043 = vmax.f32 %v3041, %v3042
        %v3044 = vsub.f32 %v2802, %v3006
        %v3045 = vsub.f32 %v2891, %v3043
        %v3046 = vsub.f32 %v2804, %v3006
        %v3047 = vsub.f32 %v2893, %v3043
        %v3048 = vsub.f32 %v2807, %v3006
        %v3049 = vsub.f32 %v2896, %v3043
        %v3050 = vsub.f32 %v2809, %v3006
        %v3051 = vsub.f32 %v2898, %v3043
        %v3052 = vsub.f32 %v2812, %v3006
        %v3053 = vsub.f32 %v2901, %v3043
        %v3054 = vsub.f32 %v2814, %v3006
        %v3055 = vsub.f32 %v2903, %v3043
        %v3056 = vsub.f32 %v2817, %v3006
        %v3057 = vsub.f32 %v2906, %v3043
        %v3058 = vsub.f32 %v2819, %v3006
        %v3059 = vsub.f32 %v2908, %v3043
        %v3060 = vsub.f32 %v2822, %v3006
        %v3061 = vsub.f32 %v2911, %v3043
        %v3062 = vsub.f32 %v2824, %v3006
        %v3063 = vsub.f32 %v2913, %v3043
        %v3064 = vsub.f32 %v2827, %v3006
        %v3065 = vsub.f32 %v2916, %v3043
        %v3066 = vsub.f32 %v2829, %v3006
        %v3067 = vsub.f32 %v2918, %v3043
        %v3068 = vsub.f32 %v2832, %v3006
        %v3069 = vsub.f32 %v2921, %v3043
        %v3070 = vsub.f32 %v2834, %v3006
        %v3071 = vsub.f32 %v2923, %v3043
        %v3072 = vsub.f32 %v2837, %v3006
        %v3073 = vsub.f32 %v2926, %v3043
        %v3074 = vsub.f32 %v2839, %v3006
        %v3075 = vsub.f32 %v2928, %v3043
        %v3076 = vsub.f32 %v2842, %v3006
        %v3077 = vsub.f32 %v2931, %v3043
        %v3078 = vsub.f32 %v2844, %v3006
        %v3079 = vsub.f32 %v2933, %v3043
        %v3080 = vsub.f32 %v2847, %v3006
        %v3081 = vsub.f32 %v2936, %v3043
        %v3082 = vsub.f32 %v2849, %v3006
        %v3083 = vsub.f32 %v2938, %v3043
        %v3084 = vsub.f32 %v2852, %v3006
        %v3085 = vsub.f32 %v2941, %v3043
        %v3086 = vsub.f32 %v2854, %v3006
        %v3087 = vsub.f32 %v2943, %v3043
        %v3088 = vsub.f32 %v2857, %v3006
        %v3089 = vsub.f32 %v2946, %v3043
        %v3090 = vsub.f32 %v2859, %v3006
        %v3091 = vsub.f32 %v2948, %v3043
        %v3092 = vsub.f32 %v2862, %v3006
        %v3093 = vsub.f32 %v2951, %v3043
        %v3094 = vsub.f32 %v2864, %v3006
        %v3095 = vsub.f32 %v2953, %v3043
        %v3096 = vsub.f32 %v2867, %v3006
        %v3097 = vsub.f32 %v2956, %v3043
        %v3098 = vsub.f32 %v2869, %v3006
        %v3099 = vsub.f32 %v2958, %v3043
        %v3100 = vsub.f32 %v2872, %v3006
        %v3101 = vsub.f32 %v2961, %v3043
        %v3102 = vsub.f32 %v2874, %v3006
        %v3103 = vsub.f32 %v2963, %v3043
        %v3104 = vsub.f32 %v2877, %v3006
        %v3105 = vsub.f32 %v2966, %v3043
        %v3106 = vsub.f32 %v2879, %v3006
        %v3107 = vsub.f32 %v2968, %v3043
        %v3108 = vmul.f32 %v3044, 1.442695
        %v3109 = vpow.pop %v3108
        %v3110 = vmul.f32 %v3045, 1.442695
        %v3111 = vpow.pop %v3110
        %v3112 = vmul.f32 %v3046, 1.442695
        %v3113 = vpow.pop %v3112
        %v3114 = vmul.f32 %v3047, 1.442695
        %v3115 = vpow.pop %v3114
        %v3116 = vmul.f32 %v3048, 1.442695
        %v3117 = vpow.pop %v3116
        %v3118 = vmul.f32 %v3049, 1.442695
        %v3119 = vpow.pop %v3118
        %v3120 = vmul.f32 %v3050, 1.442695
        %v3121 = vpow.pop %v3120
        %v3122 = vmul.f32 %v3051, 1.442695
        %v3123 = vpow.pop %v3122
        %v3124 = vmul.f32 %v3052, 1.442695
        %v3125 = vpow.pop %v3124
        %v3126 = vmul.f32 %v3053, 1.442695
        %v3127 = vpow.pop %v3126
        %v3128 = vmul.f32 %v3054, 1.442695
        %v3129 = vpow.pop %v3128
        %v3130 = vmul.f32 %v3055, 1.442695
        %v3131 = vpow.pop %v3130
        %v3132 = vmul.f32 %v3056, 1.442695
        %v3133 = vpow.pop %v3132
        %v3134 = vmul.f32 %v3057, 1.442695
        %v3135 = vpow.pop %v3134
        %v3136 = vmul.f32 %v3058, 1.442695
        %v3137 = vpow.pop %v3136
        %v3138 = vmul.f32 %v3059, 1.442695
        %v3139 = vpow.pop %v3138
        %v3140 = vmul.f32 %v3060, 1.442695
        %v3141 = vpow.pop %v3140
        %v3142 = vmul.f32 %v3061, 1.442695
        %v3143 = vpow.pop %v3142
        %v3144 = vmul.f32 %v3062, 1.442695
        %v3145 = vpow.pop %v3144
        %v3146 = vmul.f32 %v3063, 1.442695
        %v3147 = vpow.pop %v3146
        %v3148 = vmul.f32 %v3064, 1.442695
        %v3149 = vpow.pop %v3148
        %v3150 = vmul.f32 %v3065, 1.442695
        %v3151 = vpow.pop %v3150
        %v3152 = vmul.f32 %v3066, 1.442695
        %v3153 = vpow.pop %v3152
        %v3154 = vmul.f32 %v3067, 1.442695
        %v3155 = vpow.pop %v3154
        %v3156 = vmul.f32 %v3068, 1.442695
        %v3157 = vpow.pop %v3156
        %v3158 = vmul.f32 %v3069, 1.442695
        %v3159 = vpow.pop %v3158
        %v3160 = vmul.f32 %v3070, 1.442695
        %v3161 = vpow.pop %v3160
        %v3162 = vmul.f32 %v3071, 1.442695
        %v3163 = vpow.pop %v3162
        %v3164 = vmul.f32 %v3072, 1.442695
        %v3165 = vpow.pop %v3164
        %v3166 = vmul.f32 %v3073, 1.442695
        %v3167 = vpow.pop %v3166
        %v3168 = vmul.f32 %v3074, 1.442695
        %v3169 = vpow.pop %v3168
        %v3170 = vmul.f32 %v3075, 1.442695
        %v3171 = vpow.pop %v3170
        %v3172 = vmul.f32 %v3076, 1.442695
        %v3173 = vpow.pop %v3172
        %v3174 = vmul.f32 %v3077, 1.442695
        %v3175 = vpow.pop %v3174
        %v3176 = vmul.f32 %v3078, 1.442695
        %v3177 = vpow.pop %v3176
        %v3178 = vmul.f32 %v3079, 1.442695
        %v3179 = vpow.pop %v3178
        %v3180 = vmul.f32 %v3080, 1.442695
        %v3181 = vpow.pop %v3180
        %v3182 = vmul.f32 %v3081, 1.442695
        %v3183 = vpow.pop %v3182
        %v3184 = vmul.f32 %v3082, 1.442695
        %v3185 = vpow.pop %v3184
        %v3186 = vmul.f32 %v3083, 1.442695
        %v3187 = vpow.pop %v3186
        %v3188 = vmul.f32 %v3084, 1.442695
        %v3189 = vpow.pop %v3188
        %v3190 = vmul.f32 %v3085, 1.442695
        %v3191 = vpow.pop %v3190
        %v3192 = vmul.f32 %v3086, 1.442695
        %v3193 = vpow.pop %v3192
        %v3194 = vmul.f32 %v3087, 1.442695
        %v3195 = vpow.pop %v3194
        %v3196 = vmul.f32 %v3088, 1.442695
        %v3197 = vpow.pop %v3196
        %v3198 = vmul.f32 %v3089, 1.442695
        %v3199 = vpow.pop %v3198
        %v3200 = vmul.f32 %v3090, 1.442695
        %v3201 = vpow.pop %v3200
        %v3202 = vmul.f32 %v3091, 1.442695
        %v3203 = vpow.pop %v3202
        %v3204 = vmul.f32 %v3092, 1.442695
        %v3205 = vpow.pop %v3204
        %v3206 = vmul.f32 %v3093, 1.442695
        %v3207 = vpow.pop %v3206
        %v3208 = vmul.f32 %v3094, 1.442695
        %v3209 = vpow.pop %v3208
        %v3210 = vmul.f32 %v3095, 1.442695
        %v3211 = vpow.pop %v3210
        %v3212 = vmul.f32 %v3096, 1.442695
        %v3213 = vpow.pop %v3212
        %v3214 = vmul.f32 %v3097, 1.442695
        %v3215 = vpow.pop %v3214
        %v3216 = vmul.f32 %v3098, 1.442695
        %v3217 = vpow.pop %v3216
        %v3218 = vmul.f32 %v3099, 1.442695
        %v3219 = vpow.pop %v3218
        %v3220 = vmul.f32 %v3100, 1.442695
        %v3221 = vpow.pop %v3220
        %v3222 = vmul.f32 %v3101, 1.442695
        %v3223 = vpow.pop %v3222
        %v3224 = vmul.f32 %v3102, 1.442695
        %v3225 = vpow.pop %v3224
        %v3226 = vmul.f32 %v3103, 1.442695
        %v3227 = vpow.pop %v3226
        %v3228 = vmul.f32 %v3104, 1.442695
        %v3229 = vpow.pop %v3228
        %v3230 = vmul.f32 %v3105, 1.442695
        %v3231 = vpow.pop %v3230
        %v3232 = vmul.f32 %v3106, 1.442695
        %v3233 = vpow.pop %v3232
        %v3234 = vmul.f32 %v3107, 1.442695
        %v3235 = vpow.pop %v3234
        %v3236 = vadd.f32 %v3109, %v3113
        %v3237 = vadd.f32 %v3236, %v3117
        %v3238 = vadd.f32 %v3237, %v3121
        %v3239 = vadd.f32 %v3238, %v3125
        %v3240 = vadd.f32 %v3239, %v3129
        %v3241 = vadd.f32 %v3240, %v3133
        %v3242 = vadd.f32 %v3241, %v3137
        %v3243 = vadd.f32 %v3242, %v3141
        %v3244 = vadd.f32 %v3243, %v3145
        %v3245 = vadd.f32 %v3244, %v3149
        %v3246 = vadd.f32 %v3245, %v3153
        %v3247 = vadd.f32 %v3246, %v3157
        %v3248 = vadd.f32 %v3247, %v3161
        %v3249 = vadd.f32 %v3248, %v3165
        %v3250 = vadd.f32 %v3249, %v3169
        %v3251 = vadd.f32 %v3250, %v3173
        %v3252 = vadd.f32 %v3251, %v3177
        %v3253 = vadd.f32 %v3252, %v3181
        %v3254 = vadd.f32 %v3253, %v3185
        %v3255 = vadd.f32 %v3254, %v3189
        %v3256 = vadd.f32 %v3255, %v3193
        %v3257 = vadd.f32 %v3256, %v3197
        %v3258 = vadd.f32 %v3257, %v3201
        %v3259 = vadd.f32 %v3258, %v3205
        %v3260 = vadd.f32 %v3259, %v3209
        %v3261 = vadd.f32 %v3260, %v3213
        %v3262 = vadd.f32 %v3261, %v3217
        %v3263 = vadd.f32 %v3262, %v3221
        %v3264 = vadd.f32 %v3263, %v3225
        %v3265 = vadd.f32 %v3264, %v3229
        %v3266 = vadd.f32 %v3265, %v3233
        %v3267 = vrot.slane %v3266, 4
        %v3268 = vadd.f32 %v3266, %v3267
        %v3269 = vrot.slane %v3268, 2
        %v3270 = vadd.f32 %v3268, %v3269
        %v3271 = vrot.slane %v3270, 1
        %v3272 = vadd.f32 %v3270, %v3271
        %v3273 = vadd.f32 %v3111, %v3115
        %v3274 = vadd.f32 %v3273, %v3119
        %v3275 = vadd.f32 %v3274, %v3123
        %v3276 = vadd.f32 %v3275, %v3127
        %v3277 = vadd.f32 %v3276, %v3131
        %v3278 = vadd.f32 %v3277, %v3135
        %v3279 = vadd.f32 %v3278, %v3139
        %v3280 = vadd.f32 %v3279, %v3143
        %v3281 = vadd.f32 %v3280, %v3147
        %v3282 = vadd.f32 %v3281, %v3151
        %v3283 = vadd.f32 %v3282, %v3155
        %v3284 = vadd.f32 %v3283, %v3159
        %v3285 = vadd.f32 %v3284, %v3163
        %v3286 = vadd.f32 %v3285, %v3167
        %v3287 = vadd.f32 %v3286, %v3171
        %v3288 = vadd.f32 %v3287, %v3175
        %v3289 = vadd.f32 %v3288, %v3179
        %v3290 = vadd.f32 %v3289, %v3183
        %v3291 = vadd.f32 %v3290, %v3187
        %v3292 = vadd.f32 %v3291, %v3191
        %v3293 = vadd.f32 %v3292, %v3195
        %v3294 = vadd.f32 %v3293, %v3199
        %v3295 = vadd.f32 %v3294, %v3203
        %v3296 = vadd.f32 %v3295, %v3207
        %v3297 = vadd.f32 %v3296, %v3211
        %v3298 = vadd.f32 %v3297, %v3215
        %v3299 = vadd.f32 %v3298, %v3219
        %v3300 = vadd.f32 %v3299, %v3223
        %v3301 = vadd.f32 %v3300, %v3227
        %v3302 = vadd.f32 %v3301, %v3231
        %v3303 = vadd.f32 %v3302, %v3235
        %v3304 = vrot.slane %v3303, 4
        %v3305 = vadd.f32 %v3303, %v3304
        %v3306 = vrot.slane %v3305, 2
        %v3307 = vadd.f32 %v3305, %v3306
        %v3308 = vrot.slane %v3307, 1
        %v3309 = vadd.f32 %v3307, %v3308
        %v3310 = vrcp.pop %v3272
        %v3311 = vmul.f32 %v3272, %v3310
        %v3312 = vsub.f32 1.0, %v3311
        %v3313 = vmul.f32 %v3310, %v3312
        %v3314 = vadd.f32 %v3310, %v3313
        %vm3315 = vweird.f32 %v3272
        %vm3316 = vweird.f32 %v3310
        %vm3317 = vmor %vm3315, %vm3316
        %v3318 = vsel %vm3317, %v3310, %v3314
        %v3319 = vand.u32 2147483647, %v3272
        %vm3320 = vcmp.eq.f32.partialorder %v3319, 8.507059e+37
        %v3321 = vand.u32 %v3272, 2147483648
        %v3322 = vor.u32 1.1754944e-38, %v3321
        %v3323 = vsel %vm3320, %v3322, %v3318
        %v3324 = vrcp.pop %v3309
        %v3325 = vmul.f32 %v3309, %v3324
        %v3326 = vsub.f32 1.0, %v3325
        %v3327 = vmul.f32 %v3324, %v3326
        %v3328 = vadd.f32 %v3324, %v3327
        %vm3329 = vweird.f32 %v3309
        %vm3330 = vweird.f32 %v3324
        %vm3331 = vmor %vm3329, %vm3330
        %v3332 = vsel %vm3331, %v3324, %v3328
        %v3333 = vand.u32 2147483647, %v3309
        %vm3334 = vcmp.eq.f32.partialorder %v3333, 8.507059e+37
        %v3335 = vand.u32 %v3309, 2147483648
        %v3336 = vor.u32 1.1754944e-38, %v3335
        %v3337 = vsel %vm3334, %v3336, %v3332
        %s3338 = scalar_lea.vmem [#allocation3], 128
        %v3339 = vld [vmem:[%s3338] sm:$0xf]
        %v3340 = vld [vmem:[%s3338 + $0x4] sm:$0xf]
        %v3341 = vld [vmem:[%s3338 + $0x8] sm:$0xf]
        %v3342 = vld [vmem:[%s3338 + $0xc] sm:$0xf]
        %v3343 = vld [vmem:[%s3338 + $0x10] sm:$0xf]
        %v3344 = vld [vmem:[%s3338 + $0x14] sm:$0xf]
        %v3345 = vld [vmem:[%s3338 + $0x18] sm:$0xf]
        %v3346 = vld [vmem:[%s3338 + $0x1c] sm:$0xf]
        %v3347 = vld [vmem:[%s3338 + $0x20] sm:$0xf]
        %v3348 = vld [vmem:[%s3338 + $0x24] sm:$0xf]
        %v3349 = vld [vmem:[%s3338 + $0x28] sm:$0xf]
        %v3350 = vld [vmem:[%s3338 + $0x2c] sm:$0xf]
        %v3351 = vld [vmem:[%s3338 + $0x30] sm:$0xf]
        %v3352 = vld [vmem:[%s3338 + $0x34] sm:$0xf]
        %v3353 = vld [vmem:[%s3338 + $0x38] sm:$0xf]
        %v3354 = vld [vmem:[%s3338 + $0x3c] sm:$0xf]
        %v3355 = vld [vmem:[%s3338 + $0x40] sm:$0xf]
        %v3356 = vld [vmem:[%s3338 + $0x44] sm:$0xf]
        %v3357 = vld [vmem:[%s3338 + $0x48] sm:$0xf]
        %v3358 = vld [vmem:[%s3338 + $0x4c] sm:$0xf]
        %v3359 = vld [vmem:[%s3338 + $0x50] sm:$0xf]
        %v3360 = vld [vmem:[%s3338 + $0x54] sm:$0xf]
        %v3361 = vld [vmem:[%s3338 + $0x58] sm:$0xf]
        %v3362 = vld [vmem:[%s3338 + $0x5c] sm:$0xf]
        %v3363 = vld [vmem:[%s3338 + $0x60] sm:$0xf]
        %v3364 = vld [vmem:[%s3338 + $0x64] sm:$0xf]
        %v3365 = vld [vmem:[%s3338 + $0x68] sm:$0xf]
        %v3366 = vld [vmem:[%s3338 + $0x6c] sm:$0xf]
        %v3367 = vld [vmem:[%s3338 + $0x70] sm:$0xf]
        %v3368 = vld [vmem:[%s3338 + $0x74] sm:$0xf]
        %v3369 = vld [vmem:[%s3338 + $0x78] sm:$0xf]
        %v3370 = vld [vmem:[%s3338 + $0x7c] sm:$0xf]
        %v3371 = vpack.c.bf16 %v3113, %v3109
        %v3372 = vpack.c.bf16 %v3115, %v3111
        %v3373 = vpack.c.bf16 %v3121, %v3117
        %v3374 = vpack.c.bf16 %v3123, %v3119
        %v3375 = vpack.c.bf16 %v3129, %v3125
        %v3376 = vpack.c.bf16 %v3131, %v3127
        %v3377 = vpack.c.bf16 %v3137, %v3133
        %v3378 = vpack.c.bf16 %v3139, %v3135
        %v3379 = vpack.c.bf16 %v3145, %v3141
        %v3380 = vpack.c.bf16 %v3147, %v3143
        %v3381 = vpack.c.bf16 %v3153, %v3149
        %v3382 = vpack.c.bf16 %v3155, %v3151
        %v3383 = vpack.c.bf16 %v3161, %v3157
        %v3384 = vpack.c.bf16 %v3163, %v3159
        %v3385 = vpack.c.bf16 %v3169, %v3165
        %v3386 = vpack.c.bf16 %v3171, %v3167
        %v3387 = vpack.c.bf16 %v3177, %v3173
        %v3388 = vpack.c.bf16 %v3179, %v3175
        %v3389 = vpack.c.bf16 %v3185, %v3181
        %v3390 = vpack.c.bf16 %v3187, %v3183
        %v3391 = vpack.c.bf16 %v3193, %v3189
        %v3392 = vpack.c.bf16 %v3195, %v3191
        %v3393 = vpack.c.bf16 %v3201, %v3197
        %v3394 = vpack.c.bf16 %v3203, %v3199
        %v3395 = vpack.c.bf16 %v3209, %v3205
        %v3396 = vpack.c.bf16 %v3211, %v3207
        %v3397 = vpack.c.bf16 %v3217, %v3213
        %v3398 = vpack.c.bf16 %v3219, %v3215
        %v3399 = vpack.c.bf16 %v3225, %v3221
        %v3400 = vpack.c.bf16 %v3227, %v3223
        %v3401 = vpack.c.bf16 %v3233, %v3229
        %v3402 = vpack.c.bf16 %v3235, %v3231
        %v3435 = vunpack.c.l.b16 %v3339
        %v3436 = vunpack.c.l.b16 %v3340
        %v3437 = vunpack.c.l.b16 %v3341
        %v3438 = vunpack.c.l.b16 %v3342
        %v3439 = vunpack.c.l.b16 %v3343
        %v3440 = vunpack.c.l.b16 %v3344
        %v3441 = vunpack.c.l.b16 %v3345
        %v3442 = vunpack.c.l.b16 %v3346
        %v3443 = vunpack.c.l.b16 %v3347
        %v3444 = vunpack.c.l.b16 %v3348
        %v3445 = vunpack.c.l.b16 %v3349
        %v3446 = vunpack.c.l.b16 %v3350
        %v3447 = vunpack.c.l.b16 %v3351
        %v3448 = vunpack.c.l.b16 %v3352
        %v3449 = vunpack.c.l.b16 %v3353
        %v3450 = vunpack.c.l.b16 %v3354
        %v3451 = vunpack.c.l.b16 %v3355
        %v3452 = vunpack.c.l.b16 %v3356
        %v3453 = vunpack.c.l.b16 %v3357
        %v3454 = vunpack.c.l.b16 %v3358
        %v3455 = vunpack.c.l.b16 %v3359
        %v3456 = vunpack.c.l.b16 %v3360
        %v3457 = vunpack.c.l.b16 %v3361
        %v3458 = vunpack.c.l.b16 %v3362
        %v3459 = vunpack.c.l.b16 %v3363
        %v3460 = vunpack.c.l.b16 %v3364
        %v3461 = vunpack.c.l.b16 %v3365
        %v3462 = vunpack.c.l.b16 %v3366
        %v3463 = vunpack.c.l.b16 %v3367
        %v3464 = vunpack.c.l.b16 %v3368
        %v3465 = vunpack.c.l.b16 %v3369
        %v3466 = vunpack.c.l.b16 %v3370
        %v3467 = vpack.c.b16 %v3436, %v3435
        %v3468 = vpack.c.b16 %v3438, %v3437
        %v3469 = vpack.c.b16 %v3440, %v3439
        %v3470 = vpack.c.b16 %v3442, %v3441
        %v3471 = vpack.c.b16 %v3444, %v3443
        %v3472 = vpack.c.b16 %v3446, %v3445
        %v3473 = vpack.c.b16 %v3448, %v3447
        %v3474 = vpack.c.b16 %v3450, %v3449
        %v3475 = vpack.c.b16 %v3452, %v3451
        %v3476 = vpack.c.b16 %v3454, %v3453
        %v3477 = vpack.c.b16 %v3456, %v3455
        %v3478 = vpack.c.b16 %v3458, %v3457
        %v3479 = vpack.c.b16 %v3460, %v3459
        %v3480 = vpack.c.b16 %v3462, %v3461
        %v3481 = vpack.c.b16 %v3464, %v3463
        %v3482 = vpack.c.b16 %v3466, %v3465
        %3499 = vxpose.xlu0.c.b16.start [1/8] %v3467, 128
        %3500 = vxpose.xlu0.c.b16.cont [2/8] %v3468, 128
        %3501 = vxpose.xlu0.c.b16.cont [3/8] %v3469, 128
        %3502 = vxpose.xlu0.c.b16.cont [4/8] %v3470, 128
        %3503 = vxpose.xlu0.c.b16.cont [5/8] %v3471, 128
        %3504 = vxpose.xlu0.c.b16.cont [6/8] %v3472, 128
        %3505 = vxpose.xlu0.c.b16.cont [7/8] %v3473, 128
        %3506 = vxpose.xlu0.c.b16.end [8/8] %v3474, 128
        %v3507 = vpop.trf.xlu0
        %v3508 = vpop.trf.xlu0
        %v3509 = vpop.trf.xlu0
        %v3510 = vpop.trf.xlu0
        %v3511 = vpop.trf.xlu0
        %v3512 = vpop.trf.xlu0
        %v3513 = vpop.trf.xlu0
        %v3514 = vpop.trf.xlu0
        %3515 = vxpose.xlu0.c.b16.start [1/8] %v3475, 128
        %3516 = vxpose.xlu0.c.b16.cont [2/8] %v3476, 128
        %3517 = vxpose.xlu0.c.b16.cont [3/8] %v3477, 128
        %3518 = vxpose.xlu0.c.b16.cont [4/8] %v3478, 128
        %3519 = vxpose.xlu0.c.b16.cont [5/8] %v3479, 128
        %3520 = vxpose.xlu0.c.b16.cont [6/8] %v3480, 128
        %3521 = vxpose.xlu0.c.b16.cont [7/8] %v3481, 128
        %3522 = vxpose.xlu0.c.b16.end [8/8] %v3482, 128
        %v3523 = vpop.trf.xlu0
        %v3524 = vpop.trf.xlu0
        %v3525 = vpop.trf.xlu0
        %v3526 = vpop.trf.xlu0
        %v3527 = vpop.trf.xlu0
        %v3528 = vpop.trf.xlu0
        %v3529 = vpop.trf.xlu0
        %v3530 = vpop.trf.xlu0
        %3531 = vmatpush.bf16.msra.mxu0 %v3385
        %3532 = vmatpush.bf16.msra.mxu0 %v3383
        %3533 = vmatpush.bf16.msra.mxu0 %v3381
        %3534 = vmatpush.bf16.msra.mxu0 %v3379
        %3535 = vmatpush.bf16.msra.mxu0 %v3377
        %3536 = vmatpush.bf16.msra.mxu0 %v3375
        %3537 = vmatpush.bf16.msra.mxu0 %v3373
        %3538 = vmatpush.bf16.msra.mxu0 %v3371
        %3539 = vmatmul.bf16.gmra.mxu0 %v3507
        %v3540 = vpop.f32.mrf.mxu0
        %v3541 = vadd.f32 0.0, %v3540
        %v3542 = vpop.f32.mrf.mxu0
        %v3543 = vadd.f32 0.0, %v3542
        %3544 = vmatmul.bf16.gmra.mxu0 %v3508
        %v3545 = vpop.f32.mrf.mxu0
        %v3546 = vadd.f32 0.0, %v3545
        %v3547 = vpop.f32.mrf.mxu0
        %v3548 = vadd.f32 0.0, %v3547
        %3549 = vdwg.mxu0
        %3550 = vmatpush.bf16.msra.mxu0 %v3401
        %3551 = vmatpush.bf16.msra.mxu0 %v3399
        %3552 = vmatpush.bf16.msra.mxu0 %v3397
        %3553 = vmatpush.bf16.msra.mxu0 %v3395
        %3554 = vmatpush.bf16.msra.mxu0 %v3393
        %3555 = vmatpush.bf16.msra.mxu0 %v3391
        %3556 = vmatpush.bf16.msra.mxu0 %v3389
        %3557 = vmatpush.bf16.msra.mxu0 %v3387
        %3558 = vmatmul.bf16.gmra.mxu0 %v3523
        %v3559 = vpop.f32.mrf.mxu0
        %v3560 = vadd.f32 %v3541, %v3559
        %v3561 = vpop.f32.mrf.mxu0
        %v3562 = vadd.f32 %v3543, %v3561
        %3563 = vmatmul.bf16.gmra.mxu0 %v3524
        %v3564 = vpop.f32.mrf.mxu0
        %v3565 = vadd.f32 %v3546, %v3564
        %v3566 = vpop.f32.mrf.mxu0
        %v3567 = vadd.f32 %v3548, %v3566
        %3568 = vdwg.mxu0
        %3569 = vmatpush.bf16.msra.mxu0 %v3386
        %3570 = vmatpush.bf16.msra.mxu0 %v3384
        %3571 = vmatpush.bf16.msra.mxu0 %v3382
        %3572 = vmatpush.bf16.msra.mxu0 %v3380
        %3573 = vmatpush.bf16.msra.mxu0 %v3378
        %3574 = vmatpush.bf16.msra.mxu0 %v3376
        %3575 = vmatpush.bf16.msra.mxu0 %v3374
        %3576 = vmatpush.bf16.msra.mxu0 %v3372
        %3577 = vmatmul.bf16.gmra.mxu0 %v3507
        %v3578 = vpop.f32.mrf.mxu0
        %v3579 = vadd.f32 0.0, %v3578
        %v3580 = vpop.f32.mrf.mxu0
        %v3581 = vadd.f32 0.0, %v3580
        %3582 = vmatmul.bf16.gmra.mxu0 %v3508
        %v3583 = vpop.f32.mrf.mxu0
        %v3584 = vadd.f32 0.0, %v3583
        %v3585 = vpop.f32.mrf.mxu0
        %v3586 = vadd.f32 0.0, %v3585
        %3587 = vdwg.mxu0
        %3588 = vmatpush.bf16.msra.mxu0 %v3402
        %3589 = vmatpush.bf16.msra.mxu0 %v3400
        %3590 = vmatpush.bf16.msra.mxu0 %v3398
        %3591 = vmatpush.bf16.msra.mxu0 %v3396
        %3592 = vmatpush.bf16.msra.mxu0 %v3394
        %3593 = vmatpush.bf16.msra.mxu0 %v3392
        %3594 = vmatpush.bf16.msra.mxu0 %v3390
        %3595 = vmatpush.bf16.msra.mxu0 %v3388
        %3596 = vmatmul.bf16.gmra.mxu0 %v3523
        %v3597 = vpop.f32.mrf.mxu0
        %v3598 = vadd.f32 %v3579, %v3597
        %v3599 = vpop.f32.mrf.mxu0
        %v3600 = vadd.f32 %v3581, %v3599
        %3601 = vmatmul.bf16.gmra.mxu0 %v3524
        %v3602 = vpop.f32.mrf.mxu0
        %v3603 = vadd.f32 %v3584, %v3602
        %v3604 = vpop.f32.mrf.mxu0
        %v3605 = vadd.f32 %v3586, %v3604
        %3606 = vdwg.mxu0
        %v3607 = vmul.f32 %v3560, %v3323
        %v3608 = vmul.f32 %v3598, %v3337
        %v3609 = vmul.f32 %v3562, %v3323
        %v3610 = vmul.f32 %v3600, %v3337
        %v3611 = vmul.f32 %v3565, %v3323
        %v3612 = vmul.f32 %v3603, %v3337
        %v3613 = vmul.f32 %v3567, %v3323
        %v3614 = vmul.f32 %v3605, %v3337
        %v3615 = vld [vmem:[%s204] sm:$0xff]
        %v3616 = vld [vmem:[%s204 + $0x8] sm:$0xff]
        %v3617 = vld [vmem:[%s204 + $0x10] sm:$0xff]
        %v3618 = vld [vmem:[%s204 + $0x18] sm:$0xff]
        %v3619 = vld [vmem:[%s204 + $0x20] sm:$0xff]
        %v3620 = vld [vmem:[%s204 + $0x28] sm:$0xff]
        %v3621 = vld [vmem:[%s204 + $0x30] sm:$0xff]
        %v3622 = vld [vmem:[%s204 + $0x38] sm:$0xff]
        %v3623 = vadd.f32 %v3615, %v3607
        %v3624 = vadd.f32 %v3616, %v3608
        %v3625 = vadd.f32 %v3617, %v3609
        %v3626 = vadd.f32 %v3618, %v3610
        %v3627 = vadd.f32 %v3619, %v3611
        %v3628 = vadd.f32 %v3620, %v3612
        %v3629 = vadd.f32 %v3621, %v3613
        %v3630 = vadd.f32 %v3622, %v3614
        %3631 = vst [vmem:[%s204] sm:$0xff] %v3623
        %3632 = vst [vmem:[%s204 + $0x8] sm:$0xff] %v3624
        %3633 = vst [vmem:[%s204 + $0x10] sm:$0xff] %v3625
        %3634 = vst [vmem:[%s204 + $0x18] sm:$0xff] %v3626
        %3635 = vst [vmem:[%s204 + $0x20] sm:$0xff] %v3627
        %3636 = vst [vmem:[%s204 + $0x28] sm:$0xff] %v3628
        %3637 = vst [vmem:[%s204 + $0x30] sm:$0xff] %v3629
        %3638 = vst [vmem:[%s204 + $0x38] sm:$0xff] %v3630
        %v3639 = vld [vmem:[#allocation2] sm:$0xf]
        %v3640 = vld [vmem:[#allocation2 + $0x4] sm:$0xf]
        %v3641 = vld [vmem:[#allocation2 + $0x8] sm:$0xf]
        %v3642 = vld [vmem:[#allocation2 + $0xc] sm:$0xf]
        %v3643 = vld [vmem:[#allocation2 + $0x10] sm:$0xf]
        %v3644 = vld [vmem:[#allocation2 + $0x14] sm:$0xf]
        %v3645 = vld [vmem:[#allocation2 + $0x18] sm:$0xf]
        %v3646 = vld [vmem:[#allocation2 + $0x1c] sm:$0xf]
        %v3647 = vld [vmem:[#allocation2 + $0x20] sm:$0xf]
        %v3648 = vld [vmem:[#allocation2 + $0x24] sm:$0xf]
        %v3649 = vld [vmem:[#allocation2 + $0x28] sm:$0xf]
        %v3650 = vld [vmem:[#allocation2 + $0x2c] sm:$0xf]
        %v3651 = vld [vmem:[#allocation2 + $0x30] sm:$0xf]
        %v3652 = vld [vmem:[#allocation2 + $0x34] sm:$0xf]
        %v3653 = vld [vmem:[#allocation2 + $0x38] sm:$0xf]
        %v3654 = vld [vmem:[#allocation2 + $0x3c] sm:$0xf]
        %v3655 = vld [vmem:[#allocation2 + $0x40] sm:$0xf]
        %v3656 = vld [vmem:[#allocation2 + $0x44] sm:$0xf]
        %v3657 = vld [vmem:[#allocation2 + $0x48] sm:$0xf]
        %v3658 = vld [vmem:[#allocation2 + $0x4c] sm:$0xf]
        %v3659 = vld [vmem:[#allocation2 + $0x50] sm:$0xf]
        %v3660 = vld [vmem:[#allocation2 + $0x54] sm:$0xf]
        %v3661 = vld [vmem:[#allocation2 + $0x58] sm:$0xf]
        %v3662 = vld [vmem:[#allocation2 + $0x5c] sm:$0xf]
        %v3663 = vld [vmem:[#allocation2 + $0x60] sm:$0xf]
        %v3664 = vld [vmem:[#allocation2 + $0x64] sm:$0xf]
        %v3665 = vld [vmem:[#allocation2 + $0x68] sm:$0xf]
        %v3666 = vld [vmem:[#allocation2 + $0x6c] sm:$0xf]
        %v3667 = vld [vmem:[#allocation2 + $0x70] sm:$0xf]
        %v3668 = vld [vmem:[#allocation2 + $0x74] sm:$0xf]
        %v3669 = vld [vmem:[#allocation2 + $0x78] sm:$0xf]
        %v3670 = vld [vmem:[#allocation2 + $0x7c] sm:$0xf]
        %v3703 = vunpack.c.l.b16 %v3639
        %v3704 = vunpack.c.l.b16 %v3640
        %v3705 = vunpack.c.l.b16 %v3641
        %v3706 = vunpack.c.l.b16 %v3642
        %v3707 = vunpack.c.l.b16 %v3643
        %v3708 = vunpack.c.l.b16 %v3644
        %v3709 = vunpack.c.l.b16 %v3645
        %v3710 = vunpack.c.l.b16 %v3646
        %v3711 = vunpack.c.l.b16 %v3647
        %v3712 = vunpack.c.l.b16 %v3648
        %v3713 = vunpack.c.l.b16 %v3649
        %v3714 = vunpack.c.l.b16 %v3650
        %v3715 = vunpack.c.l.b16 %v3651
        %v3716 = vunpack.c.l.b16 %v3652
        %v3717 = vunpack.c.l.b16 %v3653
        %v3718 = vunpack.c.l.b16 %v3654
        %v3719 = vunpack.c.l.b16 %v3655
        %v3720 = vunpack.c.l.b16 %v3656
        %v3721 = vunpack.c.l.b16 %v3657
        %v3722 = vunpack.c.l.b16 %v3658
        %v3723 = vunpack.c.l.b16 %v3659
        %v3724 = vunpack.c.l.b16 %v3660
        %v3725 = vunpack.c.l.b16 %v3661
        %v3726 = vunpack.c.l.b16 %v3662
        %v3727 = vunpack.c.l.b16 %v3663
        %v3728 = vunpack.c.l.b16 %v3664
        %v3729 = vunpack.c.l.b16 %v3665
        %v3730 = vunpack.c.l.b16 %v3666
        %v3731 = vunpack.c.l.b16 %v3667
        %v3732 = vunpack.c.l.b16 %v3668
        %v3733 = vunpack.c.l.b16 %v3669
        %v3734 = vunpack.c.l.b16 %v3670
        %v3735 = vpack.c.b16 %v3704, %v3703
        %v3736 = vpack.c.b16 %v3706, %v3705
        %v3737 = vpack.c.b16 %v3708, %v3707
        %v3738 = vpack.c.b16 %v3710, %v3709
        %v3739 = vpack.c.b16 %v3712, %v3711
        %v3740 = vpack.c.b16 %v3714, %v3713
        %v3741 = vpack.c.b16 %v3716, %v3715
        %v3742 = vpack.c.b16 %v3718, %v3717
        %v3743 = vpack.c.b16 %v3720, %v3719
        %v3744 = vpack.c.b16 %v3722, %v3721
        %v3745 = vpack.c.b16 %v3724, %v3723
        %v3746 = vpack.c.b16 %v3726, %v3725
        %v3747 = vpack.c.b16 %v3728, %v3727
        %v3748 = vpack.c.b16 %v3730, %v3729
        %v3749 = vpack.c.b16 %v3732, %v3731
        %v3750 = vpack.c.b16 %v3734, %v3733
        %3751 = vrot.lane.b32.xlu0 %v3735, 112
        %v3752 = vpop.permute.xlu0 %3751
        %3753 = vrot.lane.b32.xlu0 %v3736, 112
        %v3754 = vpop.permute.xlu0 %3753
        %3755 = vrot.lane.b32.xlu0 %v3737, 112
        %v3756 = vpop.permute.xlu0 %3755
        %3757 = vrot.lane.b32.xlu0 %v3738, 112
        %v3758 = vpop.permute.xlu0 %3757
        %3759 = vrot.lane.b32.xlu0 %v3739, 112
        %v3760 = vpop.permute.xlu0 %3759
        %3761 = vrot.lane.b32.xlu0 %v3740, 112
        %v3762 = vpop.permute.xlu0 %3761
        %3763 = vrot.lane.b32.xlu0 %v3741, 112
        %v3764 = vpop.permute.xlu0 %3763
        %3765 = vrot.lane.b32.xlu0 %v3742, 112
        %v3766 = vpop.permute.xlu0 %3765
        %3767 = vrot.lane.b32.xlu0 %v3743, 112
        %v3768 = vpop.permute.xlu0 %3767
        %3769 = vrot.lane.b32.xlu0 %v3744, 112
        %v3770 = vpop.permute.xlu0 %3769
        %3771 = vrot.lane.b32.xlu0 %v3745, 112
        %v3772 = vpop.permute.xlu0 %3771
        %3773 = vrot.lane.b32.xlu0 %v3746, 112
        %v3774 = vpop.permute.xlu0 %3773
        %3775 = vrot.lane.b32.xlu0 %v3747, 112
        %v3776 = vpop.permute.xlu0 %3775
        %3777 = vrot.lane.b32.xlu0 %v3748, 112
        %v3778 = vpop.permute.xlu0 %3777
        %3779 = vrot.lane.b32.xlu0 %v3749, 112
        %v3780 = vpop.permute.xlu0 %3779
        %3781 = vrot.lane.b32.xlu0 %v3750, 112
        %v3782 = vpop.permute.xlu0 %3781
        %3783 = vrot.lane.b32.xlu0 %v1577, 112
        %v3784 = vpop.permute.xlu0 %3783
        %3785 = vrot.lane.b32.xlu0 %v1578, 112
        %v3786 = vpop.permute.xlu0 %3785
        %3787 = vrot.lane.b32.xlu0 %v1579, 112
        %v3788 = vpop.permute.xlu0 %3787
        %3789 = vrot.lane.b32.xlu0 %v1580, 112
        %v3790 = vpop.permute.xlu0 %3789
        %3791 = vrot.lane.b32.xlu0 %v1581, 112
        %v3792 = vpop.permute.xlu0 %3791
        %3793 = vrot.lane.b32.xlu0 %v1582, 112
        %v3794 = vpop.permute.xlu0 %3793
        %3795 = vrot.lane.b32.xlu0 %v1583, 112
        %v3796 = vpop.permute.xlu0 %3795
        %3797 = vrot.lane.b32.xlu0 %v1584, 112
        %v3798 = vpop.permute.xlu0 %3797
        %3799 = vrot.lane.b32.xlu0 %v1585, 112
        %v3800 = vpop.permute.xlu0 %3799
        %3801 = vrot.lane.b32.xlu0 %v1586, 112
        %v3802 = vpop.permute.xlu0 %3801
        %3803 = vrot.lane.b32.xlu0 %v1587, 112
        %v3804 = vpop.permute.xlu0 %3803
        %3805 = vrot.lane.b32.xlu0 %v1588, 112
        %v3806 = vpop.permute.xlu0 %3805
        %3807 = vrot.lane.b32.xlu0 %v1589, 112
        %v3808 = vpop.permute.xlu0 %3807
        %3809 = vrot.lane.b32.xlu0 %v1590, 112
        %v3810 = vpop.permute.xlu0 %3809
        %3811 = vrot.lane.b32.xlu0 %v1591, 112
        %v3812 = vpop.permute.xlu0 %3811
        %3813 = vrot.lane.b32.xlu0 %v1592, 112
        %v3814 = vpop.permute.xlu0 %3813
        %v3816 = vsel %vm1593, %v3752, 0
        %v3819 = vsel %vm1593, %v3754, 0
        %v3822 = vsel %vm1593, %v3756, 0
        %v3825 = vsel %vm1593, %v3758, 0
        %v3828 = vsel %vm1593, %v3760, 0
        %v3831 = vsel %vm1593, %v3762, 0
        %v3834 = vsel %vm1593, %v3764, 0
        %v3837 = vsel %vm1593, %v3766, 0
        %v3840 = vsel %vm1593, %v3768, 0
        %v3843 = vsel %vm1593, %v3770, 0
        %v3846 = vsel %vm1593, %v3772, 0
        %v3849 = vsel %vm1593, %v3774, 0
        %v3852 = vsel %vm1593, %v3776, 0
        %v3855 = vsel %vm1593, %v3778, 0
        %v3858 = vsel %vm1593, %v3780, 0
        %v3861 = vsel %vm1593, %v3782, 0
        %v3864 = vsel %vm1593, %v3784, 0
        %v3867 = vsel %vm1593, %v3786, 0
        %v3870 = vsel %vm1593, %v3788, 0
        %v3873 = vsel %vm1593, %v3790, 0
        %v3876 = vsel %vm1593, %v3792, 0
        %v3879 = vsel %vm1593, %v3794, 0
        %v3882 = vsel %vm1593, %v3796, 0
        %v3885 = vsel %vm1593, %v3798, 0
        %v3888 = vsel %vm1593, %v3800, 0
        %v3891 = vsel %vm1593, %v3802, 0
        %v3894 = vsel %vm1593, %v3804, 0
        %v3897 = vsel %vm1593, %v3806, 0
        %v3900 = vsel %vm1593, %v3808, 0
        %v3903 = vsel %vm1593, %v3810, 0
        %v3906 = vsel %vm1593, %v3812, 0
        %v3909 = vsel %vm1593, %v3814, 0
        %3911 = vmatpush.bf16.xpose.msra.mxu0 %v3885
        %3912 = vmatpush.bf16.xpose.msra.mxu0 %v3882
        %3913 = vmatpush.bf16.xpose.msra.mxu0 %v3879
        %3914 = vmatpush.bf16.xpose.msra.mxu0 %v3876
        %3915 = vmatpush.bf16.xpose.msra.mxu0 %v3873
        %3916 = vmatpush.bf16.xpose.msra.mxu0 %v3870
        %3917 = vmatpush.bf16.xpose.msra.mxu0 %v3867
        %3918 = vmatpush.bf16.xpose.msra.mxu0 %v3864
        %3919 = vmatmul.bf16.gmra.mxu0 %v3816
        %v3920 = vpop.f32.mrf.mxu0
        %v3921 = vadd.f32 0.0, %v3920
        %v3922 = vpop.f32.mrf.mxu0
        %v3923 = vadd.f32 0.0, %v3922
        %3924 = vmatmul.bf16.gmra.mxu0 %v3819
        %v3925 = vpop.f32.mrf.mxu0
        %v3926 = vadd.f32 0.0, %v3925
        %v3927 = vpop.f32.mrf.mxu0
        %v3928 = vadd.f32 0.0, %v3927
        %3929 = vmatmul.bf16.gmra.mxu0 %v3822
        %v3930 = vpop.f32.mrf.mxu0
        %v3931 = vadd.f32 0.0, %v3930
        %v3932 = vpop.f32.mrf.mxu0
        %v3933 = vadd.f32 0.0, %v3932
        %3934 = vmatmul.bf16.gmra.mxu0 %v3825
        %v3935 = vpop.f32.mrf.mxu0
        %v3936 = vadd.f32 0.0, %v3935
        %v3937 = vpop.f32.mrf.mxu0
        %v3938 = vadd.f32 0.0, %v3937
        %3939 = vmatmul.bf16.gmra.mxu0 %v3828
        %v3940 = vpop.f32.mrf.mxu0
        %v3941 = vadd.f32 0.0, %v3940
        %v3942 = vpop.f32.mrf.mxu0
        %v3943 = vadd.f32 0.0, %v3942
        %3944 = vmatmul.bf16.gmra.mxu0 %v3831
        %v3945 = vpop.f32.mrf.mxu0
        %v3946 = vadd.f32 0.0, %v3945
        %v3947 = vpop.f32.mrf.mxu0
        %v3948 = vadd.f32 0.0, %v3947
        %3949 = vmatmul.bf16.gmra.mxu0 %v3834
        %v3950 = vpop.f32.mrf.mxu0
        %v3951 = vadd.f32 0.0, %v3950
        %v3952 = vpop.f32.mrf.mxu0
        %v3953 = vadd.f32 0.0, %v3952
        %3954 = vmatmul.bf16.gmra.mxu0 %v3837
        %v3955 = vpop.f32.mrf.mxu0
        %v3956 = vadd.f32 0.0, %v3955
        %v3957 = vpop.f32.mrf.mxu0
        %v3958 = vadd.f32 0.0, %v3957
        %3959 = vmatmul.bf16.gmra.mxu0 %v3840
        %v3960 = vpop.f32.mrf.mxu0
        %v3961 = vadd.f32 0.0, %v3960
        %v3962 = vpop.f32.mrf.mxu0
        %v3963 = vadd.f32 0.0, %v3962
        %3964 = vmatmul.bf16.gmra.mxu0 %v3843
        %v3965 = vpop.f32.mrf.mxu0
        %v3966 = vadd.f32 0.0, %v3965
        %v3967 = vpop.f32.mrf.mxu0
        %v3968 = vadd.f32 0.0, %v3967
        %3969 = vmatmul.bf16.gmra.mxu0 %v3846
        %v3970 = vpop.f32.mrf.mxu0
        %v3971 = vadd.f32 0.0, %v3970
        %v3972 = vpop.f32.mrf.mxu0
        %v3973 = vadd.f32 0.0, %v3972
        %3974 = vmatmul.bf16.gmra.mxu0 %v3849
        %v3975 = vpop.f32.mrf.mxu0
        %v3976 = vadd.f32 0.0, %v3975
        %v3977 = vpop.f32.mrf.mxu0
        %v3978 = vadd.f32 0.0, %v3977
        %3979 = vmatmul.bf16.gmra.mxu0 %v3852
        %v3980 = vpop.f32.mrf.mxu0
        %v3981 = vadd.f32 0.0, %v3980
        %v3982 = vpop.f32.mrf.mxu0
        %v3983 = vadd.f32 0.0, %v3982
        %3984 = vmatmul.bf16.gmra.mxu0 %v3855
        %v3985 = vpop.f32.mrf.mxu0
        %v3986 = vadd.f32 0.0, %v3985
        %v3987 = vpop.f32.mrf.mxu0
        %v3988 = vadd.f32 0.0, %v3987
        %3989 = vmatmul.bf16.gmra.mxu0 %v3858
        %v3990 = vpop.f32.mrf.mxu0
        %v3991 = vadd.f32 0.0, %v3990
        %v3992 = vpop.f32.mrf.mxu0
        %v3993 = vadd.f32 0.0, %v3992
        %3994 = vmatmul.bf16.gmra.mxu0 %v3861
        %v3995 = vpop.f32.mrf.mxu0
        %v3996 = vadd.f32 0.0, %v3995
        %v3997 = vpop.f32.mrf.mxu0
        %v3998 = vadd.f32 0.0, %v3997
        %3999 = vdwg.mxu0
        %4000 = vmatpush.bf16.xpose.msra.mxu0 %v3909
        %4001 = vmatpush.bf16.xpose.msra.mxu0 %v3906
        %4002 = vmatpush.bf16.xpose.msra.mxu0 %v3903
        %4003 = vmatpush.bf16.xpose.msra.mxu0 %v3900
        %4004 = vmatpush.bf16.xpose.msra.mxu0 %v3897
        %4005 = vmatpush.bf16.xpose.msra.mxu0 %v3894
        %4006 = vmatpush.bf16.xpose.msra.mxu0 %v3891
        %4007 = vmatpush.bf16.xpose.msra.mxu0 %v3888
        %4008 = vmatmul.bf16.gmra.mxu0 %v3816
        %v4009 = vpop.f32.mrf.mxu0
        %v4010 = vadd.f32 0.0, %v4009
        %v4011 = vpop.f32.mrf.mxu0
        %v4012 = vadd.f32 0.0, %v4011
        %4013 = vmatmul.bf16.gmra.mxu0 %v3819
        %v4014 = vpop.f32.mrf.mxu0
        %v4015 = vadd.f32 0.0, %v4014
        %v4016 = vpop.f32.mrf.mxu0
        %v4017 = vadd.f32 0.0, %v4016
        %4018 = vmatmul.bf16.gmra.mxu0 %v3822
        %v4019 = vpop.f32.mrf.mxu0
        %v4020 = vadd.f32 0.0, %v4019
        %v4021 = vpop.f32.mrf.mxu0
        %v4022 = vadd.f32 0.0, %v4021
        %4023 = vmatmul.bf16.gmra.mxu0 %v3825
        %v4024 = vpop.f32.mrf.mxu0
        %v4025 = vadd.f32 0.0, %v4024
        %v4026 = vpop.f32.mrf.mxu0
        %v4027 = vadd.f32 0.0, %v4026
        %4028 = vmatmul.bf16.gmra.mxu0 %v3828
        %v4029 = vpop.f32.mrf.mxu0
        %v4030 = vadd.f32 0.0, %v4029
        %v4031 = vpop.f32.mrf.mxu0
        %v4032 = vadd.f32 0.0, %v4031
        %4033 = vmatmul.bf16.gmra.mxu0 %v3831
        %v4034 = vpop.f32.mrf.mxu0
        %v4035 = vadd.f32 0.0, %v4034
        %v4036 = vpop.f32.mrf.mxu0
        %v4037 = vadd.f32 0.0, %v4036
        %4038 = vmatmul.bf16.gmra.mxu0 %v3834
        %v4039 = vpop.f32.mrf.mxu0
        %v4040 = vadd.f32 0.0, %v4039
        %v4041 = vpop.f32.mrf.mxu0
        %v4042 = vadd.f32 0.0, %v4041
        %4043 = vmatmul.bf16.gmra.mxu0 %v3837
        %v4044 = vpop.f32.mrf.mxu0
        %v4045 = vadd.f32 0.0, %v4044
        %v4046 = vpop.f32.mrf.mxu0
        %v4047 = vadd.f32 0.0, %v4046
        %4048 = vmatmul.bf16.gmra.mxu0 %v3840
        %v4049 = vpop.f32.mrf.mxu0
        %v4050 = vadd.f32 0.0, %v4049
        %v4051 = vpop.f32.mrf.mxu0
        %v4052 = vadd.f32 0.0, %v4051
        %4053 = vmatmul.bf16.gmra.mxu0 %v3843
        %v4054 = vpop.f32.mrf.mxu0
        %v4055 = vadd.f32 0.0, %v4054
        %v4056 = vpop.f32.mrf.mxu0
        %v4057 = vadd.f32 0.0, %v4056
        %4058 = vmatmul.bf16.gmra.mxu0 %v3846
        %v4059 = vpop.f32.mrf.mxu0
        %v4060 = vadd.f32 0.0, %v4059
        %v4061 = vpop.f32.mrf.mxu0
        %v4062 = vadd.f32 0.0, %v4061
        %4063 = vmatmul.bf16.gmra.mxu0 %v3849
        %v4064 = vpop.f32.mrf.mxu0
        %v4065 = vadd.f32 0.0, %v4064
        %v4066 = vpop.f32.mrf.mxu0
        %v4067 = vadd.f32 0.0, %v4066
        %4068 = vmatmul.bf16.gmra.mxu0 %v3852
        %v4069 = vpop.f32.mrf.mxu0
        %v4070 = vadd.f32 0.0, %v4069
        %v4071 = vpop.f32.mrf.mxu0
        %v4072 = vadd.f32 0.0, %v4071
        %4073 = vmatmul.bf16.gmra.mxu0 %v3855
        %v4074 = vpop.f32.mrf.mxu0
        %v4075 = vadd.f32 0.0, %v4074
        %v4076 = vpop.f32.mrf.mxu0
        %v4077 = vadd.f32 0.0, %v4076
        %4078 = vmatmul.bf16.gmra.mxu0 %v3858
        %v4079 = vpop.f32.mrf.mxu0
        %v4080 = vadd.f32 0.0, %v4079
        %v4081 = vpop.f32.mrf.mxu0
        %v4082 = vadd.f32 0.0, %v4081
        %4083 = vmatmul.bf16.gmra.mxu0 %v3861
        %v4084 = vpop.f32.mrf.mxu0
        %v4085 = vadd.f32 0.0, %v4084
        %v4086 = vpop.f32.mrf.mxu0
        %v4087 = vadd.f32 0.0, %v4086
        %4088 = vdwg.mxu0
        %v4089 = vmax.f32 %v3921, %v3926
        %v4090 = vmax.f32 %v3923, %v3928
        %v4091 = vmax.f32 %v4089, %v3931
        %v4092 = vmax.f32 %v4090, %v3933
        %v4093 = vmax.f32 %v4091, %v3936
        %v4094 = vmax.f32 %v4092, %v3938
        %v4095 = vmax.f32 %v4093, %v3941
        %v4096 = vmax.f32 %v4094, %v3943
        %v4097 = vmax.f32 %v4095, %v3946
        %v4098 = vmax.f32 %v4096, %v3948
        %v4099 = vmax.f32 %v4097, %v3951
        %v4100 = vmax.f32 %v4098, %v3953
        %v4101 = vmax.f32 %v4099, %v3956
        %v4102 = vmax.f32 %v4100, %v3958
        %v4103 = vmax.f32 %v4101, %v3961
        %v4104 = vmax.f32 %v4102, %v3963
        %v4105 = vmax.f32 %v4103, %v3966
        %v4106 = vmax.f32 %v4104, %v3968
        %v4107 = vmax.f32 %v4105, %v3971
        %v4108 = vmax.f32 %v4106, %v3973
        %v4109 = vmax.f32 %v4107, %v3976
        %v4110 = vmax.f32 %v4108, %v3978
        %v4111 = vmax.f32 %v4109, %v3981
        %v4112 = vmax.f32 %v4110, %v3983
        %v4113 = vmax.f32 %v4111, %v3986
        %v4114 = vmax.f32 %v4112, %v3988
        %v4115 = vmax.f32 %v4113, %v3991
        %v4116 = vmax.f32 %v4114, %v3993
        %v4117 = vmax.f32 %v4115, %v3996
        %v4118 = vmax.f32 %v4116, %v3998
        %v4119 = vmax.f32 %v4117, %v4118
        %v4120 = vrot.slane %v4119, 4
        %v4121 = vmax.f32 %v4119, %v4120
        %v4122 = vrot.slane %v4121, 2
        %v4123 = vmax.f32 %v4121, %v4122
        %v4124 = vrot.slane %v4123, 1
        %v4125 = vmax.f32 %v4123, %v4124
        %v4126 = vmax.f32 %v4010, %v4015
        %v4127 = vmax.f32 %v4012, %v4017
        %v4128 = vmax.f32 %v4126, %v4020
        %v4129 = vmax.f32 %v4127, %v4022
        %v4130 = vmax.f32 %v4128, %v4025
        %v4131 = vmax.f32 %v4129, %v4027
        %v4132 = vmax.f32 %v4130, %v4030
        %v4133 = vmax.f32 %v4131, %v4032
        %v4134 = vmax.f32 %v4132, %v4035
        %v4135 = vmax.f32 %v4133, %v4037
        %v4136 = vmax.f32 %v4134, %v4040
        %v4137 = vmax.f32 %v4135, %v4042
        %v4138 = vmax.f32 %v4136, %v4045
        %v4139 = vmax.f32 %v4137, %v4047
        %v4140 = vmax.f32 %v4138, %v4050
        %v4141 = vmax.f32 %v4139, %v4052
        %v4142 = vmax.f32 %v4140, %v4055
        %v4143 = vmax.f32 %v4141, %v4057
        %v4144 = vmax.f32 %v4142, %v4060
        %v4145 = vmax.f32 %v4143, %v4062
        %v4146 = vmax.f32 %v4144, %v4065
        %v4147 = vmax.f32 %v4145, %v4067
        %v4148 = vmax.f32 %v4146, %v4070
        %v4149 = vmax.f32 %v4147, %v4072
        %v4150 = vmax.f32 %v4148, %v4075
        %v4151 = vmax.f32 %v4149, %v4077
        %v4152 = vmax.f32 %v4150, %v4080
        %v4153 = vmax.f32 %v4151, %v4082
        %v4154 = vmax.f32 %v4152, %v4085
        %v4155 = vmax.f32 %v4153, %v4087
        %v4156 = vmax.f32 %v4154, %v4155
        %v4157 = vrot.slane %v4156, 4
        %v4158 = vmax.f32 %v4156, %v4157
        %v4159 = vrot.slane %v4158, 2
        %v4160 = vmax.f32 %v4158, %v4159
        %v4161 = vrot.slane %v4160, 1
        %v4162 = vmax.f32 %v4160, %v4161
        %v4163 = vsub.f32 %v3921, %v4125
        %v4164 = vsub.f32 %v4010, %v4162
        %v4165 = vsub.f32 %v3923, %v4125
        %v4166 = vsub.f32 %v4012, %v4162
        %v4167 = vsub.f32 %v3926, %v4125
        %v4168 = vsub.f32 %v4015, %v4162
        %v4169 = vsub.f32 %v3928, %v4125
        %v4170 = vsub.f32 %v4017, %v4162
        %v4171 = vsub.f32 %v3931, %v4125
        %v4172 = vsub.f32 %v4020, %v4162
        %v4173 = vsub.f32 %v3933, %v4125
        %v4174 = vsub.f32 %v4022, %v4162
        %v4175 = vsub.f32 %v3936, %v4125
        %v4176 = vsub.f32 %v4025, %v4162
        %v4177 = vsub.f32 %v3938, %v4125
        %v4178 = vsub.f32 %v4027, %v4162
        %v4179 = vsub.f32 %v3941, %v4125
        %v4180 = vsub.f32 %v4030, %v4162
        %v4181 = vsub.f32 %v3943, %v4125
        %v4182 = vsub.f32 %v4032, %v4162
        %v4183 = vsub.f32 %v3946, %v4125
        %v4184 = vsub.f32 %v4035, %v4162
        %v4185 = vsub.f32 %v3948, %v4125
        %v4186 = vsub.f32 %v4037, %v4162
        %v4187 = vsub.f32 %v3951, %v4125
        %v4188 = vsub.f32 %v4040, %v4162
        %v4189 = vsub.f32 %v3953, %v4125
        %v4190 = vsub.f32 %v4042, %v4162
        %v4191 = vsub.f32 %v3956, %v4125
        %v4192 = vsub.f32 %v4045, %v4162
        %v4193 = vsub.f32 %v3958, %v4125
        %v4194 = vsub.f32 %v4047, %v4162
        %v4195 = vsub.f32 %v3961, %v4125
        %v4196 = vsub.f32 %v4050, %v4162
        %v4197 = vsub.f32 %v3963, %v4125
        %v4198 = vsub.f32 %v4052, %v4162
        %v4199 = vsub.f32 %v3966, %v4125
        %v4200 = vsub.f32 %v4055, %v4162
        %v4201 = vsub.f32 %v3968, %v4125
        %v4202 = vsub.f32 %v4057, %v4162
        %v4203 = vsub.f32 %v3971, %v4125
        %v4204 = vsub.f32 %v4060, %v4162
        %v4205 = vsub.f32 %v3973, %v4125
        %v4206 = vsub.f32 %v4062, %v4162
        %v4207 = vsub.f32 %v3976, %v4125
        %v4208 = vsub.f32 %v4065, %v4162
        %v4209 = vsub.f32 %v3978, %v4125
        %v4210 = vsub.f32 %v4067, %v4162
        %v4211 = vsub.f32 %v3981, %v4125
        %v4212 = vsub.f32 %v4070, %v4162
        %v4213 = vsub.f32 %v3983, %v4125
        %v4214 = vsub.f32 %v4072, %v4162
        %v4215 = vsub.f32 %v3986, %v4125
        %v4216 = vsub.f32 %v4075, %v4162
        %v4217 = vsub.f32 %v3988, %v4125
        %v4218 = vsub.f32 %v4077, %v4162
        %v4219 = vsub.f32 %v3991, %v4125
        %v4220 = vsub.f32 %v4080, %v4162
        %v4221 = vsub.f32 %v3993, %v4125
        %v4222 = vsub.f32 %v4082, %v4162
        %v4223 = vsub.f32 %v3996, %v4125
        %v4224 = vsub.f32 %v4085, %v4162
        %v4225 = vsub.f32 %v3998, %v4125
        %v4226 = vsub.f32 %v4087, %v4162
        %v4227 = vmul.f32 %v4163, 1.442695
        %v4228 = vpow.pop %v4227
        %v4229 = vmul.f32 %v4164, 1.442695
        %v4230 = vpow.pop %v4229
        %v4231 = vmul.f32 %v4165, 1.442695
        %v4232 = vpow.pop %v4231
        %v4233 = vmul.f32 %v4166, 1.442695
        %v4234 = vpow.pop %v4233
        %v4235 = vmul.f32 %v4167, 1.442695
        %v4236 = vpow.pop %v4235
        %v4237 = vmul.f32 %v4168, 1.442695
        %v4238 = vpow.pop %v4237
        %v4239 = vmul.f32 %v4169, 1.442695
        %v4240 = vpow.pop %v4239
        %v4241 = vmul.f32 %v4170, 1.442695
        %v4242 = vpow.pop %v4241
        %v4243 = vmul.f32 %v4171, 1.442695
        %v4244 = vpow.pop %v4243
        %v4245 = vmul.f32 %v4172, 1.442695
        %v4246 = vpow.pop %v4245
        %v4247 = vmul.f32 %v4173, 1.442695
        %v4248 = vpow.pop %v4247
        %v4249 = vmul.f32 %v4174, 1.442695
        %v4250 = vpow.pop %v4249
        %v4251 = vmul.f32 %v4175, 1.442695
        %v4252 = vpow.pop %v4251
        %v4253 = vmul.f32 %v4176, 1.442695
        %v4254 = vpow.pop %v4253
        %v4255 = vmul.f32 %v4177, 1.442695
        %v4256 = vpow.pop %v4255
        %v4257 = vmul.f32 %v4178, 1.442695
        %v4258 = vpow.pop %v4257
        %v4259 = vmul.f32 %v4179, 1.442695
        %v4260 = vpow.pop %v4259
        %v4261 = vmul.f32 %v4180, 1.442695
        %v4262 = vpow.pop %v4261
        %v4263 = vmul.f32 %v4181, 1.442695
        %v4264 = vpow.pop %v4263
        %v4265 = vmul.f32 %v4182, 1.442695
        %v4266 = vpow.pop %v4265
        %v4267 = vmul.f32 %v4183, 1.442695
        %v4268 = vpow.pop %v4267
        %v4269 = vmul.f32 %v4184, 1.442695
        %v4270 = vpow.pop %v4269
        %v4271 = vmul.f32 %v4185, 1.442695
        %v4272 = vpow.pop %v4271
        %v4273 = vmul.f32 %v4186, 1.442695
        %v4274 = vpow.pop %v4273
        %v4275 = vmul.f32 %v4187, 1.442695
        %v4276 = vpow.pop %v4275
        %v4277 = vmul.f32 %v4188, 1.442695
        %v4278 = vpow.pop %v4277
        %v4279 = vmul.f32 %v4189, 1.442695
        %v4280 = vpow.pop %v4279
        %v4281 = vmul.f32 %v4190, 1.442695
        %v4282 = vpow.pop %v4281
        %v4283 = vmul.f32 %v4191, 1.442695
        %v4284 = vpow.pop %v4283
        %v4285 = vmul.f32 %v4192, 1.442695
        %v4286 = vpow.pop %v4285
        %v4287 = vmul.f32 %v4193, 1.442695
        %v4288 = vpow.pop %v4287
        %v4289 = vmul.f32 %v4194, 1.442695
        %v4290 = vpow.pop %v4289
        %v4291 = vmul.f32 %v4195, 1.442695
        %v4292 = vpow.pop %v4291
        %v4293 = vmul.f32 %v4196, 1.442695
        %v4294 = vpow.pop %v4293
        %v4295 = vmul.f32 %v4197, 1.442695
        %v4296 = vpow.pop %v4295
        %v4297 = vmul.f32 %v4198, 1.442695
        %v4298 = vpow.pop %v4297
        %v4299 = vmul.f32 %v4199, 1.442695
        %v4300 = vpow.pop %v4299
        %v4301 = vmul.f32 %v4200, 1.442695
        %v4302 = vpow.pop %v4301
        %v4303 = vmul.f32 %v4201, 1.442695
        %v4304 = vpow.pop %v4303
        %v4305 = vmul.f32 %v4202, 1.442695
        %v4306 = vpow.pop %v4305
        %v4307 = vmul.f32 %v4203, 1.442695
        %v4308 = vpow.pop %v4307
        %v4309 = vmul.f32 %v4204, 1.442695
        %v4310 = vpow.pop %v4309
        %v4311 = vmul.f32 %v4205, 1.442695
        %v4312 = vpow.pop %v4311
        %v4313 = vmul.f32 %v4206, 1.442695
        %v4314 = vpow.pop %v4313
        %v4315 = vmul.f32 %v4207, 1.442695
        %v4316 = vpow.pop %v4315
        %v4317 = vmul.f32 %v4208, 1.442695
        %v4318 = vpow.pop %v4317
        %v4319 = vmul.f32 %v4209, 1.442695
        %v4320 = vpow.pop %v4319
        %v4321 = vmul.f32 %v4210, 1.442695
        %v4322 = vpow.pop %v4321
        %v4323 = vmul.f32 %v4211, 1.442695
        %v4324 = vpow.pop %v4323
        %v4325 = vmul.f32 %v4212, 1.442695
        %v4326 = vpow.pop %v4325
        %v4327 = vmul.f32 %v4213, 1.442695
        %v4328 = vpow.pop %v4327
        %v4329 = vmul.f32 %v4214, 1.442695
        %v4330 = vpow.pop %v4329
        %v4331 = vmul.f32 %v4215, 1.442695
        %v4332 = vpow.pop %v4331
        %v4333 = vmul.f32 %v4216, 1.442695
        %v4334 = vpow.pop %v4333
        %v4335 = vmul.f32 %v4217, 1.442695
        %v4336 = vpow.pop %v4335
        %v4337 = vmul.f32 %v4218, 1.442695
        %v4338 = vpow.pop %v4337
        %v4339 = vmul.f32 %v4219, 1.442695
        %v4340 = vpow.pop %v4339
        %v4341 = vmul.f32 %v4220, 1.442695
        %v4342 = vpow.pop %v4341
        %v4343 = vmul.f32 %v4221, 1.442695
        %v4344 = vpow.pop %v4343
        %v4345 = vmul.f32 %v4222, 1.442695
        %v4346 = vpow.pop %v4345
        %v4347 = vmul.f32 %v4223, 1.442695
        %v4348 = vpow.pop %v4347
        %v4349 = vmul.f32 %v4224, 1.442695
        %v4350 = vpow.pop %v4349
        %v4351 = vmul.f32 %v4225, 1.442695
        %v4352 = vpow.pop %v4351
        %v4353 = vmul.f32 %v4226, 1.442695
        %v4354 = vpow.pop %v4353
        %v4355 = vadd.f32 %v4228, %v4232
        %v4356 = vadd.f32 %v4355, %v4236
        %v4357 = vadd.f32 %v4356, %v4240
        %v4358 = vadd.f32 %v4357, %v4244
        %v4359 = vadd.f32 %v4358, %v4248
        %v4360 = vadd.f32 %v4359, %v4252
        %v4361 = vadd.f32 %v4360, %v4256
        %v4362 = vadd.f32 %v4361, %v4260
        %v4363 = vadd.f32 %v4362, %v4264
        %v4364 = vadd.f32 %v4363, %v4268
        %v4365 = vadd.f32 %v4364, %v4272
        %v4366 = vadd.f32 %v4365, %v4276
        %v4367 = vadd.f32 %v4366, %v4280
        %v4368 = vadd.f32 %v4367, %v4284
        %v4369 = vadd.f32 %v4368, %v4288
        %v4370 = vadd.f32 %v4369, %v4292
        %v4371 = vadd.f32 %v4370, %v4296
        %v4372 = vadd.f32 %v4371, %v4300
        %v4373 = vadd.f32 %v4372, %v4304
        %v4374 = vadd.f32 %v4373, %v4308
        %v4375 = vadd.f32 %v4374, %v4312
        %v4376 = vadd.f32 %v4375, %v4316
        %v4377 = vadd.f32 %v4376, %v4320
        %v4378 = vadd.f32 %v4377, %v4324
        %v4379 = vadd.f32 %v4378, %v4328
        %v4380 = vadd.f32 %v4379, %v4332
        %v4381 = vadd.f32 %v4380, %v4336
        %v4382 = vadd.f32 %v4381, %v4340
        %v4383 = vadd.f32 %v4382, %v4344
        %v4384 = vadd.f32 %v4383, %v4348
        %v4385 = vadd.f32 %v4384, %v4352
        %v4386 = vrot.slane %v4385, 4
        %v4387 = vadd.f32 %v4385, %v4386
        %v4388 = vrot.slane %v4387, 2
        %v4389 = vadd.f32 %v4387, %v4388
        %v4390 = vrot.slane %v4389, 1
        %v4391 = vadd.f32 %v4389, %v4390
        %v4392 = vadd.f32 %v4230, %v4234
        %v4393 = vadd.f32 %v4392, %v4238
        %v4394 = vadd.f32 %v4393, %v4242
        %v4395 = vadd.f32 %v4394, %v4246
        %v4396 = vadd.f32 %v4395, %v4250
        %v4397 = vadd.f32 %v4396, %v4254
        %v4398 = vadd.f32 %v4397, %v4258
        %v4399 = vadd.f32 %v4398, %v4262
        %v4400 = vadd.f32 %v4399, %v4266
        %v4401 = vadd.f32 %v4400, %v4270
        %v4402 = vadd.f32 %v4401, %v4274
        %v4403 = vadd.f32 %v4402, %v4278
        %v4404 = vadd.f32 %v4403, %v4282
        %v4405 = vadd.f32 %v4404, %v4286
        %v4406 = vadd.f32 %v4405, %v4290
        %v4407 = vadd.f32 %v4406, %v4294
        %v4408 = vadd.f32 %v4407, %v4298
        %v4409 = vadd.f32 %v4408, %v4302
        %v4410 = vadd.f32 %v4409, %v4306
        %v4411 = vadd.f32 %v4410, %v4310
        %v4412 = vadd.f32 %v4411, %v4314
        %v4413 = vadd.f32 %v4412, %v4318
        %v4414 = vadd.f32 %v4413, %v4322
        %v4415 = vadd.f32 %v4414, %v4326
        %v4416 = vadd.f32 %v4415, %v4330
        %v4417 = vadd.f32 %v4416, %v4334
        %v4418 = vadd.f32 %v4417, %v4338
        %v4419 = vadd.f32 %v4418, %v4342
        %v4420 = vadd.f32 %v4419, %v4346
        %v4421 = vadd.f32 %v4420, %v4350
        %v4422 = vadd.f32 %v4421, %v4354
        %v4423 = vrot.slane %v4422, 4
        %v4424 = vadd.f32 %v4422, %v4423
        %v4425 = vrot.slane %v4424, 2
        %v4426 = vadd.f32 %v4424, %v4425
        %v4427 = vrot.slane %v4426, 1
        %v4428 = vadd.f32 %v4426, %v4427
        %v4429 = vrcp.pop %v4391
        %v4430 = vmul.f32 %v4391, %v4429
        %v4431 = vsub.f32 1.0, %v4430
        %v4432 = vmul.f32 %v4429, %v4431
        %v4433 = vadd.f32 %v4429, %v4432
        %vm4434 = vweird.f32 %v4391
        %vm4435 = vweird.f32 %v4429
        %vm4436 = vmor %vm4434, %vm4435
        %v4437 = vsel %vm4436, %v4429, %v4433
        %v4438 = vand.u32 2147483647, %v4391
        %vm4439 = vcmp.eq.f32.partialorder %v4438, 8.507059e+37
        %v4440 = vand.u32 %v4391, 2147483648
        %v4441 = vor.u32 1.1754944e-38, %v4440
        %v4442 = vsel %vm4439, %v4441, %v4437
        %v4443 = vrcp.pop %v4428
        %v4444 = vmul.f32 %v4428, %v4443
        %v4445 = vsub.f32 1.0, %v4444
        %v4446 = vmul.f32 %v4443, %v4445
        %v4447 = vadd.f32 %v4443, %v4446
        %vm4448 = vweird.f32 %v4428
        %vm4449 = vweird.f32 %v4443
        %vm4450 = vmor %vm4448, %vm4449
        %v4451 = vsel %vm4450, %v4443, %v4447
        %v4452 = vand.u32 2147483647, %v4428
        %vm4453 = vcmp.eq.f32.partialorder %v4452, 8.507059e+37
        %v4454 = vand.u32 %v4428, 2147483648
        %v4455 = vor.u32 1.1754944e-38, %v4454
        %v4456 = vsel %vm4453, %v4455, %v4451
        %s4457 = scalar_lea.vmem [#allocation3], 256
        %v4458 = vld [vmem:[%s4457] sm:$0xf]
        %v4459 = vld [vmem:[%s4457 + $0x4] sm:$0xf]
        %v4460 = vld [vmem:[%s4457 + $0x8] sm:$0xf]
        %v4461 = vld [vmem:[%s4457 + $0xc] sm:$0xf]
        %v4462 = vld [vmem:[%s4457 + $0x10] sm:$0xf]
        %v4463 = vld [vmem:[%s4457 + $0x14] sm:$0xf]
        %v4464 = vld [vmem:[%s4457 + $0x18] sm:$0xf]
        %v4465 = vld [vmem:[%s4457 + $0x1c] sm:$0xf]
        %v4466 = vld [vmem:[%s4457 + $0x20] sm:$0xf]
        %v4467 = vld [vmem:[%s4457 + $0x24] sm:$0xf]
        %v4468 = vld [vmem:[%s4457 + $0x28] sm:$0xf]
        %v4469 = vld [vmem:[%s4457 + $0x2c] sm:$0xf]
        %v4470 = vld [vmem:[%s4457 + $0x30] sm:$0xf]
        %v4471 = vld [vmem:[%s4457 + $0x34] sm:$0xf]
        %v4472 = vld [vmem:[%s4457 + $0x38] sm:$0xf]
        %v4473 = vld [vmem:[%s4457 + $0x3c] sm:$0xf]
        %v4474 = vld [vmem:[%s4457 + $0x40] sm:$0xf]
        %v4475 = vld [vmem:[%s4457 + $0x44] sm:$0xf]
        %v4476 = vld [vmem:[%s4457 + $0x48] sm:$0xf]
        %v4477 = vld [vmem:[%s4457 + $0x4c] sm:$0xf]
        %v4478 = vld [vmem:[%s4457 + $0x50] sm:$0xf]
        %v4479 = vld [vmem:[%s4457 + $0x54] sm:$0xf]
        %v4480 = vld [vmem:[%s4457 + $0x58] sm:$0xf]
        %v4481 = vld [vmem:[%s4457 + $0x5c] sm:$0xf]
        %v4482 = vld [vmem:[%s4457 + $0x60] sm:$0xf]
        %v4483 = vld [vmem:[%s4457 + $0x64] sm:$0xf]
        %v4484 = vld [vmem:[%s4457 + $0x68] sm:$0xf]
        %v4485 = vld [vmem:[%s4457 + $0x6c] sm:$0xf]
        %v4486 = vld [vmem:[%s4457 + $0x70] sm:$0xf]
        %v4487 = vld [vmem:[%s4457 + $0x74] sm:$0xf]
        %v4488 = vld [vmem:[%s4457 + $0x78] sm:$0xf]
        %v4489 = vld [vmem:[%s4457 + $0x7c] sm:$0xf]
        %v4490 = vpack.c.bf16 %v4232, %v4228
        %v4491 = vpack.c.bf16 %v4234, %v4230
        %v4492 = vpack.c.bf16 %v4240, %v4236
        %v4493 = vpack.c.bf16 %v4242, %v4238
        %v4494 = vpack.c.bf16 %v4248, %v4244
        %v4495 = vpack.c.bf16 %v4250, %v4246
        %v4496 = vpack.c.bf16 %v4256, %v4252
        %v4497 = vpack.c.bf16 %v4258, %v4254
        %v4498 = vpack.c.bf16 %v4264, %v4260
        %v4499 = vpack.c.bf16 %v4266, %v4262
        %v4500 = vpack.c.bf16 %v4272, %v4268
        %v4501 = vpack.c.bf16 %v4274, %v4270
        %v4502 = vpack.c.bf16 %v4280, %v4276
        %v4503 = vpack.c.bf16 %v4282, %v4278
        %v4504 = vpack.c.bf16 %v4288, %v4284
        %v4505 = vpack.c.bf16 %v4290, %v4286
        %v4506 = vpack.c.bf16 %v4296, %v4292
        %v4507 = vpack.c.bf16 %v4298, %v4294
        %v4508 = vpack.c.bf16 %v4304, %v4300
        %v4509 = vpack.c.bf16 %v4306, %v4302
        %v4510 = vpack.c.bf16 %v4312, %v4308
        %v4511 = vpack.c.bf16 %v4314, %v4310
        %v4512 = vpack.c.bf16 %v4320, %v4316
        %v4513 = vpack.c.bf16 %v4322, %v4318
        %v4514 = vpack.c.bf16 %v4328, %v4324
        %v4515 = vpack.c.bf16 %v4330, %v4326
        %v4516 = vpack.c.bf16 %v4336, %v4332
        %v4517 = vpack.c.bf16 %v4338, %v4334
        %v4518 = vpack.c.bf16 %v4344, %v4340
        %v4519 = vpack.c.bf16 %v4346, %v4342
        %v4520 = vpack.c.bf16 %v4352, %v4348
        %v4521 = vpack.c.bf16 %v4354, %v4350
        %v4554 = vunpack.c.l.b16 %v4458
        %v4555 = vunpack.c.l.b16 %v4459
        %v4556 = vunpack.c.l.b16 %v4460
        %v4557 = vunpack.c.l.b16 %v4461
        %v4558 = vunpack.c.l.b16 %v4462
        %v4559 = vunpack.c.l.b16 %v4463
        %v4560 = vunpack.c.l.b16 %v4464
        %v4561 = vunpack.c.l.b16 %v4465
        %v4562 = vunpack.c.l.b16 %v4466
        %v4563 = vunpack.c.l.b16 %v4467
        %v4564 = vunpack.c.l.b16 %v4468
        %v4565 = vunpack.c.l.b16 %v4469
        %v4566 = vunpack.c.l.b16 %v4470
        %v4567 = vunpack.c.l.b16 %v4471
        %v4568 = vunpack.c.l.b16 %v4472
        %v4569 = vunpack.c.l.b16 %v4473
        %v4570 = vunpack.c.l.b16 %v4474
        %v4571 = vunpack.c.l.b16 %v4475
        %v4572 = vunpack.c.l.b16 %v4476
        %v4573 = vunpack.c.l.b16 %v4477
        %v4574 = vunpack.c.l.b16 %v4478
        %v4575 = vunpack.c.l.b16 %v4479
        %v4576 = vunpack.c.l.b16 %v4480
        %v4577 = vunpack.c.l.b16 %v4481
        %v4578 = vunpack.c.l.b16 %v4482
        %v4579 = vunpack.c.l.b16 %v4483
        %v4580 = vunpack.c.l.b16 %v4484
        %v4581 = vunpack.c.l.b16 %v4485
        %v4582 = vunpack.c.l.b16 %v4486
        %v4583 = vunpack.c.l.b16 %v4487
        %v4584 = vunpack.c.l.b16 %v4488
        %v4585 = vunpack.c.l.b16 %v4489
        %v4586 = vpack.c.b16 %v4555, %v4554
        %v4587 = vpack.c.b16 %v4557, %v4556
        %v4588 = vpack.c.b16 %v4559, %v4558
        %v4589 = vpack.c.b16 %v4561, %v4560
        %v4590 = vpack.c.b16 %v4563, %v4562
        %v4591 = vpack.c.b16 %v4565, %v4564
        %v4592 = vpack.c.b16 %v4567, %v4566
        %v4593 = vpack.c.b16 %v4569, %v4568
        %v4594 = vpack.c.b16 %v4571, %v4570
        %v4595 = vpack.c.b16 %v4573, %v4572
        %v4596 = vpack.c.b16 %v4575, %v4574
        %v4597 = vpack.c.b16 %v4577, %v4576
        %v4598 = vpack.c.b16 %v4579, %v4578
        %v4599 = vpack.c.b16 %v4581, %v4580
        %v4600 = vpack.c.b16 %v4583, %v4582
        %v4601 = vpack.c.b16 %v4585, %v4584
        %4618 = vxpose.xlu0.c.b16.start [1/8] %v4586, 128
        %4619 = vxpose.xlu0.c.b16.cont [2/8] %v4587, 128
        %4620 = vxpose.xlu0.c.b16.cont [3/8] %v4588, 128
        %4621 = vxpose.xlu0.c.b16.cont [4/8] %v4589, 128
        %4622 = vxpose.xlu0.c.b16.cont [5/8] %v4590, 128
        %4623 = vxpose.xlu0.c.b16.cont [6/8] %v4591, 128
        %4624 = vxpose.xlu0.c.b16.cont [7/8] %v4592, 128
        %4625 = vxpose.xlu0.c.b16.end [8/8] %v4593, 128
        %v4626 = vpop.trf.xlu0
        %v4627 = vpop.trf.xlu0
        %v4628 = vpop.trf.xlu0
        %v4629 = vpop.trf.xlu0
        %v4630 = vpop.trf.xlu0
        %v4631 = vpop.trf.xlu0
        %v4632 = vpop.trf.xlu0
        %v4633 = vpop.trf.xlu0
        %4634 = vxpose.xlu0.c.b16.start [1/8] %v4594, 128
        %4635 = vxpose.xlu0.c.b16.cont [2/8] %v4595, 128
        %4636 = vxpose.xlu0.c.b16.cont [3/8] %v4596, 128
        %4637 = vxpose.xlu0.c.b16.cont [4/8] %v4597, 128
        %4638 = vxpose.xlu0.c.b16.cont [5/8] %v4598, 128
        %4639 = vxpose.xlu0.c.b16.cont [6/8] %v4599, 128
        %4640 = vxpose.xlu0.c.b16.cont [7/8] %v4600, 128
        %4641 = vxpose.xlu0.c.b16.end [8/8] %v4601, 128
        %v4642 = vpop.trf.xlu0
        %v4643 = vpop.trf.xlu0
        %v4644 = vpop.trf.xlu0
        %v4645 = vpop.trf.xlu0
        %v4646 = vpop.trf.xlu0
        %v4647 = vpop.trf.xlu0
        %v4648 = vpop.trf.xlu0
        %v4649 = vpop.trf.xlu0
        %4650 = vmatpush.bf16.msra.mxu0 %v4504
        %4651 = vmatpush.bf16.msra.mxu0 %v4502
        %4652 = vmatpush.bf16.msra.mxu0 %v4500
        %4653 = vmatpush.bf16.msra.mxu0 %v4498
        %4654 = vmatpush.bf16.msra.mxu0 %v4496
        %4655 = vmatpush.bf16.msra.mxu0 %v4494
        %4656 = vmatpush.bf16.msra.mxu0 %v4492
        %4657 = vmatpush.bf16.msra.mxu0 %v4490
        %4658 = vmatmul.bf16.gmra.mxu0 %v4626
        %v4659 = vpop.f32.mrf.mxu0
        %v4660 = vadd.f32 0.0, %v4659
        %v4661 = vpop.f32.mrf.mxu0
        %v4662 = vadd.f32 0.0, %v4661
        %4663 = vmatmul.bf16.gmra.mxu0 %v4627
        %v4664 = vpop.f32.mrf.mxu0
        %v4665 = vadd.f32 0.0, %v4664
        %v4666 = vpop.f32.mrf.mxu0
        %v4667 = vadd.f32 0.0, %v4666
        %4668 = vdwg.mxu0
        %4669 = vmatpush.bf16.msra.mxu0 %v4520
        %4670 = vmatpush.bf16.msra.mxu0 %v4518
        %4671 = vmatpush.bf16.msra.mxu0 %v4516
        %4672 = vmatpush.bf16.msra.mxu0 %v4514
        %4673 = vmatpush.bf16.msra.mxu0 %v4512
        %4674 = vmatpush.bf16.msra.mxu0 %v4510
        %4675 = vmatpush.bf16.msra.mxu0 %v4508
        %4676 = vmatpush.bf16.msra.mxu0 %v4506
        %4677 = vmatmul.bf16.gmra.mxu0 %v4642
        %v4678 = vpop.f32.mrf.mxu0
        %v4679 = vadd.f32 %v4660, %v4678
        %v4680 = vpop.f32.mrf.mxu0
        %v4681 = vadd.f32 %v4662, %v4680
        %4682 = vmatmul.bf16.gmra.mxu0 %v4643
        %v4683 = vpop.f32.mrf.mxu0
        %v4684 = vadd.f32 %v4665, %v4683
        %v4685 = vpop.f32.mrf.mxu0
        %v4686 = vadd.f32 %v4667, %v4685
        %4687 = vdwg.mxu0
        %4688 = vmatpush.bf16.msra.mxu0 %v4505
        %4689 = vmatpush.bf16.msra.mxu0 %v4503
        %4690 = vmatpush.bf16.msra.mxu0 %v4501
        %4691 = vmatpush.bf16.msra.mxu0 %v4499
        %4692 = vmatpush.bf16.msra.mxu0 %v4497
        %4693 = vmatpush.bf16.msra.mxu0 %v4495
        %4694 = vmatpush.bf16.msra.mxu0 %v4493
        %4695 = vmatpush.bf16.msra.mxu0 %v4491
        %4696 = vmatmul.bf16.gmra.mxu0 %v4626
        %v4697 = vpop.f32.mrf.mxu0
        %v4698 = vadd.f32 0.0, %v4697
        %v4699 = vpop.f32.mrf.mxu0
        %v4700 = vadd.f32 0.0, %v4699
        %4701 = vmatmul.bf16.gmra.mxu0 %v4627
        %v4702 = vpop.f32.mrf.mxu0
        %v4703 = vadd.f32 0.0, %v4702
        %v4704 = vpop.f32.mrf.mxu0
        %v4705 = vadd.f32 0.0, %v4704
        %4706 = vdwg.mxu0
        %4707 = vmatpush.bf16.msra.mxu0 %v4521
        %4708 = vmatpush.bf16.msra.mxu0 %v4519
        %4709 = vmatpush.bf16.msra.mxu0 %v4517
        %4710 = vmatpush.bf16.msra.mxu0 %v4515
        %4711 = vmatpush.bf16.msra.mxu0 %v4513
        %4712 = vmatpush.bf16.msra.mxu0 %v4511
        %4713 = vmatpush.bf16.msra.mxu0 %v4509
        %4714 = vmatpush.bf16.msra.mxu0 %v4507
        %4715 = vmatmul.bf16.gmra.mxu0 %v4642
        %v4716 = vpop.f32.mrf.mxu0
        %v4717 = vadd.f32 %v4698, %v4716
        %v4718 = vpop.f32.mrf.mxu0
        %v4719 = vadd.f32 %v4700, %v4718
        %4720 = vmatmul.bf16.gmra.mxu0 %v4643
        %v4721 = vpop.f32.mrf.mxu0
        %v4722 = vadd.f32 %v4703, %v4721
        %v4723 = vpop.f32.mrf.mxu0
        %v4724 = vadd.f32 %v4705, %v4723
        %4725 = vdwg.mxu0
        %v4726 = vmul.f32 %v4679, %v4442
        %v4727 = vmul.f32 %v4717, %v4456
        %v4728 = vmul.f32 %v4681, %v4442
        %v4729 = vmul.f32 %v4719, %v4456
        %v4730 = vmul.f32 %v4684, %v4442
        %v4731 = vmul.f32 %v4722, %v4456
        %v4732 = vmul.f32 %v4686, %v4442
        %v4733 = vmul.f32 %v4724, %v4456
        %v4734 = vld [vmem:[%s204] sm:$0xff]
        %v4735 = vld [vmem:[%s204 + $0x8] sm:$0xff]
        %v4736 = vld [vmem:[%s204 + $0x10] sm:$0xff]
        %v4737 = vld [vmem:[%s204 + $0x18] sm:$0xff]
        %v4738 = vld [vmem:[%s204 + $0x20] sm:$0xff]
        %v4739 = vld [vmem:[%s204 + $0x28] sm:$0xff]
        %v4740 = vld [vmem:[%s204 + $0x30] sm:$0xff]
        %v4741 = vld [vmem:[%s204 + $0x38] sm:$0xff]
        %v4742 = vadd.f32 %v4734, %v4726
        %v4743 = vadd.f32 %v4735, %v4727
        %v4744 = vadd.f32 %v4736, %v4728
        %v4745 = vadd.f32 %v4737, %v4729
        %v4746 = vadd.f32 %v4738, %v4730
        %v4747 = vadd.f32 %v4739, %v4731
        %v4748 = vadd.f32 %v4740, %v4732
        %v4749 = vadd.f32 %v4741, %v4733
        %4750 = vst [vmem:[%s204] sm:$0xff] %v4742
        %4751 = vst [vmem:[%s204 + $0x8] sm:$0xff] %v4743
        %4752 = vst [vmem:[%s204 + $0x10] sm:$0xff] %v4744
        %4753 = vst [vmem:[%s204 + $0x18] sm:$0xff] %v4745
        %4754 = vst [vmem:[%s204 + $0x20] sm:$0xff] %v4746
        %4755 = vst [vmem:[%s204 + $0x28] sm:$0xff] %v4747
        %4756 = vst [vmem:[%s204 + $0x30] sm:$0xff] %v4748
        %4757 = vst [vmem:[%s204 + $0x38] sm:$0xff] %v4749
        %v4758 = vld [vmem:[#allocation2] sm:$0xf]
        %v4759 = vld [vmem:[#allocation2 + $0x4] sm:$0xf]
        %v4760 = vld [vmem:[#allocation2 + $0x8] sm:$0xf]
        %v4761 = vld [vmem:[#allocation2 + $0xc] sm:$0xf]
        %v4762 = vld [vmem:[#allocation2 + $0x10] sm:$0xf]
        %v4763 = vld [vmem:[#allocation2 + $0x14] sm:$0xf]
        %v4764 = vld [vmem:[#allocation2 + $0x18] sm:$0xf]
        %v4765 = vld [vmem:[#allocation2 + $0x1c] sm:$0xf]
        %v4766 = vld [vmem:[#allocation2 + $0x20] sm:$0xf]
        %v4767 = vld [vmem:[#allocation2 + $0x24] sm:$0xf]
        %v4768 = vld [vmem:[#allocation2 + $0x28] sm:$0xf]
        %v4769 = vld [vmem:[#allocation2 + $0x2c] sm:$0xf]
        %v4770 = vld [vmem:[#allocation2 + $0x30] sm:$0xf]
        %v4771 = vld [vmem:[#allocation2 + $0x34] sm:$0xf]
        %v4772 = vld [vmem:[#allocation2 + $0x38] sm:$0xf]
        %v4773 = vld [vmem:[#allocation2 + $0x3c] sm:$0xf]
        %v4774 = vld [vmem:[#allocation2 + $0x40] sm:$0xf]
        %v4775 = vld [vmem:[#allocation2 + $0x44] sm:$0xf]
        %v4776 = vld [vmem:[#allocation2 + $0x48] sm:$0xf]
        %v4777 = vld [vmem:[#allocation2 + $0x4c] sm:$0xf]
        %v4778 = vld [vmem:[#allocation2 + $0x50] sm:$0xf]
        %v4779 = vld [vmem:[#allocation2 + $0x54] sm:$0xf]
        %v4780 = vld [vmem:[#allocation2 + $0x58] sm:$0xf]
        %v4781 = vld [vmem:[#allocation2 + $0x5c] sm:$0xf]
        %v4782 = vld [vmem:[#allocation2 + $0x60] sm:$0xf]
        %v4783 = vld [vmem:[#allocation2 + $0x64] sm:$0xf]
        %v4784 = vld [vmem:[#allocation2 + $0x68] sm:$0xf]
        %v4785 = vld [vmem:[#allocation2 + $0x6c] sm:$0xf]
        %v4786 = vld [vmem:[#allocation2 + $0x70] sm:$0xf]
        %v4787 = vld [vmem:[#allocation2 + $0x74] sm:$0xf]
        %v4788 = vld [vmem:[#allocation2 + $0x78] sm:$0xf]
        %v4789 = vld [vmem:[#allocation2 + $0x7c] sm:$0xf]
        %v4822 = vunpack.c.l.b16 %v4758
        %v4823 = vunpack.c.l.b16 %v4759
        %v4824 = vunpack.c.l.b16 %v4760
        %v4825 = vunpack.c.l.b16 %v4761
        %v4826 = vunpack.c.l.b16 %v4762
        %v4827 = vunpack.c.l.b16 %v4763
        %v4828 = vunpack.c.l.b16 %v4764
        %v4829 = vunpack.c.l.b16 %v4765
        %v4830 = vunpack.c.l.b16 %v4766
        %v4831 = vunpack.c.l.b16 %v4767
        %v4832 = vunpack.c.l.b16 %v4768
        %v4833 = vunpack.c.l.b16 %v4769
        %v4834 = vunpack.c.l.b16 %v4770
        %v4835 = vunpack.c.l.b16 %v4771
        %v4836 = vunpack.c.l.b16 %v4772
        %v4837 = vunpack.c.l.b16 %v4773
        %v4838 = vunpack.c.l.b16 %v4774
        %v4839 = vunpack.c.l.b16 %v4775
        %v4840 = vunpack.c.l.b16 %v4776
        %v4841 = vunpack.c.l.b16 %v4777
        %v4842 = vunpack.c.l.b16 %v4778
        %v4843 = vunpack.c.l.b16 %v4779
        %v4844 = vunpack.c.l.b16 %v4780
        %v4845 = vunpack.c.l.b16 %v4781
        %v4846 = vunpack.c.l.b16 %v4782
        %v4847 = vunpack.c.l.b16 %v4783
        %v4848 = vunpack.c.l.b16 %v4784
        %v4849 = vunpack.c.l.b16 %v4785
        %v4850 = vunpack.c.l.b16 %v4786
        %v4851 = vunpack.c.l.b16 %v4787
        %v4852 = vunpack.c.l.b16 %v4788
        %v4853 = vunpack.c.l.b16 %v4789
        %v4854 = vpack.c.b16 %v4823, %v4822
        %v4855 = vpack.c.b16 %v4825, %v4824
        %v4856 = vpack.c.b16 %v4827, %v4826
        %v4857 = vpack.c.b16 %v4829, %v4828
        %v4858 = vpack.c.b16 %v4831, %v4830
        %v4859 = vpack.c.b16 %v4833, %v4832
        %v4860 = vpack.c.b16 %v4835, %v4834
        %v4861 = vpack.c.b16 %v4837, %v4836
        %v4862 = vpack.c.b16 %v4839, %v4838
        %v4863 = vpack.c.b16 %v4841, %v4840
        %v4864 = vpack.c.b16 %v4843, %v4842
        %v4865 = vpack.c.b16 %v4845, %v4844
        %v4866 = vpack.c.b16 %v4847, %v4846
        %v4867 = vpack.c.b16 %v4849, %v4848
        %v4868 = vpack.c.b16 %v4851, %v4850
        %v4869 = vpack.c.b16 %v4853, %v4852
        %4870 = vrot.lane.b32.xlu0 %v4854, 104
        %v4871 = vpop.permute.xlu0 %4870
        %4872 = vrot.lane.b32.xlu0 %v4855, 104
        %v4873 = vpop.permute.xlu0 %4872
        %4874 = vrot.lane.b32.xlu0 %v4856, 104
        %v4875 = vpop.permute.xlu0 %4874
        %4876 = vrot.lane.b32.xlu0 %v4857, 104
        %v4877 = vpop.permute.xlu0 %4876
        %4878 = vrot.lane.b32.xlu0 %v4858, 104
        %v4879 = vpop.permute.xlu0 %4878
        %4880 = vrot.lane.b32.xlu0 %v4859, 104
        %v4881 = vpop.permute.xlu0 %4880
        %4882 = vrot.lane.b32.xlu0 %v4860, 104
        %v4883 = vpop.permute.xlu0 %4882
        %4884 = vrot.lane.b32.xlu0 %v4861, 104
        %v4885 = vpop.permute.xlu0 %4884
        %4886 = vrot.lane.b32.xlu0 %v4862, 104
        %v4887 = vpop.permute.xlu0 %4886
        %4888 = vrot.lane.b32.xlu0 %v4863, 104
        %v4889 = vpop.permute.xlu0 %4888
        %4890 = vrot.lane.b32.xlu0 %v4864, 104
        %v4891 = vpop.permute.xlu0 %4890
        %4892 = vrot.lane.b32.xlu0 %v4865, 104
        %v4893 = vpop.permute.xlu0 %4892
        %4894 = vrot.lane.b32.xlu0 %v4866, 104
        %v4895 = vpop.permute.xlu0 %4894
        %4896 = vrot.lane.b32.xlu0 %v4867, 104
        %v4897 = vpop.permute.xlu0 %4896
        %4898 = vrot.lane.b32.xlu0 %v4868, 104
        %v4899 = vpop.permute.xlu0 %4898
        %4900 = vrot.lane.b32.xlu0 %v4869, 104
        %v4901 = vpop.permute.xlu0 %4900
        %4902 = vrot.lane.b32.xlu0 %v1577, 104
        %v4903 = vpop.permute.xlu0 %4902
        %4904 = vrot.lane.b32.xlu0 %v1578, 104
        %v4905 = vpop.permute.xlu0 %4904
        %4906 = vrot.lane.b32.xlu0 %v1579, 104
        %v4907 = vpop.permute.xlu0 %4906
        %4908 = vrot.lane.b32.xlu0 %v1580, 104
        %v4909 = vpop.permute.xlu0 %4908
        %4910 = vrot.lane.b32.xlu0 %v1581, 104
        %v4911 = vpop.permute.xlu0 %4910
        %4912 = vrot.lane.b32.xlu0 %v1582, 104
        %v4913 = vpop.permute.xlu0 %4912
        %4914 = vrot.lane.b32.xlu0 %v1583, 104
        %v4915 = vpop.permute.xlu0 %4914
        %4916 = vrot.lane.b32.xlu0 %v1584, 104
        %v4917 = vpop.permute.xlu0 %4916
        %4918 = vrot.lane.b32.xlu0 %v1585, 104
        %v4919 = vpop.permute.xlu0 %4918
        %4920 = vrot.lane.b32.xlu0 %v1586, 104
        %v4921 = vpop.permute.xlu0 %4920
        %4922 = vrot.lane.b32.xlu0 %v1587, 104
        %v4923 = vpop.permute.xlu0 %4922
        %4924 = vrot.lane.b32.xlu0 %v1588, 104
        %v4925 = vpop.permute.xlu0 %4924
        %4926 = vrot.lane.b32.xlu0 %v1589, 104
        %v4927 = vpop.permute.xlu0 %4926
        %4928 = vrot.lane.b32.xlu0 %v1590, 104
        %v4929 = vpop.permute.xlu0 %4928
        %4930 = vrot.lane.b32.xlu0 %v1591, 104
        %v4931 = vpop.permute.xlu0 %4930
        %4932 = vrot.lane.b32.xlu0 %v1592, 104
        %v4933 = vpop.permute.xlu0 %4932
        %v4935 = vsel %vm1593, %v4871, 0
        %v4938 = vsel %vm1593, %v4873, 0
        %v4941 = vsel %vm1593, %v4875, 0
        %v4944 = vsel %vm1593, %v4877, 0
        %v4947 = vsel %vm1593, %v4879, 0
        %v4950 = vsel %vm1593, %v4881, 0
        %v4953 = vsel %vm1593, %v4883, 0
        %v4956 = vsel %vm1593, %v4885, 0
        %v4959 = vsel %vm1593, %v4887, 0
        %v4962 = vsel %vm1593, %v4889, 0
        %v4965 = vsel %vm1593, %v4891, 0
        %v4968 = vsel %vm1593, %v4893, 0
        %v4971 = vsel %vm1593, %v4895, 0
        %v4974 = vsel %vm1593, %v4897, 0
        %v4977 = vsel %vm1593, %v4899, 0
        %v4980 = vsel %vm1593, %v4901, 0
        %v4983 = vsel %vm1593, %v4903, 0
        %v4986 = vsel %vm1593, %v4905, 0
        %v4989 = vsel %vm1593, %v4907, 0
        %v4992 = vsel %vm1593, %v4909, 0
        %v4995 = vsel %vm1593, %v4911, 0
        %v4998 = vsel %vm1593, %v4913, 0
        %v5001 = vsel %vm1593, %v4915, 0
        %v5004 = vsel %vm1593, %v4917, 0
        %v5007 = vsel %vm1593, %v4919, 0
        %v5010 = vsel %vm1593, %v4921, 0
        %v5013 = vsel %vm1593, %v4923, 0
        %v5016 = vsel %vm1593, %v4925, 0
        %v5019 = vsel %vm1593, %v4927, 0
        %v5022 = vsel %vm1593, %v4929, 0
        %v5025 = vsel %vm1593, %v4931, 0
        %v5028 = vsel %vm1593, %v4933, 0
        %5030 = vmatpush.bf16.xpose.msra.mxu0 %v5004
        %5031 = vmatpush.bf16.xpose.msra.mxu0 %v5001
        %5032 = vmatpush.bf16.xpose.msra.mxu0 %v4998
        %5033 = vmatpush.bf16.xpose.msra.mxu0 %v4995
        %5034 = vmatpush.bf16.xpose.msra.mxu0 %v4992
        %5035 = vmatpush.bf16.xpose.msra.mxu0 %v4989
        %5036 = vmatpush.bf16.xpose.msra.mxu0 %v4986
        %5037 = vmatpush.bf16.xpose.msra.mxu0 %v4983
        %5038 = vmatmul.bf16.gmra.mxu0 %v4935
        %v5039 = vpop.f32.mrf.mxu0
        %v5040 = vadd.f32 0.0, %v5039
        %v5041 = vpop.f32.mrf.mxu0
        %v5042 = vadd.f32 0.0, %v5041
        %5043 = vmatmul.bf16.gmra.mxu0 %v4938
        %v5044 = vpop.f32.mrf.mxu0
        %v5045 = vadd.f32 0.0, %v5044
        %v5046 = vpop.f32.mrf.mxu0
        %v5047 = vadd.f32 0.0, %v5046
        %5048 = vmatmul.bf16.gmra.mxu0 %v4941
        %v5049 = vpop.f32.mrf.mxu0
        %v5050 = vadd.f32 0.0, %v5049
        %v5051 = vpop.f32.mrf.mxu0
        %v5052 = vadd.f32 0.0, %v5051
        %5053 = vmatmul.bf16.gmra.mxu0 %v4944
        %v5054 = vpop.f32.mrf.mxu0
        %v5055 = vadd.f32 0.0, %v5054
        %v5056 = vpop.f32.mrf.mxu0
        %v5057 = vadd.f32 0.0, %v5056
        %5058 = vmatmul.bf16.gmra.mxu0 %v4947
        %v5059 = vpop.f32.mrf.mxu0
        %v5060 = vadd.f32 0.0, %v5059
        %v5061 = vpop.f32.mrf.mxu0
        %v5062 = vadd.f32 0.0, %v5061
        %5063 = vmatmul.bf16.gmra.mxu0 %v4950
        %v5064 = vpop.f32.mrf.mxu0
        %v5065 = vadd.f32 0.0, %v5064
        %v5066 = vpop.f32.mrf.mxu0
        %v5067 = vadd.f32 0.0, %v5066
        %5068 = vmatmul.bf16.gmra.mxu0 %v4953
        %v5069 = vpop.f32.mrf.mxu0
        %v5070 = vadd.f32 0.0, %v5069
        %v5071 = vpop.f32.mrf.mxu0
        %v5072 = vadd.f32 0.0, %v5071
        %5073 = vmatmul.bf16.gmra.mxu0 %v4956
        %v5074 = vpop.f32.mrf.mxu0
        %v5075 = vadd.f32 0.0, %v5074
        %v5076 = vpop.f32.mrf.mxu0
        %v5077 = vadd.f32 0.0, %v5076
        %5078 = vmatmul.bf16.gmra.mxu0 %v4959
        %v5079 = vpop.f32.mrf.mxu0
        %v5080 = vadd.f32 0.0, %v5079
        %v5081 = vpop.f32.mrf.mxu0
        %v5082 = vadd.f32 0.0, %v5081
        %5083 = vmatmul.bf16.gmra.mxu0 %v4962
        %v5084 = vpop.f32.mrf.mxu0
        %v5085 = vadd.f32 0.0, %v5084
        %v5086 = vpop.f32.mrf.mxu0
        %v5087 = vadd.f32 0.0, %v5086
        %5088 = vmatmul.bf16.gmra.mxu0 %v4965
        %v5089 = vpop.f32.mrf.mxu0
        %v5090 = vadd.f32 0.0, %v5089
        %v5091 = vpop.f32.mrf.mxu0
        %v5092 = vadd.f32 0.0, %v5091
        %5093 = vmatmul.bf16.gmra.mxu0 %v4968
        %v5094 = vpop.f32.mrf.mxu0
        %v5095 = vadd.f32 0.0, %v5094
        %v5096 = vpop.f32.mrf.mxu0
        %v5097 = vadd.f32 0.0, %v5096
        %5098 = vmatmul.bf16.gmra.mxu0 %v4971
        %v5099 = vpop.f32.mrf.mxu0
        %v5100 = vadd.f32 0.0, %v5099
        %v5101 = vpop.f32.mrf.mxu0
        %v5102 = vadd.f32 0.0, %v5101
        %5103 = vmatmul.bf16.gmra.mxu0 %v4974
        %v5104 = vpop.f32.mrf.mxu0
        %v5105 = vadd.f32 0.0, %v5104
        %v5106 = vpop.f32.mrf.mxu0
        %v5107 = vadd.f32 0.0, %v5106
        %5108 = vmatmul.bf16.gmra.mxu0 %v4977
        %v5109 = vpop.f32.mrf.mxu0
        %v5110 = vadd.f32 0.0, %v5109
        %v5111 = vpop.f32.mrf.mxu0
        %v5112 = vadd.f32 0.0, %v5111
        %5113 = vmatmul.bf16.gmra.mxu0 %v4980
        %v5114 = vpop.f32.mrf.mxu0
        %v5115 = vadd.f32 0.0, %v5114
        %v5116 = vpop.f32.mrf.mxu0
        %v5117 = vadd.f32 0.0, %v5116
        %5118 = vdwg.mxu0
        %5119 = vmatpush.bf16.xpose.msra.mxu0 %v5028
        %5120 = vmatpush.bf16.xpose.msra.mxu0 %v5025
        %5121 = vmatpush.bf16.xpose.msra.mxu0 %v5022
        %5122 = vmatpush.bf16.xpose.msra.mxu0 %v5019
        %5123 = vmatpush.bf16.xpose.msra.mxu0 %v5016
        %5124 = vmatpush.bf16.xpose.msra.mxu0 %v5013
        %5125 = vmatpush.bf16.xpose.msra.mxu0 %v5010
        %5126 = vmatpush.bf16.xpose.msra.mxu0 %v5007
        %5127 = vmatmul.bf16.gmra.mxu0 %v4935
        %v5128 = vpop.f32.mrf.mxu0
        %v5129 = vadd.f32 0.0, %v5128
        %v5130 = vpop.f32.mrf.mxu0
        %v5131 = vadd.f32 0.0, %v5130
        %5132 = vmatmul.bf16.gmra.mxu0 %v4938
        %v5133 = vpop.f32.mrf.mxu0
        %v5134 = vadd.f32 0.0, %v5133
        %v5135 = vpop.f32.mrf.mxu0
        %v5136 = vadd.f32 0.0, %v5135
        %5137 = vmatmul.bf16.gmra.mxu0 %v4941
        %v5138 = vpop.f32.mrf.mxu0
        %v5139 = vadd.f32 0.0, %v5138
        %v5140 = vpop.f32.mrf.mxu0
        %v5141 = vadd.f32 0.0, %v5140
        %5142 = vmatmul.bf16.gmra.mxu0 %v4944
        %v5143 = vpop.f32.mrf.mxu0
        %v5144 = vadd.f32 0.0, %v5143
        %v5145 = vpop.f32.mrf.mxu0
        %v5146 = vadd.f32 0.0, %v5145
        %5147 = vmatmul.bf16.gmra.mxu0 %v4947
        %v5148 = vpop.f32.mrf.mxu0
        %v5149 = vadd.f32 0.0, %v5148
        %v5150 = vpop.f32.mrf.mxu0
        %v5151 = vadd.f32 0.0, %v5150
        %5152 = vmatmul.bf16.gmra.mxu0 %v4950
        %v5153 = vpop.f32.mrf.mxu0
        %v5154 = vadd.f32 0.0, %v5153
        %v5155 = vpop.f32.mrf.mxu0
        %v5156 = vadd.f32 0.0, %v5155
        %5157 = vmatmul.bf16.gmra.mxu0 %v4953
        %v5158 = vpop.f32.mrf.mxu0
        %v5159 = vadd.f32 0.0, %v5158
        %v5160 = vpop.f32.mrf.mxu0
        %v5161 = vadd.f32 0.0, %v5160
        %5162 = vmatmul.bf16.gmra.mxu0 %v4956
        %v5163 = vpop.f32.mrf.mxu0
        %v5164 = vadd.f32 0.0, %v5163
        %v5165 = vpop.f32.mrf.mxu0
        %v5166 = vadd.f32 0.0, %v5165
        %5167 = vmatmul.bf16.gmra.mxu0 %v4959
        %v5168 = vpop.f32.mrf.mxu0
        %v5169 = vadd.f32 0.0, %v5168
        %v5170 = vpop.f32.mrf.mxu0
        %v5171 = vadd.f32 0.0, %v5170
        %5172 = vmatmul.bf16.gmra.mxu0 %v4962
        %v5173 = vpop.f32.mrf.mxu0
        %v5174 = vadd.f32 0.0, %v5173
        %v5175 = vpop.f32.mrf.mxu0
        %v5176 = vadd.f32 0.0, %v5175
        %5177 = vmatmul.bf16.gmra.mxu0 %v4965
        %v5178 = vpop.f32.mrf.mxu0
        %v5179 = vadd.f32 0.0, %v5178
        %v5180 = vpop.f32.mrf.mxu0
        %v5181 = vadd.f32 0.0, %v5180
        %5182 = vmatmul.bf16.gmra.mxu0 %v4968
        %v5183 = vpop.f32.mrf.mxu0
        %v5184 = vadd.f32 0.0, %v5183
        %v5185 = vpop.f32.mrf.mxu0
        %v5186 = vadd.f32 0.0, %v5185
        %5187 = vmatmul.bf16.gmra.mxu0 %v4971
        %v5188 = vpop.f32.mrf.mxu0
        %v5189 = vadd.f32 0.0, %v5188
        %v5190 = vpop.f32.mrf.mxu0
        %v5191 = vadd.f32 0.0, %v5190
        %5192 = vmatmul.bf16.gmra.mxu0 %v4974
        %v5193 = vpop.f32.mrf.mxu0
        %v5194 = vadd.f32 0.0, %v5193
        %v5195 = vpop.f32.mrf.mxu0
        %v5196 = vadd.f32 0.0, %v5195
        %5197 = vmatmul.bf16.gmra.mxu0 %v4977
        %v5198 = vpop.f32.mrf.mxu0
        %v5199 = vadd.f32 0.0, %v5198
        %v5200 = vpop.f32.mrf.mxu0
        %v5201 = vadd.f32 0.0, %v5200
        %5202 = vmatmul.bf16.gmra.mxu0 %v4980
        %v5203 = vpop.f32.mrf.mxu0
        %v5204 = vadd.f32 0.0, %v5203
        %v5205 = vpop.f32.mrf.mxu0
        %v5206 = vadd.f32 0.0, %v5205
        %5207 = vdwg.mxu0
        %v5208 = vmax.f32 %v5040, %v5045
        %v5209 = vmax.f32 %v5042, %v5047
        %v5210 = vmax.f32 %v5208, %v5050
        %v5211 = vmax.f32 %v5209, %v5052
        %v5212 = vmax.f32 %v5210, %v5055
        %v5213 = vmax.f32 %v5211, %v5057
        %v5214 = vmax.f32 %v5212, %v5060
        %v5215 = vmax.f32 %v5213, %v5062
        %v5216 = vmax.f32 %v5214, %v5065
        %v5217 = vmax.f32 %v5215, %v5067
        %v5218 = vmax.f32 %v5216, %v5070
        %v5219 = vmax.f32 %v5217, %v5072
        %v5220 = vmax.f32 %v5218, %v5075
        %v5221 = vmax.f32 %v5219, %v5077
        %v5222 = vmax.f32 %v5220, %v5080
        %v5223 = vmax.f32 %v5221, %v5082
        %v5224 = vmax.f32 %v5222, %v5085
        %v5225 = vmax.f32 %v5223, %v5087
        %v5226 = vmax.f32 %v5224, %v5090
        %v5227 = vmax.f32 %v5225, %v5092
        %v5228 = vmax.f32 %v5226, %v5095
        %v5229 = vmax.f32 %v5227, %v5097
        %v5230 = vmax.f32 %v5228, %v5100
        %v5231 = vmax.f32 %v5229, %v5102
        %v5232 = vmax.f32 %v5230, %v5105
        %v5233 = vmax.f32 %v5231, %v5107
        %v5234 = vmax.f32 %v5232, %v5110
        %v5235 = vmax.f32 %v5233, %v5112
        %v5236 = vmax.f32 %v5234, %v5115
        %v5237 = vmax.f32 %v5235, %v5117
        %v5238 = vmax.f32 %v5236, %v5237
        %v5239 = vrot.slane %v5238, 4
        %v5240 = vmax.f32 %v5238, %v5239
        %v5241 = vrot.slane %v5240, 2
        %v5242 = vmax.f32 %v5240, %v5241
        %v5243 = vrot.slane %v5242, 1
        %v5244 = vmax.f32 %v5242, %v5243
        %v5245 = vmax.f32 %v5129, %v5134
        %v5246 = vmax.f32 %v5131, %v5136
        %v5247 = vmax.f32 %v5245, %v5139
        %v5248 = vmax.f32 %v5246, %v5141
        %v5249 = vmax.f32 %v5247, %v5144
        %v5250 = vmax.f32 %v5248, %v5146
        %v5251 = vmax.f32 %v5249, %v5149
        %v5252 = vmax.f32 %v5250, %v5151
        %v5253 = vmax.f32 %v5251, %v5154
        %v5254 = vmax.f32 %v5252, %v5156
        %v5255 = vmax.f32 %v5253, %v5159
        %v5256 = vmax.f32 %v5254, %v5161
        %v5257 = vmax.f32 %v5255, %v5164
        %v5258 = vmax.f32 %v5256, %v5166
        %v5259 = vmax.f32 %v5257, %v5169
        %v5260 = vmax.f32 %v5258, %v5171
        %v5261 = vmax.f32 %v5259, %v5174
        %v5262 = vmax.f32 %v5260, %v5176
        %v5263 = vmax.f32 %v5261, %v5179
        %v5264 = vmax.f32 %v5262, %v5181
        %v5265 = vmax.f32 %v5263, %v5184
        %v5266 = vmax.f32 %v5264, %v5186
        %v5267 = vmax.f32 %v5265, %v5189
        %v5268 = vmax.f32 %v5266, %v5191
        %v5269 = vmax.f32 %v5267, %v5194
        %v5270 = vmax.f32 %v5268, %v5196
        %v5271 = vmax.f32 %v5269, %v5199
        %v5272 = vmax.f32 %v5270, %v5201
        %v5273 = vmax.f32 %v5271, %v5204
        %v5274 = vmax.f32 %v5272, %v5206
        %v5275 = vmax.f32 %v5273, %v5274
        %v5276 = vrot.slane %v5275, 4
        %v5277 = vmax.f32 %v5275, %v5276
        %v5278 = vrot.slane %v5277, 2
        %v5279 = vmax.f32 %v5277, %v5278
        %v5280 = vrot.slane %v5279, 1
        %v5281 = vmax.f32 %v5279, %v5280
        %v5282 = vsub.f32 %v5040, %v5244
        %v5283 = vsub.f32 %v5129, %v5281
        %v5284 = vsub.f32 %v5042, %v5244
        %v5285 = vsub.f32 %v5131, %v5281
        %v5286 = vsub.f32 %v5045, %v5244
        %v5287 = vsub.f32 %v5134, %v5281
        %v5288 = vsub.f32 %v5047, %v5244
        %v5289 = vsub.f32 %v5136, %v5281
        %v5290 = vsub.f32 %v5050, %v5244
        %v5291 = vsub.f32 %v5139, %v5281
        %v5292 = vsub.f32 %v5052, %v5244
        %v5293 = vsub.f32 %v5141, %v5281
        %v5294 = vsub.f32 %v5055, %v5244
        %v5295 = vsub.f32 %v5144, %v5281
        %v5296 = vsub.f32 %v5057, %v5244
        %v5297 = vsub.f32 %v5146, %v5281
        %v5298 = vsub.f32 %v5060, %v5244
        %v5299 = vsub.f32 %v5149, %v5281
        %v5300 = vsub.f32 %v5062, %v5244
        %v5301 = vsub.f32 %v5151, %v5281
        %v5302 = vsub.f32 %v5065, %v5244
        %v5303 = vsub.f32 %v5154, %v5281
        %v5304 = vsub.f32 %v5067, %v5244
        %v5305 = vsub.f32 %v5156, %v5281
        %v5306 = vsub.f32 %v5070, %v5244
        %v5307 = vsub.f32 %v5159, %v5281
        %v5308 = vsub.f32 %v5072, %v5244
        %v5309 = vsub.f32 %v5161, %v5281
        %v5310 = vsub.f32 %v5075, %v5244
        %v5311 = vsub.f32 %v5164, %v5281
        %v5312 = vsub.f32 %v5077, %v5244
        %v5313 = vsub.f32 %v5166, %v5281
        %v5314 = vsub.f32 %v5080, %v5244
        %v5315 = vsub.f32 %v5169, %v5281
        %v5316 = vsub.f32 %v5082, %v5244
        %v5317 = vsub.f32 %v5171, %v5281
        %v5318 = vsub.f32 %v5085, %v5244
        %v5319 = vsub.f32 %v5174, %v5281
        %v5320 = vsub.f32 %v5087, %v5244
        %v5321 = vsub.f32 %v5176, %v5281
        %v5322 = vsub.f32 %v5090, %v5244
        %v5323 = vsub.f32 %v5179, %v5281
        %v5324 = vsub.f32 %v5092, %v5244
        %v5325 = vsub.f32 %v5181, %v5281
        %v5326 = vsub.f32 %v5095, %v5244
        %v5327 = vsub.f32 %v5184, %v5281
        %v5328 = vsub.f32 %v5097, %v5244
        %v5329 = vsub.f32 %v5186, %v5281
        %v5330 = vsub.f32 %v5100, %v5244
        %v5331 = vsub.f32 %v5189, %v5281
        %v5332 = vsub.f32 %v5102, %v5244
        %v5333 = vsub.f32 %v5191, %v5281
        %v5334 = vsub.f32 %v5105, %v5244
        %v5335 = vsub.f32 %v5194, %v5281
        %v5336 = vsub.f32 %v5107, %v5244
        %v5337 = vsub.f32 %v5196, %v5281
        %v5338 = vsub.f32 %v5110, %v5244
        %v5339 = vsub.f32 %v5199, %v5281
        %v5340 = vsub.f32 %v5112, %v5244
        %v5341 = vsub.f32 %v5201, %v5281
        %v5342 = vsub.f32 %v5115, %v5244
        %v5343 = vsub.f32 %v5204, %v5281
        %v5344 = vsub.f32 %v5117, %v5244
        %v5345 = vsub.f32 %v5206, %v5281
        %v5346 = vmul.f32 %v5282, 1.442695
        %v5347 = vpow.pop %v5346
        %v5348 = vmul.f32 %v5283, 1.442695
        %v5349 = vpow.pop %v5348
        %v5350 = vmul.f32 %v5284, 1.442695
        %v5351 = vpow.pop %v5350
        %v5352 = vmul.f32 %v5285, 1.442695
        %v5353 = vpow.pop %v5352
        %v5354 = vmul.f32 %v5286, 1.442695
        %v5355 = vpow.pop %v5354
        %v5356 = vmul.f32 %v5287, 1.442695
        %v5357 = vpow.pop %v5356
        %v5358 = vmul.f32 %v5288, 1.442695
        %v5359 = vpow.pop %v5358
        %v5360 = vmul.f32 %v5289, 1.442695
        %v5361 = vpow.pop %v5360
        %v5362 = vmul.f32 %v5290, 1.442695
        %v5363 = vpow.pop %v5362
        %v5364 = vmul.f32 %v5291, 1.442695
        %v5365 = vpow.pop %v5364
        %v5366 = vmul.f32 %v5292, 1.442695
        %v5367 = vpow.pop %v5366
        %v5368 = vmul.f32 %v5293, 1.442695
        %v5369 = vpow.pop %v5368
        %v5370 = vmul.f32 %v5294, 1.442695
        %v5371 = vpow.pop %v5370
        %v5372 = vmul.f32 %v5295, 1.442695
        %v5373 = vpow.pop %v5372
        %v5374 = vmul.f32 %v5296, 1.442695
        %v5375 = vpow.pop %v5374
        %v5376 = vmul.f32 %v5297, 1.442695
        %v5377 = vpow.pop %v5376
        %v5378 = vmul.f32 %v5298, 1.442695
        %v5379 = vpow.pop %v5378
        %v5380 = vmul.f32 %v5299, 1.442695
        %v5381 = vpow.pop %v5380
        %v5382 = vmul.f32 %v5300, 1.442695
        %v5383 = vpow.pop %v5382
        %v5384 = vmul.f32 %v5301, 1.442695
        %v5385 = vpow.pop %v5384
        %v5386 = vmul.f32 %v5302, 1.442695
        %v5387 = vpow.pop %v5386
        %v5388 = vmul.f32 %v5303, 1.442695
        %v5389 = vpow.pop %v5388
        %v5390 = vmul.f32 %v5304, 1.442695
        %v5391 = vpow.pop %v5390
        %v5392 = vmul.f32 %v5305, 1.442695
        %v5393 = vpow.pop %v5392
        %v5394 = vmul.f32 %v5306, 1.442695
        %v5395 = vpow.pop %v5394
        %v5396 = vmul.f32 %v5307, 1.442695
        %v5397 = vpow.pop %v5396
        %v5398 = vmul.f32 %v5308, 1.442695
        %v5399 = vpow.pop %v5398
        %v5400 = vmul.f32 %v5309, 1.442695
        %v5401 = vpow.pop %v5400
        %v5402 = vmul.f32 %v5310, 1.442695
        %v5403 = vpow.pop %v5402
        %v5404 = vmul.f32 %v5311, 1.442695
        %v5405 = vpow.pop %v5404
        %v5406 = vmul.f32 %v5312, 1.442695
        %v5407 = vpow.pop %v5406
        %v5408 = vmul.f32 %v5313, 1.442695
        %v5409 = vpow.pop %v5408
        %v5410 = vmul.f32 %v5314, 1.442695
        %v5411 = vpow.pop %v5410
        %v5412 = vmul.f32 %v5315, 1.442695
        %v5413 = vpow.pop %v5412
        %v5414 = vmul.f32 %v5316, 1.442695
        %v5415 = vpow.pop %v5414
        %v5416 = vmul.f32 %v5317, 1.442695
        %v5417 = vpow.pop %v5416
        %v5418 = vmul.f32 %v5318, 1.442695
        %v5419 = vpow.pop %v5418
        %v5420 = vmul.f32 %v5319, 1.442695
        %v5421 = vpow.pop %v5420
        %v5422 = vmul.f32 %v5320, 1.442695
        %v5423 = vpow.pop %v5422
        %v5424 = vmul.f32 %v5321, 1.442695
        %v5425 = vpow.pop %v5424
        %v5426 = vmul.f32 %v5322, 1.442695
        %v5427 = vpow.pop %v5426
        %v5428 = vmul.f32 %v5323, 1.442695
        %v5429 = vpow.pop %v5428
        %v5430 = vmul.f32 %v5324, 1.442695
        %v5431 = vpow.pop %v5430
        %v5432 = vmul.f32 %v5325, 1.442695
        %v5433 = vpow.pop %v5432
        %v5434 = vmul.f32 %v5326, 1.442695
        %v5435 = vpow.pop %v5434
        %v5436 = vmul.f32 %v5327, 1.442695
        %v5437 = vpow.pop %v5436
        %v5438 = vmul.f32 %v5328, 1.442695
        %v5439 = vpow.pop %v5438
        %v5440 = vmul.f32 %v5329, 1.442695
        %v5441 = vpow.pop %v5440
        %v5442 = vmul.f32 %v5330, 1.442695
        %v5443 = vpow.pop %v5442
        %v5444 = vmul.f32 %v5331, 1.442695
        %v5445 = vpow.pop %v5444
        %v5446 = vmul.f32 %v5332, 1.442695
        %v5447 = vpow.pop %v5446
        %v5448 = vmul.f32 %v5333, 1.442695
        %v5449 = vpow.pop %v5448
        %v5450 = vmul.f32 %v5334, 1.442695
        %v5451 = vpow.pop %v5450
        %v5452 = vmul.f32 %v5335, 1.442695
        %v5453 = vpow.pop %v5452
        %v5454 = vmul.f32 %v5336, 1.442695
        %v5455 = vpow.pop %v5454
        %v5456 = vmul.f32 %v5337, 1.442695
        %v5457 = vpow.pop %v5456
        %v5458 = vmul.f32 %v5338, 1.442695
        %v5459 = vpow.pop %v5458
        %v5460 = vmul.f32 %v5339, 1.442695
        %v5461 = vpow.pop %v5460
        %v5462 = vmul.f32 %v5340, 1.442695
        %v5463 = vpow.pop %v5462
        %v5464 = vmul.f32 %v5341, 1.442695
        %v5465 = vpow.pop %v5464
        %v5466 = vmul.f32 %v5342, 1.442695
        %v5467 = vpow.pop %v5466
        %v5468 = vmul.f32 %v5343, 1.442695
        %v5469 = vpow.pop %v5468
        %v5470 = vmul.f32 %v5344, 1.442695
        %v5471 = vpow.pop %v5470
        %v5472 = vmul.f32 %v5345, 1.442695
        %v5473 = vpow.pop %v5472
        %v5474 = vadd.f32 %v5347, %v5351
        %v5475 = vadd.f32 %v5474, %v5355
        %v5476 = vadd.f32 %v5475, %v5359
        %v5477 = vadd.f32 %v5476, %v5363
        %v5478 = vadd.f32 %v5477, %v5367
        %v5479 = vadd.f32 %v5478, %v5371
        %v5480 = vadd.f32 %v5479, %v5375
        %v5481 = vadd.f32 %v5480, %v5379
        %v5482 = vadd.f32 %v5481, %v5383
        %v5483 = vadd.f32 %v5482, %v5387
        %v5484 = vadd.f32 %v5483, %v5391
        %v5485 = vadd.f32 %v5484, %v5395
        %v5486 = vadd.f32 %v5485, %v5399
        %v5487 = vadd.f32 %v5486, %v5403
        %v5488 = vadd.f32 %v5487, %v5407
        %v5489 = vadd.f32 %v5488, %v5411
        %v5490 = vadd.f32 %v5489, %v5415
        %v5491 = vadd.f32 %v5490, %v5419
        %v5492 = vadd.f32 %v5491, %v5423
        %v5493 = vadd.f32 %v5492, %v5427
        %v5494 = vadd.f32 %v5493, %v5431
        %v5495 = vadd.f32 %v5494, %v5435
        %v5496 = vadd.f32 %v5495, %v5439
        %v5497 = vadd.f32 %v5496, %v5443
        %v5498 = vadd.f32 %v5497, %v5447
        %v5499 = vadd.f32 %v5498, %v5451
        %v5500 = vadd.f32 %v5499, %v5455
        %v5501 = vadd.f32 %v5500, %v5459
        %v5502 = vadd.f32 %v5501, %v5463
        %v5503 = vadd.f32 %v5502, %v5467
        %v5504 = vadd.f32 %v5503, %v5471
        %v5505 = vrot.slane %v5504, 4
        %v5506 = vadd.f32 %v5504, %v5505
        %v5507 = vrot.slane %v5506, 2
        %v5508 = vadd.f32 %v5506, %v5507
        %v5509 = vrot.slane %v5508, 1
        %v5510 = vadd.f32 %v5508, %v5509
        %v5511 = vadd.f32 %v5349, %v5353
        %v5512 = vadd.f32 %v5511, %v5357
        %v5513 = vadd.f32 %v5512, %v5361
        %v5514 = vadd.f32 %v5513, %v5365
        %v5515 = vadd.f32 %v5514, %v5369
        %v5516 = vadd.f32 %v5515, %v5373
        %v5517 = vadd.f32 %v5516, %v5377
        %v5518 = vadd.f32 %v5517, %v5381
        %v5519 = vadd.f32 %v5518, %v5385
        %v5520 = vadd.f32 %v5519, %v5389
        %v5521 = vadd.f32 %v5520, %v5393
        %v5522 = vadd.f32 %v5521, %v5397
        %v5523 = vadd.f32 %v5522, %v5401
        %v5524 = vadd.f32 %v5523, %v5405
        %v5525 = vadd.f32 %v5524, %v5409
        %v5526 = vadd.f32 %v5525, %v5413
        %v5527 = vadd.f32 %v5526, %v5417
        %v5528 = vadd.f32 %v5527, %v5421
        %v5529 = vadd.f32 %v5528, %v5425
        %v5530 = vadd.f32 %v5529, %v5429
        %v5531 = vadd.f32 %v5530, %v5433
        %v5532 = vadd.f32 %v5531, %v5437
        %v5533 = vadd.f32 %v5532, %v5441
        %v5534 = vadd.f32 %v5533, %v5445
        %v5535 = vadd.f32 %v5534, %v5449
        %v5536 = vadd.f32 %v5535, %v5453
        %v5537 = vadd.f32 %v5536, %v5457
        %v5538 = vadd.f32 %v5537, %v5461
        %v5539 = vadd.f32 %v5538, %v5465
        %v5540 = vadd.f32 %v5539, %v5469
        %v5541 = vadd.f32 %v5540, %v5473
        %v5542 = vrot.slane %v5541, 4
        %v5543 = vadd.f32 %v5541, %v5542
        %v5544 = vrot.slane %v5543, 2
        %v5545 = vadd.f32 %v5543, %v5544
        %v5546 = vrot.slane %v5545, 1
        %v5547 = vadd.f32 %v5545, %v5546
        %v5548 = vrcp.pop %v5510
        %v5549 = vmul.f32 %v5510, %v5548
        %v5550 = vsub.f32 1.0, %v5549
        %v5551 = vmul.f32 %v5548, %v5550
        %v5552 = vadd.f32 %v5548, %v5551
        %vm5553 = vweird.f32 %v5510
        %vm5554 = vweird.f32 %v5548
        %vm5555 = vmor %vm5553, %vm5554
        %v5556 = vsel %vm5555, %v5548, %v5552
        %v5557 = vand.u32 2147483647, %v5510
        %vm5558 = vcmp.eq.f32.partialorder %v5557, 8.507059e+37
        %v5559 = vand.u32 %v5510, 2147483648
        %v5560 = vor.u32 1.1754944e-38, %v5559
        %v5561 = vsel %vm5558, %v5560, %v5556
        %v5562 = vrcp.pop %v5547
        %v5563 = vmul.f32 %v5547, %v5562
        %v5564 = vsub.f32 1.0, %v5563
        %v5565 = vmul.f32 %v5562, %v5564
        %v5566 = vadd.f32 %v5562, %v5565
        %vm5567 = vweird.f32 %v5547
        %vm5568 = vweird.f32 %v5562
        %vm5569 = vmor %vm5567, %vm5568
        %v5570 = vsel %vm5569, %v5562, %v5566
        %v5571 = vand.u32 2147483647, %v5547
        %vm5572 = vcmp.eq.f32.partialorder %v5571, 8.507059e+37
        %v5573 = vand.u32 %v5547, 2147483648
        %v5574 = vor.u32 1.1754944e-38, %v5573
        %v5575 = vsel %vm5572, %v5574, %v5570
        %s5576 = scalar_lea.vmem [#allocation3], 384
        %v5577 = vld [vmem:[%s5576] sm:$0xf]
        %v5578 = vld [vmem:[%s5576 + $0x4] sm:$0xf]
        %v5579 = vld [vmem:[%s5576 + $0x8] sm:$0xf]
        %v5580 = vld [vmem:[%s5576 + $0xc] sm:$0xf]
        %v5581 = vld [vmem:[%s5576 + $0x10] sm:$0xf]
        %v5582 = vld [vmem:[%s5576 + $0x14] sm:$0xf]
        %v5583 = vld [vmem:[%s5576 + $0x18] sm:$0xf]
        %v5584 = vld [vmem:[%s5576 + $0x1c] sm:$0xf]
        %v5585 = vld [vmem:[%s5576 + $0x20] sm:$0xf]
        %v5586 = vld [vmem:[%s5576 + $0x24] sm:$0xf]
        %v5587 = vld [vmem:[%s5576 + $0x28] sm:$0xf]
        %v5588 = vld [vmem:[%s5576 + $0x2c] sm:$0xf]
        %v5589 = vld [vmem:[%s5576 + $0x30] sm:$0xf]
        %v5590 = vld [vmem:[%s5576 + $0x34] sm:$0xf]
        %v5591 = vld [vmem:[%s5576 + $0x38] sm:$0xf]
        %v5592 = vld [vmem:[%s5576 + $0x3c] sm:$0xf]
        %v5593 = vld [vmem:[%s5576 + $0x40] sm:$0xf]
        %v5594 = vld [vmem:[%s5576 + $0x44] sm:$0xf]
        %v5595 = vld [vmem:[%s5576 + $0x48] sm:$0xf]
        %v5596 = vld [vmem:[%s5576 + $0x4c] sm:$0xf]
        %v5597 = vld [vmem:[%s5576 + $0x50] sm:$0xf]
        %v5598 = vld [vmem:[%s5576 + $0x54] sm:$0xf]
        %v5599 = vld [vmem:[%s5576 + $0x58] sm:$0xf]
        %v5600 = vld [vmem:[%s5576 + $0x5c] sm:$0xf]
        %v5601 = vld [vmem:[%s5576 + $0x60] sm:$0xf]
        %v5602 = vld [vmem:[%s5576 + $0x64] sm:$0xf]
        %v5603 = vld [vmem:[%s5576 + $0x68] sm:$0xf]
        %v5604 = vld [vmem:[%s5576 + $0x6c] sm:$0xf]
        %v5605 = vld [vmem:[%s5576 + $0x70] sm:$0xf]
        %v5606 = vld [vmem:[%s5576 + $0x74] sm:$0xf]
        %v5607 = vld [vmem:[%s5576 + $0x78] sm:$0xf]
        %v5608 = vld [vmem:[%s5576 + $0x7c] sm:$0xf]
        %v5609 = vpack.c.bf16 %v5351, %v5347
        %v5610 = vpack.c.bf16 %v5353, %v5349
        %v5611 = vpack.c.bf16 %v5359, %v5355
        %v5612 = vpack.c.bf16 %v5361, %v5357
        %v5613 = vpack.c.bf16 %v5367, %v5363
        %v5614 = vpack.c.bf16 %v5369, %v5365
        %v5615 = vpack.c.bf16 %v5375, %v5371
        %v5616 = vpack.c.bf16 %v5377, %v5373
        %v5617 = vpack.c.bf16 %v5383, %v5379
        %v5618 = vpack.c.bf16 %v5385, %v5381
        %v5619 = vpack.c.bf16 %v5391, %v5387
        %v5620 = vpack.c.bf16 %v5393, %v5389
        %v5621 = vpack.c.bf16 %v5399, %v5395
        %v5622 = vpack.c.bf16 %v5401, %v5397
        %v5623 = vpack.c.bf16 %v5407, %v5403
        %v5624 = vpack.c.bf16 %v5409, %v5405
        %v5625 = vpack.c.bf16 %v5415, %v5411
        %v5626 = vpack.c.bf16 %v5417, %v5413
        %v5627 = vpack.c.bf16 %v5423, %v5419
        %v5628 = vpack.c.bf16 %v5425, %v5421
        %v5629 = vpack.c.bf16 %v5431, %v5427
        %v5630 = vpack.c.bf16 %v5433, %v5429
        %v5631 = vpack.c.bf16 %v5439, %v5435
        %v5632 = vpack.c.bf16 %v5441, %v5437
        %v5633 = vpack.c.bf16 %v5447, %v5443
        %v5634 = vpack.c.bf16 %v5449, %v5445
        %v5635 = vpack.c.bf16 %v5455, %v5451
        %v5636 = vpack.c.bf16 %v5457, %v5453
        %v5637 = vpack.c.bf16 %v5463, %v5459
        %v5638 = vpack.c.bf16 %v5465, %v5461
        %v5639 = vpack.c.bf16 %v5471, %v5467
        %v5640 = vpack.c.bf16 %v5473, %v5469
        %v5673 = vunpack.c.l.b16 %v5577
        %v5674 = vunpack.c.l.b16 %v5578
        %v5675 = vunpack.c.l.b16 %v5579
        %v5676 = vunpack.c.l.b16 %v5580
        %v5677 = vunpack.c.l.b16 %v5581
        %v5678 = vunpack.c.l.b16 %v5582
        %v5679 = vunpack.c.l.b16 %v5583
        %v5680 = vunpack.c.l.b16 %v5584
        %v5681 = vunpack.c.l.b16 %v5585
        %v5682 = vunpack.c.l.b16 %v5586
        %v5683 = vunpack.c.l.b16 %v5587
        %v5684 = vunpack.c.l.b16 %v5588
        %v5685 = vunpack.c.l.b16 %v5589
        %v5686 = vunpack.c.l.b16 %v5590
        %v5687 = vunpack.c.l.b16 %v5591
        %v5688 = vunpack.c.l.b16 %v5592
        %v5689 = vunpack.c.l.b16 %v5593
        %v5690 = vunpack.c.l.b16 %v5594
        %v5691 = vunpack.c.l.b16 %v5595
        %v5692 = vunpack.c.l.b16 %v5596
        %v5693 = vunpack.c.l.b16 %v5597
        %v5694 = vunpack.c.l.b16 %v5598
        %v5695 = vunpack.c.l.b16 %v5599
        %v5696 = vunpack.c.l.b16 %v5600
        %v5697 = vunpack.c.l.b16 %v5601
        %v5698 = vunpack.c.l.b16 %v5602
        %v5699 = vunpack.c.l.b16 %v5603
        %v5700 = vunpack.c.l.b16 %v5604
        %v5701 = vunpack.c.l.b16 %v5605
        %v5702 = vunpack.c.l.b16 %v5606
        %v5703 = vunpack.c.l.b16 %v5607
        %v5704 = vunpack.c.l.b16 %v5608
        %v5705 = vpack.c.b16 %v5674, %v5673
        %v5706 = vpack.c.b16 %v5676, %v5675
        %v5707 = vpack.c.b16 %v5678, %v5677
        %v5708 = vpack.c.b16 %v5680, %v5679
        %v5709 = vpack.c.b16 %v5682, %v5681
        %v5710 = vpack.c.b16 %v5684, %v5683
        %v5711 = vpack.c.b16 %v5686, %v5685
        %v5712 = vpack.c.b16 %v5688, %v5687
        %v5713 = vpack.c.b16 %v5690, %v5689
        %v5714 = vpack.c.b16 %v5692, %v5691
        %v5715 = vpack.c.b16 %v5694, %v5693
        %v5716 = vpack.c.b16 %v5696, %v5695
        %v5717 = vpack.c.b16 %v5698, %v5697
        %v5718 = vpack.c.b16 %v5700, %v5699
        %v5719 = vpack.c.b16 %v5702, %v5701
        %v5720 = vpack.c.b16 %v5704, %v5703
        %5737 = vxpose.xlu0.c.b16.start [1/8] %v5705, 128
        %5738 = vxpose.xlu0.c.b16.cont [2/8] %v5706, 128
        %5739 = vxpose.xlu0.c.b16.cont [3/8] %v5707, 128
        %5740 = vxpose.xlu0.c.b16.cont [4/8] %v5708, 128
        %5741 = vxpose.xlu0.c.b16.cont [5/8] %v5709, 128
        %5742 = vxpose.xlu0.c.b16.cont [6/8] %v5710, 128
        %5743 = vxpose.xlu0.c.b16.cont [7/8] %v5711, 128
        %5744 = vxpose.xlu0.c.b16.end [8/8] %v5712, 128
        %v5745 = vpop.trf.xlu0
        %v5746 = vpop.trf.xlu0
        %v5747 = vpop.trf.xlu0
        %v5748 = vpop.trf.xlu0
        %v5749 = vpop.trf.xlu0
        %v5750 = vpop.trf.xlu0
        %v5751 = vpop.trf.xlu0
        %v5752 = vpop.trf.xlu0
        %5753 = vxpose.xlu0.c.b16.start [1/8] %v5713, 128
        %5754 = vxpose.xlu0.c.b16.cont [2/8] %v5714, 128
        %5755 = vxpose.xlu0.c.b16.cont [3/8] %v5715, 128
        %5756 = vxpose.xlu0.c.b16.cont [4/8] %v5716, 128
        %5757 = vxpose.xlu0.c.b16.cont [5/8] %v5717, 128
        %5758 = vxpose.xlu0.c.b16.cont [6/8] %v5718, 128
        %5759 = vxpose.xlu0.c.b16.cont [7/8] %v5719, 128
        %5760 = vxpose.xlu0.c.b16.end [8/8] %v5720, 128
        %v5761 = vpop.trf.xlu0
        %v5762 = vpop.trf.xlu0
        %v5763 = vpop.trf.xlu0
        %v5764 = vpop.trf.xlu0
        %v5765 = vpop.trf.xlu0
        %v5766 = vpop.trf.xlu0
        %v5767 = vpop.trf.xlu0
        %v5768 = vpop.trf.xlu0
        %5769 = vmatpush.bf16.msra.mxu0 %v5623
        %5770 = vmatpush.bf16.msra.mxu0 %v5621
        %5771 = vmatpush.bf16.msra.mxu0 %v5619
        %5772 = vmatpush.bf16.msra.mxu0 %v5617
        %5773 = vmatpush.bf16.msra.mxu0 %v5615
        %5774 = vmatpush.bf16.msra.mxu0 %v5613
        %5775 = vmatpush.bf16.msra.mxu0 %v5611
        %5776 = vmatpush.bf16.msra.mxu0 %v5609
        %5777 = vmatmul.bf16.gmra.mxu0 %v5745
        %v5778 = vpop.f32.mrf.mxu0
        %v5779 = vadd.f32 0.0, %v5778
        %v5780 = vpop.f32.mrf.mxu0
        %v5781 = vadd.f32 0.0, %v5780
        %5782 = vmatmul.bf16.gmra.mxu0 %v5746
        %v5783 = vpop.f32.mrf.mxu0
        %v5784 = vadd.f32 0.0, %v5783
        %v5785 = vpop.f32.mrf.mxu0
        %v5786 = vadd.f32 0.0, %v5785
        %5787 = vdwg.mxu0
        %5788 = vmatpush.bf16.msra.mxu0 %v5639
        %5789 = vmatpush.bf16.msra.mxu0 %v5637
        %5790 = vmatpush.bf16.msra.mxu0 %v5635
        %5791 = vmatpush.bf16.msra.mxu0 %v5633
        %5792 = vmatpush.bf16.msra.mxu0 %v5631
        %5793 = vmatpush.bf16.msra.mxu0 %v5629
        %5794 = vmatpush.bf16.msra.mxu0 %v5627
        %5795 = vmatpush.bf16.msra.mxu0 %v5625
        %5796 = vmatmul.bf16.gmra.mxu0 %v5761
        %v5797 = vpop.f32.mrf.mxu0
        %v5798 = vadd.f32 %v5779, %v5797
        %v5799 = vpop.f32.mrf.mxu0
        %v5800 = vadd.f32 %v5781, %v5799
        %5801 = vmatmul.bf16.gmra.mxu0 %v5762
        %v5802 = vpop.f32.mrf.mxu0
        %v5803 = vadd.f32 %v5784, %v5802
        %v5804 = vpop.f32.mrf.mxu0
        %v5805 = vadd.f32 %v5786, %v5804
        %5806 = vdwg.mxu0
        %5807 = vmatpush.bf16.msra.mxu0 %v5624
        %5808 = vmatpush.bf16.msra.mxu0 %v5622
        %5809 = vmatpush.bf16.msra.mxu0 %v5620
        %5810 = vmatpush.bf16.msra.mxu0 %v5618
        %5811 = vmatpush.bf16.msra.mxu0 %v5616
        %5812 = vmatpush.bf16.msra.mxu0 %v5614
        %5813 = vmatpush.bf16.msra.mxu0 %v5612
        %5814 = vmatpush.bf16.msra.mxu0 %v5610
        %5815 = vmatmul.bf16.gmra.mxu0 %v5745
        %v5816 = vpop.f32.mrf.mxu0
        %v5817 = vadd.f32 0.0, %v5816
        %v5818 = vpop.f32.mrf.mxu0
        %v5819 = vadd.f32 0.0, %v5818
        %5820 = vmatmul.bf16.gmra.mxu0 %v5746
        %v5821 = vpop.f32.mrf.mxu0
        %v5822 = vadd.f32 0.0, %v5821
        %v5823 = vpop.f32.mrf.mxu0
        %v5824 = vadd.f32 0.0, %v5823
        %5825 = vdwg.mxu0
        %5826 = vmatpush.bf16.msra.mxu0 %v5640
        %5827 = vmatpush.bf16.msra.mxu0 %v5638
        %5828 = vmatpush.bf16.msra.mxu0 %v5636
        %5829 = vmatpush.bf16.msra.mxu0 %v5634
        %5830 = vmatpush.bf16.msra.mxu0 %v5632
        %5831 = vmatpush.bf16.msra.mxu0 %v5630
        %5832 = vmatpush.bf16.msra.mxu0 %v5628
        %5833 = vmatpush.bf16.msra.mxu0 %v5626
        %5834 = vmatmul.bf16.gmra.mxu0 %v5761
        %v5835 = vpop.f32.mrf.mxu0
        %v5836 = vadd.f32 %v5817, %v5835
        %v5837 = vpop.f32.mrf.mxu0
        %v5838 = vadd.f32 %v5819, %v5837
        %5839 = vmatmul.bf16.gmra.mxu0 %v5762
        %v5840 = vpop.f32.mrf.mxu0
        %v5841 = vadd.f32 %v5822, %v5840
        %v5842 = vpop.f32.mrf.mxu0
        %v5843 = vadd.f32 %v5824, %v5842
        %5844 = vdwg.mxu0
        %v5845 = vmul.f32 %v5798, %v5561
        %v5846 = vmul.f32 %v5836, %v5575
        %v5847 = vmul.f32 %v5800, %v5561
        %v5848 = vmul.f32 %v5838, %v5575
        %v5849 = vmul.f32 %v5803, %v5561
        %v5850 = vmul.f32 %v5841, %v5575
        %v5851 = vmul.f32 %v5805, %v5561
        %v5852 = vmul.f32 %v5843, %v5575
        %v5853 = vld [vmem:[%s204] sm:$0xff]
        %v5854 = vld [vmem:[%s204 + $0x8] sm:$0xff]
        %v5855 = vld [vmem:[%s204 + $0x10] sm:$0xff]
        %v5856 = vld [vmem:[%s204 + $0x18] sm:$0xff]
        %v5857 = vld [vmem:[%s204 + $0x20] sm:$0xff]
        %v5858 = vld [vmem:[%s204 + $0x28] sm:$0xff]
        %v5859 = vld [vmem:[%s204 + $0x30] sm:$0xff]
        %v5860 = vld [vmem:[%s204 + $0x38] sm:$0xff]
        %v5861 = vadd.f32 %v5853, %v5845
        %v5862 = vadd.f32 %v5854, %v5846
        %v5863 = vadd.f32 %v5855, %v5847
        %v5864 = vadd.f32 %v5856, %v5848
        %v5865 = vadd.f32 %v5857, %v5849
        %v5866 = vadd.f32 %v5858, %v5850
        %v5867 = vadd.f32 %v5859, %v5851
        %v5868 = vadd.f32 %v5860, %v5852
        %5869 = vst [vmem:[%s204] sm:$0xff] %v5861
        %5870 = vst [vmem:[%s204 + $0x8] sm:$0xff] %v5862
        %5871 = vst [vmem:[%s204 + $0x10] sm:$0xff] %v5863
        %5872 = vst [vmem:[%s204 + $0x18] sm:$0xff] %v5864
        %5873 = vst [vmem:[%s204 + $0x20] sm:$0xff] %v5865
        %5874 = vst [vmem:[%s204 + $0x28] sm:$0xff] %v5866
        %5875 = vst [vmem:[%s204 + $0x30] sm:$0xff] %v5867
        %5876 = vst [vmem:[%s204 + $0x38] sm:$0xff] %v5868
        %s5877 = sand.u32 %s129, 1
        %s5878 = scalar_lea.sflag [#allocation5], %s5877
        %s5879 = sand.u32 %s129, 1
        %s5880 = smul.addr %s5879, 64
        %s5881 = scalar_lea.vmem [#allocation4], %s5880
        // Predicated region
        $region41: #{tpu_custom_call.1} parent=35 // pred_check
          %p5882 = pneg %p139
        $region42: #{tpu_custom_call.1} parent=35 // pred_check_branch
          %5884 = sbr.rel (%p5882) target = $region44
        $region43: #{tpu_custom_call.1} parent=35 // pred_region
          %s5885 = smul.u32 2, %s23
          %5887 = vsyncadd %s5878, 0
          %s5888 = smul.addr %s22, 8
          %s5889 = sadd.s32 %s5885, %s5888
          %s5890 = smul.addr %s5889, 8
          %s5891 = scalar_lea.hbm %s4, %s5890
          %s5892 = sshll.u32 %s5881, 4
          %s5893 = int_to_ptr.vmem [resolvable:$true] %s5892
          %s5894 = sshll.u32 %s5891, 4
          %s5895 = int_to_ptr.hbm [resolvable:$true] %s5894
          %5900 = dma.vmem_to_hbm [thread:$0]  %s5893, 1024, %s5895, %s5878, 256, 256, 16
        $region44: #{tpu_custom_call.1} parent=35 // pred_fallthru
          _
      $region36: #{tpu_custom_call.1} parent=5 // pred_fallthru
        _
      %p5901 = scmp.le.s32.totalorder 2, %s13
      // Predicated region
      $region45: #{tpu_custom_call.1} parent=5 // pred_check
        %p5902 = pneg %p5901
      $region46: #{tpu_custom_call.1} parent=5 // pred_check_branch
        %5904 = sbr.rel (%p5902) target = $region48
      $region47: #{tpu_custom_call.1} parent=5 // pred_region
        %s5905 = ssub.s32 %s13, 2
        // Predicated region
        $region49: #{tpu_custom_call.1} parent=47 // pred_check
          %p5906 = pneg %p145
        $region50: #{tpu_custom_call.1} parent=47 // pred_check_branch
          %5908 = sbr.rel (%p5906) target = $region52
        $region51: #{tpu_custom_call.1} parent=47 // pred_region
          %s5909 = sand.u32 %s130, 1
          %s5910 = scalar_lea.sflag [#allocation5], %s5909
          %s5911 = sand.u32 %s130, 1
          %s5912 = smul.addr %s5911, 64
          %s5913 = scalar_lea.vmem [#allocation4], %s5912
          %5915 = dma.done %s5910, 1024
        $region52: #{tpu_custom_call.1} parent=47 // pred_fallthru
          _
      $region48: #{tpu_custom_call.1} parent=5 // pred_fallthru
        _
    $region6: #{tpu_custom_call.1} parent=1 // loop_footer
      %s17 = sadd.s32 1, %s13
    $region7: #{tpu_custom_call.1} parent=1 // loop_footer_branch
      %12 = sbr.rel target = $region3
    $region8: #{tpu_custom_call.1} parent=1 // loop_exit
      _
    %5916 = vsyncpa [#allocation5], 1
    %s5917 = scalar_lea.sflag [#allocation5], 1
    %5918 = vsyncpa %s5917, 1

</llo_original>
